<compile_context>
chip_gen: v7x
topology: tpu7x:2x2x1
jax: 0.10.0
libtpu: 0.0.40
codegen_flags: <defaults>
</compile_context>

<pallas_src>
import functools

import jax
import jax.numpy as jnp
from jax import lax
from jax.experimental import pallas as pl
from jax.experimental.pallas import tpu as pltpu


INPUT_SIZE = 8
HIDDEN_SIZE = 16
NUM_LAYERS = 2


def _lstm_chunk_kernel(x_ref,      # (Tc, D, TB)  batch-minor input chunk
                       wih0_ref,   # (4H, D)      layer-0 input weights (i|f|g|o rows)
                       whh0_ref,   # (4H, H)      layer-0 recurrent weights
                       b0_ref,     # (4H, 1)      b_ih0 + b_hh0
                       wih1_ref,   # (4H, H)      layer-1 input weights
                       whh1_ref,   # (4H, H)      layer-1 recurrent weights
                       b1_ref,     # (4H, 1)      b_ih1 + b_hh1
                       wout_ref,   # (H, 1)       output weights (column)
                       bout_ref,   # (1, 1)
                       out_ref,    # (1, 1, TB)   lane-dense logits for this batch tile
                       h1_ref, c1_ref, h2_ref, c2_ref, acc_ref,  # (H, TB) VMEM state
                       *, seq_len, chunk_len, mask_tail, unroll):
    Tc, D, TB = x_ref.shape
    H4, H = whh0_ref.shape
    c_idx = pl.program_id(1)                      # time-chunk index ("arbitrary" axis)

    # Reset the persistent recurrent state at the first chunk of each batch tile.
    @pl.when(c_idx == 0)
    def _():
        z = jnp.zeros((H, TB), jnp.float32)
        h1_ref[...] = z
        c1_ref[...] = z
        h2_ref[...] = z
        c2_ref[...] = z
        acc_ref[...] = z

    # Hoisted lane-broadcasts of the fused biases (JAX does not CSE these in a loop).
    b0_b = jnp.broadcast_to(b0_ref[...], (H4, TB))
    b1_b = jnp.broadcast_to(b1_ref[...], (H4, TB))

    def cell(gates, c):
        # PyTorch gate order i, f, g, o as sublane row-blocks (tile-aligned for H=16).
        i = jax.nn.sigmoid(gates[0 * H:1 * H, :])
        f = jax.nn.sigmoid(gates[1 * H:2 * H, :])
        g = jnp.tanh(gates[2 * H:3 * H, :])
        o = jax.nn.sigmoid(gates[3 * H:4 * H, :])
        c_new = f * c + i * g
        return o * jnp.tanh(c_new), c_new

    t0 = c_idx * chunk_len

    def body(t, carry):
        h1, c1, h2, c2, acc = carry
        x_t = x_ref[t]                                                    # (D, TB)
        # Layer 0: two accumulating matmuls (input term is off the serial chain).
        g0 = (jnp.dot(wih0_ref[...], x_t, preferred_element_type=jnp.float32)
              + jnp.dot(whh0_ref[...], h1, preferred_element_type=jnp.float32)
              + b0_b)
        h1, c1 = cell(g0, c1)
        # Layer 1: two matmuls, no concat on the critical path.
        g1 = (jnp.dot(wih1_ref[...], h1, preferred_element_type=jnp.float32)
              + jnp.dot(whh1_ref[...], h2, preferred_element_type=jnp.float32)
              + b1_b)
        h2, c2 = cell(g1, c2)
        if mask_tail:
            # Padded tail steps must not contribute to the temporal mean.
            valid = ((t0 + t) < seq_len).astype(jnp.float32)
            acc = acc + valid * h2
        else:
            acc = acc + h2
        return (h1, c1, h2, c2, acc)

    carry0 = (h1_ref[...], c1_ref[...], h2_ref[...], c2_ref[...], acc_ref[...])
    h1, c1, h2, c2, acc = lax.fori_loop(0, Tc, body, carry0, unroll=unroll)

    h1_ref[...] = h1
    c1_ref[...] = c1
    h2_ref[...] = h2
    c2_ref[...] = c2
    acc_ref[...] = acc

    # Finalize on the last time chunk: mean folded into wout, lane-dense output.
    @pl.when(c_idx == pl.num_programs(1) - 1)
    def _():
        wout_scaled = wout_ref[...] * (1.0 / seq_len)                     # (H, 1)
        # VPU multiply + sublane reduce -> (1, TB); avoids a degenerate matmul
        # and any output transpose.
        logits = jnp.sum(acc * wout_scaled, axis=0, keepdims=True) + bout_ref[...]
        out_ref[...] = logits.reshape(1, 1, TB).astype(out_ref.dtype)


def hw5_forward(x, params, *, batch_tile=128, time_chunk=128):
    """x: (B, T, D) batch-first float32 (PyTorch convention). Returns (B,) logits."""
    B, T, D = x.shape
    H4, H = params["whh0"].shape
    assert H4 == 4 * H

    # Batch tile on the lane axis: multiple of 128.  Use smaller batch_tile (e.g. 64*2
    # tiles) only if you need to force >=2 tiles for v7x dual-TC at small B.
    TB = max(128, (int(batch_tile) // 128) * 128)
    nb = pl.cdiv(B, TB)
    B_pad = nb * TB

    # Time chunking bounds VMEM (critical on v7x) and pipelines the x-chunk DMA.
    Tc = int(min(T, int(time_chunk)))
    nc = pl.cdiv(T, Tc)
    T_pad = nc * Tc

    # Batch-minor layout: (B, T, D) -> (T, D, B) so the x tile is lane-dense.
    x_tdb = jnp.transpose(x, (1, 2, 0)).astype(jnp.float32)
    if (T_pad, B_pad) != (T, B):
        x_tdb = jnp.pad(x_tdb, ((0, T_pad - T), (0, 0), (0, B_pad - B)))

    kernel = functools.partial(
        _lstm_chunk_kernel,
        seq_len=T, chunk_len=Tc, mask_tail=(T_pad != T), unroll=min(Tc, 8))

    vmem_full = pl.BlockSpec(memory_space=pltpu.MemorySpace.VMEM)  # whole array resident

    out = pl.pallas_call(
        kernel,
        out_shape=jax.ShapeDtypeStruct((nb, 1, TB), jnp.float32),
        grid=(nb, nc),
        in_specs=[
            pl.BlockSpec((Tc, D, TB), lambda b, c: (c, 0, b)),     # x chunk (pipelined)
            vmem_full,  # wih0
            vmem_full,  # whh0
            vmem_full,  # b0
            vmem_full,  # wih1
            vmem_full,  # whh1
            vmem_full,  # b1
            vmem_full,  # wout
            vmem_full,  # bout
        ],
        out_specs=pl.BlockSpec((1, 1, TB), lambda b, c: (b, 0, 0)),
        scratch_shapes=[pltpu.VMEM((H, TB), jnp.float32)] * 5,     # h1,c1,h2,c2,acc
        compiler_params=pltpu.CompilerParams(
            dimension_semantics=("parallel", "arbitrary"),         # batch ∥, time serial
        ),
    )(x_tdb, params["wih0"], params["whh0"], params["b0"],
      params["wih1"], params["whh1"], params["b1"],
      params["wout"], params["bout"])

    return out.reshape(nb * TB)[:B]                                # torch.squeeze -> (B,)


def init_params(key, input_size=INPUT_SIZE, hidden_size=HIDDEN_SIZE):
    """Deterministic params mirroring nn.LSTM / nn.Linear shapes.
    Weights stay in native PyTorch orientation (4H, in)/(4H, H) — exactly what the
    transposed (batch-on-lanes) kernel needs; biases are summed to (4H, 1) columns;
    the output weight is stored as an (H, 1) column."""
    H = hidden_size
    k = 1.0 / jnp.sqrt(jnp.float32(H))
    keys = jax.random.split(key, 10)

    def u(kk, shape):
        return jax.random.uniform(kk, shape, jnp.float32, -k, k)

    # layer 0
    w_ih0 = u(keys[0], (4 * H, input_size))
    w_hh0 = u(keys[1], (4 * H, H))
    b_ih0 = u(keys[2], (4 * H,))
    b_hh0 = u(keys[3], (4 * H,))
    # layer 1
    w_ih1 = u(keys[4], (4 * H, H))
    w_hh1 = u(keys[5], (4 * H, H))
    b_ih1 = u(keys[6], (4 * H,))
    b_hh1 = u(keys[7], (4 * H,))
    # output layer: Linear(H, 1)
    w_out = u(keys[8], (1, H))
    b_out = u(keys[9], (1,))

    return dict(
        wih0=w_ih0,                                   # (4H, D)
        whh0=w_hh0,                                   # (4H, H)
        b0=(b_ih0 + b_hh0).reshape(4 * H, 1),
        wih1=w_ih1,                                   # (4H, H)
        whh1=w_hh1,                                   # (4H, H)
        b1=(b_ih1 + b_hh1).reshape(4 * H, 1),
        wout=jnp.transpose(w_out),                    # (H, 1)
        bout=b_out.reshape(1, 1),
    )


def hw5_forward_ref(x, params):
    """Pure-JAX reference (same math, batch-major) for correctness checking."""
    B, T, D = x.shape
    H = params["whh0"].shape[1]
    wih0 = params["wih0"].T
    whh0 = params["whh0"].T
    wih1 = params["wih1"].T
    whh1 = params["whh1"].T
    b0 = params["b0"].reshape(1, -1)
    b1 = params["b1"].reshape(1, -1)

    def cell(g, c):
        i = jax.nn.sigmoid(g[:, :H])
        f = jax.nn.sigmoid(g[:, H:2 * H])
        gg = jnp.tanh(g[:, 2 * H:3 * H])
        o = jax.nn.sigmoid(g[:, 3 * H:])
        c_new = f * c + i * gg
        return o * jnp.tanh(c_new), c_new

    def step(carry, x_t):
        h1, c1, h2, c2 = carry
        g0 = x_t @ wih0 + h1 @ whh0 + b0
        h1, c1 = cell(g0, c1)
        g1 = h1 @ wih1 + h2 @ whh1 + b1
        h2, c2 = cell(g1, c2)
        return (h1, c1, h2, c2), h2

    xs = jnp.transpose(x, (1, 0, 2)).astype(jnp.float32)   # (T, B, D)
    z = jnp.zeros((B, H), jnp.float32)
    _, h2s = lax.scan(step, (z, z, z, z), xs)
    embed = jnp.mean(h2s, axis=0)                          # (B, H)
    return jnp.squeeze(embed @ params["wout"] + params["bout"], axis=-1)


if __name__ == "__main__":
    key = jax.random.PRNGKey(0)
    k_param, k_x, k_x2 = jax.random.split(key, 3)

    params = init_params(k_param)

    # Primary small test: batch=2, seq=8, input_size=8 (single time chunk).
    B, T = 2, 8
    x = jax.random.normal(k_x, (B, T, INPUT_SIZE), jnp.float32)
    out = jax.block_until_ready(hw5_forward(x, params))
    ref = jax.block_until_ready(hw5_forward_ref(x, params))
    assert out.shape == (B,), out.shape
    assert jnp.allclose(out, ref, atol=1e-4, rtol=1e-4), (out, ref)

    # Secondary test exercising the multi-chunk + padded-tail path (T=13, Tc=4).
    B2, T2 = 3, 13
    x2 = jax.random.normal(k_x2, (B2, T2, INPUT_SIZE), jnp.float32)
    out2 = jax.block_until_ready(hw5_forward(x2, params, time_chunk=4))
    ref2 = jax.block_until_ready(hw5_forward_ref(x2, params))
    assert out2.shape == (B2,), out2.shape
    assert jnp.allclose(out2, ref2, atol=1e-4, rtol=1e-4), (out2, ref2)

    print("KERNEL_OK")
</pallas_src>

<mosaic_0001>
module attributes {stable_mosaic.version = 11 : i64} {
  func.func @_lstm_chunk_kernel(%arg0: i32, %arg1: i32, %arg2: memref<8x8x128xf32, #tpu.memory_space<vmem>>, %arg3: memref<64x8xf32, #tpu.memory_space<vmem>>, %arg4: memref<64x16xf32, #tpu.memory_space<vmem>>, %arg5: memref<64x1xf32, #tpu.memory_space<vmem>>, %arg6: memref<64x16xf32, #tpu.memory_space<vmem>>, %arg7: memref<64x16xf32, #tpu.memory_space<vmem>>, %arg8: memref<64x1xf32, #tpu.memory_space<vmem>>, %arg9: memref<16x1xf32, #tpu.memory_space<vmem>>, %arg10: memref<1x1xf32, #tpu.memory_space<vmem>>, %arg11: memref<1x1x128xf32, #tpu.memory_space<vmem>>, %arg12: memref<16x128xf32, #tpu.memory_space<vmem>>, %arg13: memref<16x128xf32, #tpu.memory_space<vmem>>, %arg14: memref<16x128xf32, #tpu.memory_space<vmem>>, %arg15: memref<16x128xf32, #tpu.memory_space<vmem>>, %arg16: memref<16x128xf32, #tpu.memory_space<vmem>>) attributes {dimension_semantics = [#tpu.dimension_semantics<parallel>, #tpu.dimension_semantics<arbitrary>], iteration_bounds = array<i64: 1, 1>, scalar_prefetch = 0 : i64, scratch_operands = 5 : i64, tpu.core_type = #tpu.core_type<tc>, window_params = [{transform_indices = @transform_0, window_bounds = array<i64: 8, 8, 128>}, {pipeline_mode = #tpu.pipeline_mode<synchronous>, transform_indices = @transform_1, window_bounds = array<i64: 64, 8>}, {pipeline_mode = #tpu.pipeline_mode<synchronous>, transform_indices = @transform_2, window_bounds = array<i64: 64, 16>}, {pipeline_mode = #tpu.pipeline_mode<synchronous>, transform_indices = @transform_3, window_bounds = array<i64: 64, 1>}, {pipeline_mode = #tpu.pipeline_mode<synchronous>, transform_indices = @transform_4, window_bounds = array<i64: 64, 16>}, {pipeline_mode = #tpu.pipeline_mode<synchronous>, transform_indices = @transform_5, window_bounds = array<i64: 64, 16>}, {pipeline_mode = #tpu.pipeline_mode<synchronous>, transform_indices = @transform_6, window_bounds = array<i64: 64, 1>}, {pipeline_mode = #tpu.pipeline_mode<synchronous>, transform_indices = @transform_7, window_bounds = array<i64: 16, 1>}, {pipeline_mode = #tpu.pipeline_mode<synchronous>, transform_indices = @transform_8, window_bounds = array<i64: 1, 1>}, {transform_indices = @transform_9, window_bounds = array<i64: 1, 1, 128>}]} {
    %c0_i32 = arith.constant 0 : i32
    %0 = arith.cmpi eq, %arg1, %c0_i32 : i32
    %1 = arith.extui %0 : i1 to i32
    %c0_i32_0 = arith.constant 0 : i32
    %2 = arith.cmpi ne, %1, %c0_i32_0 : i32
    scf.if %2 {
      %cst_186 = arith.constant 0.000000e+00 : f32
      %550 = vector.broadcast %cst_186 : f32 to vector<16x128xf32>
      %c0_187 = arith.constant 0 : index
      %c0_188 = arith.constant 0 : index
      %551 = vector.load %arg12[%c0_187, %c0_188] : memref<16x128xf32, #tpu.memory_space<vmem>>, vector<16x128xf32>
      tpu.vector_store %arg12[%c0_187, %c0_188], %550 {strides = array<i32>} : memref<16x128xf32, #tpu.memory_space<vmem>>, vector<16x128xf32>,
      %c0_189 = arith.constant 0 : index
      %c0_190 = arith.constant 0 : index
      %552 = vector.load %arg13[%c0_189, %c0_190] : memref<16x128xf32, #tpu.memory_space<vmem>>, vector<16x128xf32>
      tpu.vector_store %arg13[%c0_189, %c0_190], %550 {strides = array<i32>} : memref<16x128xf32, #tpu.memory_space<vmem>>, vector<16x128xf32>,
      %c0_191 = arith.constant 0 : index
      %c0_192 = arith.constant 0 : index
      %553 = vector.load %arg14[%c0_191, %c0_192] : memref<16x128xf32, #tpu.memory_space<vmem>>, vector<16x128xf32>
      tpu.vector_store %arg14[%c0_191, %c0_192], %550 {strides = array<i32>} : memref<16x128xf32, #tpu.memory_space<vmem>>, vector<16x128xf32>,
      %c0_193 = arith.constant 0 : index
      %c0_194 = arith.constant 0 : index
      %554 = vector.load %arg15[%c0_193, %c0_194] : memref<16x128xf32, #tpu.memory_space<vmem>>, vector<16x128xf32>
      tpu.vector_store %arg15[%c0_193, %c0_194], %550 {strides = array<i32>} : memref<16x128xf32, #tpu.memory_space<vmem>>, vector<16x128xf32>,
      %c0_195 = arith.constant 0 : index
      %c0_196 = arith.constant 0 : index
      %555 = vector.load %arg16[%c0_195, %c0_196] : memref<16x128xf32, #tpu.memory_space<vmem>>, vector<16x128xf32>
      tpu.vector_store %arg16[%c0_195, %c0_196], %550 {strides = array<i32>} : memref<16x128xf32, #tpu.memory_space<vmem>>, vector<16x128xf32>,
    } else {
    }
    %c0 = arith.constant 0 : index
    %c0_1 = arith.constant 0 : index
    %3 = vector.load %arg5[%c0, %c0_1] : memref<64x1xf32, #tpu.memory_space<vmem>>, vector<64x1xf32>
    %4 = vector.shape_cast %3 : vector<64x1xf32> to vector<64x1xf32>
    %5 = vector.broadcast %4 : vector<64x1xf32> to vector<64x128xf32>
    %c0_2 = arith.constant 0 : index
    %c0_3 = arith.constant 0 : index
    %6 = vector.load %arg8[%c0_2, %c0_3] : memref<64x1xf32, #tpu.memory_space<vmem>>, vector<64x1xf32>
    %7 = vector.shape_cast %6 : vector<64x1xf32> to vector<64x1xf32>
    %8 = vector.broadcast %7 : vector<64x1xf32> to vector<64x128xf32>
    %c0_4 = arith.constant 0 : index
    %c0_5 = arith.constant 0 : index
    %9 = vector.load %arg12[%c0_4, %c0_5] : memref<16x128xf32, #tpu.memory_space<vmem>>, vector<16x128xf32>
    %c0_6 = arith.constant 0 : index
    %c0_7 = arith.constant 0 : index
    %10 = vector.load %arg13[%c0_6, %c0_7] : memref<16x128xf32, #tpu.memory_space<vmem>>, vector<16x128xf32>
    %c0_8 = arith.constant 0 : index
    %c0_9 = arith.constant 0 : index
    %11 = vector.load %arg14[%c0_8, %c0_9] : memref<16x128xf32, #tpu.memory_space<vmem>>, vector<16x128xf32>
    %c0_10 = arith.constant 0 : index
    %c0_11 = arith.constant 0 : index
    %12 = vector.load %arg15[%c0_10, %c0_11] : memref<16x128xf32, #tpu.memory_space<vmem>>, vector<16x128xf32>
    %c0_12 = arith.constant 0 : index
    %c0_13 = arith.constant 0 : index
    %13 = vector.load %arg16[%c0_12, %c0_13] : memref<16x128xf32, #tpu.memory_space<vmem>>, vector<16x128xf32>
    %c0_i32_14 = arith.constant 0 : i32
    %14 = arith.index_cast %c0_i32_14 : i32 to index
    %c0_15 = arith.constant 0 : index
    %c0_16 = arith.constant 0 : index
    %15 = vector.load %arg2[%14, %c0_15, %c0_16] : memref<8x8x128xf32, #tpu.memory_space<vmem>>, vector<1x8x128xf32>
    %16 = vector.shape_cast %15 : vector<1x8x128xf32> to vector<8x128xf32>
    %c0_17 = arith.constant 0 : index
    %c0_18 = arith.constant 0 : index
    %17 = vector.load %arg3[%c0_17, %c0_18] : memref<64x8xf32, #tpu.memory_space<vmem>>, vector<64x8xf32>
    %cst = arith.constant dense<0.000000e+00> : vector<64x128xf32>
    %18 = tpu.matmul %17, %16, %cst {dimension_numbers = #tpu.dot_dimension_numbers<[1], [0], [0], [1], [0, 0, 1, 1], [], []>} : vector<64x8xf32>, vector<8x128xf32>, vector<64x128xf32> -> vector<64x128xf32>
    %c0_19 = arith.constant 0 : index
    %c0_20 = arith.constant 0 : index
    %19 = vector.load %arg4[%c0_19, %c0_20] : memref<64x16xf32, #tpu.memory_space<vmem>>, vector<64x16xf32>
    %cst_21 = arith.constant dense<0.000000e+00> : vector<64x128xf32>
    %20 = tpu.matmul %19, %9, %cst_21 {dimension_numbers = #tpu.dot_dimension_numbers<[1], [0], [0], [1], [0, 0, 1, 1], [], []>} : vector<64x16xf32>, vector<16x128xf32>, vector<64x128xf32> -> vector<64x128xf32>
    %21 = arith.addf %18, %20 : vector<64x128xf32>
    %22 = arith.addf %21, %5 : vector<64x128xf32>
    %23 = vector.extract_strided_slice %22 {offsets = [0, 0], sizes = [16, 128], strides = [1, 1]} : vector<64x128xf32> to vector<16x128xf32>
    %24 = arith.negf %23 : vector<16x128xf32>
    %25 = math.exp %24 : vector<16x128xf32>
    %cst_22 = arith.constant 1.000000e+00 : f32
    %26 = vector.broadcast %cst_22 : f32 to vector<16x128xf32>
    %27 = arith.addf %26, %25 : vector<16x128xf32>
    %28 = arith.divf %26, %27 : vector<16x128xf32>
    %29 = vector.extract_strided_slice %22 {offsets = [16, 0], sizes = [16, 128], strides = [1, 1]} : vector<64x128xf32> to vector<16x128xf32>
    %30 = arith.negf %29 : vector<16x128xf32>
    %31 = math.exp %30 : vector<16x128xf32>
    %cst_23 = arith.constant 1.000000e+00 : f32
    %32 = vector.broadcast %cst_23 : f32 to vector<16x128xf32>
    %33 = arith.addf %32, %31 : vector<16x128xf32>
    %34 = arith.divf %32, %33 : vector<16x128xf32>
    %35 = vector.extract_strided_slice %22 {offsets = [32, 0], sizes = [16, 128], strides = [1, 1]} : vector<64x128xf32> to vector<16x128xf32>
    %36 = math.tanh %35 : vector<16x128xf32>
    %37 = vector.extract_strided_slice %22 {offsets = [48, 0], sizes = [16, 128], strides = [1, 1]} : vector<64x128xf32> to vector<16x128xf32>
    %38 = arith.negf %37 : vector<16x128xf32>
    %39 = math.exp %38 : vector<16x128xf32>
    %cst_24 = arith.constant 1.000000e+00 : f32
    %40 = vector.broadcast %cst_24 : f32 to vector<16x128xf32>
    %41 = arith.addf %40, %39 : vector<16x128xf32>
    %42 = arith.divf %40, %41 : vector<16x128xf32>
    %43 = arith.mulf %34, %10 : vector<16x128xf32>
    %44 = arith.mulf %28, %36 : vector<16x128xf32>
    %45 = arith.addf %43, %44 : vector<16x128xf32>
    %46 = math.tanh %45 : vector<16x128xf32>
    %47 = arith.mulf %42, %46 : vector<16x128xf32>
    %c0_25 = arith.constant 0 : index
    %c0_26 = arith.constant 0 : index
    %48 = vector.load %arg6[%c0_25, %c0_26] : memref<64x16xf32, #tpu.memory_space<vmem>>, vector<64x16xf32>
    %cst_27 = arith.constant dense<0.000000e+00> : vector<64x128xf32>
    %49 = tpu.matmul %48, %47, %cst_27 {dimension_numbers = #tpu.dot_dimension_numbers<[1], [0], [0], [1], [0, 0, 1, 1], [], []>} : vector<64x16xf32>, vector<16x128xf32>, vector<64x128xf32> -> vector<64x128xf32>
    %c0_28 = arith.constant 0 : index
    %c0_29 = arith.constant 0 : index
    %50 = vector.load %arg7[%c0_28, %c0_29] : memref<64x16xf32, #tpu.memory_space<vmem>>, vector<64x16xf32>
    %cst_30 = arith.constant dense<0.000000e+00> : vector<64x128xf32>
    %51 = tpu.matmul %50, %11, %cst_30 {dimension_numbers = #tpu.dot_dimension_numbers<[1], [0], [0], [1], [0, 0, 1, 1], [], []>} : vector<64x16xf32>, vector<16x128xf32>, vector<64x128xf32> -> vector<64x128xf32>
    %52 = arith.addf %49, %51 : vector<64x128xf32>
    %53 = arith.addf %52, %8 : vector<64x128xf32>
    %54 = vector.extract_strided_slice %53 {offsets = [0, 0], sizes = [16, 128], strides = [1, 1]} : vector<64x128xf32> to vector<16x128xf32>
    %55 = arith.negf %54 : vector<16x128xf32>
    %56 = math.exp %55 : vector<16x128xf32>
    %cst_31 = arith.constant 1.000000e+00 : f32
    %57 = vector.broadcast %cst_31 : f32 to vector<16x128xf32>
    %58 = arith.addf %57, %56 : vector<16x128xf32>
    %59 = arith.divf %57, %58 : vector<16x128xf32>
    %60 = vector.extract_strided_slice %53 {offsets = [16, 0], sizes = [16, 128], strides = [1, 1]} : vector<64x128xf32> to vector<16x128xf32>
    %61 = arith.negf %60 : vector<16x128xf32>
    %62 = math.exp %61 : vector<16x128xf32>
    %cst_32 = arith.constant 1.000000e+00 : f32
    %63 = vector.broadcast %cst_32 : f32 to vector<16x128xf32>
    %64 = arith.addf %63, %62 : vector<16x128xf32>
    %65 = arith.divf %63, %64 : vector<16x128xf32>
    %66 = vector.extract_strided_slice %53 {offsets = [32, 0], sizes = [16, 128], strides = [1, 1]} : vector<64x128xf32> to vector<16x128xf32>
    %67 = math.tanh %66 : vector<16x128xf32>
    %68 = vector.extract_strided_slice %53 {offsets = [48, 0], sizes = [16, 128], strides = [1, 1]} : vector<64x128xf32> to vector<16x128xf32>
    %69 = arith.negf %68 : vector<16x128xf32>
    %70 = math.exp %69 : vector<16x128xf32>
    %cst_33 = arith.constant 1.000000e+00 : f32
    %71 = vector.broadcast %cst_33 : f32 to vector<16x128xf32>
    %72 = arith.addf %71, %70 : vector<16x128xf32>
    %73 = arith.divf %71, %72 : vector<16x128xf32>
    %74 = arith.mulf %65, %12 : vector<16x128xf32>
    %75 = arith.mulf %59, %67 : vector<16x128xf32>
    %76 = arith.addf %74, %75 : vector<16x128xf32>
    %77 = math.tanh %76 : vector<16x128xf32>
    %78 = arith.mulf %73, %77 : vector<16x128xf32>
    %79 = arith.addf %13, %78 : vector<16x128xf32>
    %c1_i32 = arith.constant 1 : i32
    %80 = arith.index_cast %c1_i32 : i32 to index
    %c0_34 = arith.constant 0 : index
    %c0_35 = arith.constant 0 : index
    %81 = vector.load %arg2[%80, %c0_34, %c0_35] : memref<8x8x128xf32, #tpu.memory_space<vmem>>, vector<1x8x128xf32>
    %82 = vector.shape_cast %81 : vector<1x8x128xf32> to vector<8x128xf32>
    %c0_36 = arith.constant 0 : index
    %c0_37 = arith.constant 0 : index
    %83 = vector.load %arg3[%c0_36, %c0_37] : memref<64x8xf32, #tpu.memory_space<vmem>>, vector<64x8xf32>
    %cst_38 = arith.constant dense<0.000000e+00> : vector<64x128xf32>
    %84 = tpu.matmul %83, %82, %cst_38 {dimension_numbers = #tpu.dot_dimension_numbers<[1], [0], [0], [1], [0, 0, 1, 1], [], []>} : vector<64x8xf32>, vector<8x128xf32>, vector<64x128xf32> -> vector<64x128xf32>
    %c0_39 = arith.constant 0 : index
    %c0_40 = arith.constant 0 : index
    %85 = vector.load %arg4[%c0_39, %c0_40] : memref<64x16xf32, #tpu.memory_space<vmem>>, vector<64x16xf32>
    %cst_41 = arith.constant dense<0.000000e+00> : vector<64x128xf32>
    %86 = tpu.matmul %85, %47, %cst_41 {dimension_numbers = #tpu.dot_dimension_numbers<[1], [0], [0], [1], [0, 0, 1, 1], [], []>} : vector<64x16xf32>, vector<16x128xf32>, vector<64x128xf32> -> vector<64x128xf32>
    %87 = arith.addf %84, %86 : vector<64x128xf32>
    %88 = arith.addf %87, %5 : vector<64x128xf32>
    %89 = vector.extract_strided_slice %88 {offsets = [0, 0], sizes = [16, 128], strides = [1, 1]} : vector<64x128xf32> to vector<16x128xf32>
    %90 = arith.negf %89 : vector<16x128xf32>
    %91 = math.exp %90 : vector<16x128xf32>
    %cst_42 = arith.constant 1.000000e+00 : f32
    %92 = vector.broadcast %cst_42 : f32 to vector<16x128xf32>
    %93 = arith.addf %92, %91 : vector<16x128xf32>
    %94 = arith.divf %92, %93 : vector<16x128xf32>
    %95 = vector.extract_strided_slice %88 {offsets = [16, 0], sizes = [16, 128], strides = [1, 1]} : vector<64x128xf32> to vector<16x128xf32>
    %96 = arith.negf %95 : vector<16x128xf32>
    %97 = math.exp %96 : vector<16x128xf32>
    %cst_43 = arith.constant 1.000000e+00 : f32
    %98 = vector.broadcast %cst_43 : f32 to vector<16x128xf32>
    %99 = arith.addf %98, %97 : vector<16x128xf32>
    %100 = arith.divf %98, %99 : vector<16x128xf32>
    %101 = vector.extract_strided_slice %88 {offsets = [32, 0], sizes = [16, 128], strides = [1, 1]} : vector<64x128xf32> to vector<16x128xf32>
    %102 = math.tanh %101 : vector<16x128xf32>
    %103 = vector.extract_strided_slice %88 {offsets = [48, 0], sizes = [16, 128], strides = [1, 1]} : vector<64x128xf32> to vector<16x128xf32>
    %104 = arith.negf %103 : vector<16x128xf32>
    %105 = math.exp %104 : vector<16x128xf32>
    %cst_44 = arith.constant 1.000000e+00 : f32
    %106 = vector.broadcast %cst_44 : f32 to vector<16x128xf32>
    %107 = arith.addf %106, %105 : vector<16x128xf32>
    %108 = arith.divf %106, %107 : vector<16x128xf32>
    %109 = arith.mulf %100, %45 : vector<16x128xf32>
    %110 = arith.mulf %94, %102 : vector<16x128xf32>
    %111 = arith.addf %109, %110 : vector<16x128xf32>
    %112 = math.tanh %111 : vector<16x128xf32>
    %113 = arith.mulf %108, %112 : vector<16x128xf32>
    %c0_45 = arith.constant 0 : index
    %c0_46 = arith.constant 0 : index
    %114 = vector.load %arg6[%c0_45, %c0_46] : memref<64x16xf32, #tpu.memory_space<vmem>>, vector<64x16xf32>
    %cst_47 = arith.constant dense<0.000000e+00> : vector<64x128xf32>
    %115 = tpu.matmul %114, %113, %cst_47 {dimension_numbers = #tpu.dot_dimension_numbers<[1], [0], [0], [1], [0, 0, 1, 1], [], []>} : vector<64x16xf32>, vector<16x128xf32>, vector<64x128xf32> -> vector<64x128xf32>
    %c0_48 = arith.constant 0 : index
    %c0_49 = arith.constant 0 : index
    %116 = vector.load %arg7[%c0_48, %c0_49] : memref<64x16xf32, #tpu.memory_space<vmem>>, vector<64x16xf32>
    %cst_50 = arith.constant dense<0.000000e+00> : vector<64x128xf32>
    %117 = tpu.matmul %116, %78, %cst_50 {dimension_numbers = #tpu.dot_dimension_numbers<[1], [0], [0], [1], [0, 0, 1, 1], [], []>} : vector<64x16xf32>, vector<16x128xf32>, vector<64x128xf32> -> vector<64x128xf32>
    %118 = arith.addf %115, %117 : vector<64x128xf32>
    %119 = arith.addf %118, %8 : vector<64x128xf32>
    %120 = vector.extract_strided_slice %119 {offsets = [0, 0], sizes = [16, 128], strides = [1, 1]} : vector<64x128xf32> to vector<16x128xf32>
    %121 = arith.negf %120 : vector<16x128xf32>
    %122 = math.exp %121 : vector<16x128xf32>
    %cst_51 = arith.constant 1.000000e+00 : f32
    %123 = vector.broadcast %cst_51 : f32 to vector<16x128xf32>
    %124 = arith.addf %123, %122 : vector<16x128xf32>
    %125 = arith.divf %123, %124 : vector<16x128xf32>
    %126 = vector.extract_strided_slice %119 {offsets = [16, 0], sizes = [16, 128], strides = [1, 1]} : vector<64x128xf32> to vector<16x128xf32>
    %127 = arith.negf %126 : vector<16x128xf32>
    %128 = math.exp %127 : vector<16x128xf32>
    %cst_52 = arith.constant 1.000000e+00 : f32
    %129 = vector.broadcast %cst_52 : f32 to vector<16x128xf32>
    %130 = arith.addf %129, %128 : vector<16x128xf32>
    %131 = arith.divf %129, %130 : vector<16x128xf32>
    %132 = vector.extract_strided_slice %119 {offsets = [32, 0], sizes = [16, 128], strides = [1, 1]} : vector<64x128xf32> to vector<16x128xf32>
    %133 = math.tanh %132 : vector<16x128xf32>
    %134 = vector.extract_strided_slice %119 {offsets = [48, 0], sizes = [16, 128], strides = [1, 1]} : vector<64x128xf32> to vector<16x128xf32>
    %135 = arith.negf %134 : vector<16x128xf32>
    %136 = math.exp %135 : vector<16x128xf32>
    %cst_53 = arith.constant 1.000000e+00 : f32
    %137 = vector.broadcast %cst_53 : f32 to vector<16x128xf32>
    %138 = arith.addf %137, %136 : vector<16x128xf32>
    %139 = arith.divf %137, %138 : vector<16x128xf32>
    %140 = arith.mulf %131, %76 : vector<16x128xf32>
    %141 = arith.mulf %125, %133 : vector<16x128xf32>
    %142 = arith.addf %140, %141 : vector<16x128xf32>
    %143 = math.tanh %142 : vector<16x128xf32>
    %144 = arith.mulf %139, %143 : vector<16x128xf32>
    %145 = arith.addf %79, %144 : vector<16x128xf32>
    %c2_i32 = arith.constant 2 : i32
    %146 = arith.index_cast %c2_i32 : i32 to index
    %c0_54 = arith.constant 0 : index
    %c0_55 = arith.constant 0 : index
    %147 = vector.load %arg2[%146, %c0_54, %c0_55] : memref<8x8x128xf32, #tpu.memory_space<vmem>>, vector<1x8x128xf32>
    %148 = vector.shape_cast %147 : vector<1x8x128xf32> to vector<8x128xf32>
    %c0_56 = arith.constant 0 : index
    %c0_57 = arith.constant 0 : index
    %149 = vector.load %arg3[%c0_56, %c0_57] : memref<64x8xf32, #tpu.memory_space<vmem>>, vector<64x8xf32>
    %cst_58 = arith.constant dense<0.000000e+00> : vector<64x128xf32>
    %150 = tpu.matmul %149, %148, %cst_58 {dimension_numbers = #tpu.dot_dimension_numbers<[1], [0], [0], [1], [0, 0, 1, 1], [], []>} : vector<64x8xf32>, vector<8x128xf32>, vector<64x128xf32> -> vector<64x128xf32>
    %c0_59 = arith.constant 0 : index
    %c0_60 = arith.constant 0 : index
    %151 = vector.load %arg4[%c0_59, %c0_60] : memref<64x16xf32, #tpu.memory_space<vmem>>, vector<64x16xf32>
    %cst_61 = arith.constant dense<0.000000e+00> : vector<64x128xf32>
    %152 = tpu.matmul %151, %113, %cst_61 {dimension_numbers = #tpu.dot_dimension_numbers<[1], [0], [0], [1], [0, 0, 1, 1], [], []>} : vector<64x16xf32>, vector<16x128xf32>, vector<64x128xf32> -> vector<64x128xf32>
    %153 = arith.addf %150, %152 : vector<64x128xf32>
    %154 = arith.addf %153, %5 : vector<64x128xf32>
    %155 = vector.extract_strided_slice %154 {offsets = [0, 0], sizes = [16, 128], strides = [1, 1]} : vector<64x128xf32> to vector<16x128xf32>
    %156 = arith.negf %155 : vector<16x128xf32>
    %157 = math.exp %156 : vector<16x128xf32>
    %cst_62 = arith.constant 1.000000e+00 : f32
    %158 = vector.broadcast %cst_62 : f32 to vector<16x128xf32>
    %159 = arith.addf %158, %157 : vector<16x128xf32>
    %160 = arith.divf %158, %159 : vector<16x128xf32>
    %161 = vector.extract_strided_slice %154 {offsets = [16, 0], sizes = [16, 128], strides = [1, 1]} : vector<64x128xf32> to vector<16x128xf32>
    %162 = arith.negf %161 : vector<16x128xf32>
    %163 = math.exp %162 : vector<16x128xf32>
    %cst_63 = arith.constant 1.000000e+00 : f32
    %164 = vector.broadcast %cst_63 : f32 to vector<16x128xf32>
    %165 = arith.addf %164, %163 : vector<16x128xf32>
    %166 = arith.divf %164, %165 : vector<16x128xf32>
    %167 = vector.extract_strided_slice %154 {offsets = [32, 0], sizes = [16, 128], strides = [1, 1]} : vector<64x128xf32> to vector<16x128xf32>
    %168 = math.tanh %167 : vector<16x128xf32>
    %169 = vector.extract_strided_slice %154 {offsets = [48, 0], sizes = [16, 128], strides = [1, 1]} : vector<64x128xf32> to vector<16x128xf32>
    %170 = arith.negf %169 : vector<16x128xf32>
    %171 = math.exp %170 : vector<16x128xf32>
    %cst_64 = arith.constant 1.000000e+00 : f32
    %172 = vector.broadcast %cst_64 : f32 to vector<16x128xf32>
    %173 = arith.addf %172, %171 : vector<16x128xf32>
    %174 = arith.divf %172, %173 : vector<16x128xf32>
    %175 = arith.mulf %166, %111 : vector<16x128xf32>
    %176 = arith.mulf %160, %168 : vector<16x128xf32>
    %177 = arith.addf %175, %176 : vector<16x128xf32>
    %178 = math.tanh %177 : vector<16x128xf32>
    %179 = arith.mulf %174, %178 : vector<16x128xf32>
    %c0_65 = arith.constant 0 : index
    %c0_66 = arith.constant 0 : index
    %180 = vector.load %arg6[%c0_65, %c0_66] : memref<64x16xf32, #tpu.memory_space<vmem>>, vector<64x16xf32>
    %cst_67 = arith.constant dense<0.000000e+00> : vector<64x128xf32>
    %181 = tpu.matmul %180, %179, %cst_67 {dimension_numbers = #tpu.dot_dimension_numbers<[1], [0], [0], [1], [0, 0, 1, 1], [], []>} : vector<64x16xf32>, vector<16x128xf32>, vector<64x128xf32> -> vector<64x128xf32>
    %c0_68 = arith.constant 0 : index
    %c0_69 = arith.constant 0 : index
    %182 = vector.load %arg7[%c0_68, %c0_69] : memref<64x16xf32, #tpu.memory_space<vmem>>, vector<64x16xf32>
    %cst_70 = arith.constant dense<0.000000e+00> : vector<64x128xf32>
    %183 = tpu.matmul %182, %144, %cst_70 {dimension_numbers = #tpu.dot_dimension_numbers<[1], [0], [0], [1], [0, 0, 1, 1], [], []>} : vector<64x16xf32>, vector<16x128xf32>, vector<64x128xf32> -> vector<64x128xf32>
    %184 = arith.addf %181, %183 : vector<64x128xf32>
    %185 = arith.addf %184, %8 : vector<64x128xf32>
    %186 = vector.extract_strided_slice %185 {offsets = [0, 0], sizes = [16, 128], strides = [1, 1]} : vector<64x128xf32> to vector<16x128xf32>
    %187 = arith.negf %186 : vector<16x128xf32>
    %188 = math.exp %187 : vector<16x128xf32>
    %cst_71 = arith.constant 1.000000e+00 : f32
    %189 = vector.broadcast %cst_71 : f32 to vector<16x128xf32>
    %190 = arith.addf %189, %188 : vector<16x128xf32>
    %191 = arith.divf %189, %190 : vector<16x128xf32>
    %192 = vector.extract_strided_slice %185 {offsets = [16, 0], sizes = [16, 128], strides = [1, 1]} : vector<64x128xf32> to vector<16x128xf32>
    %193 = arith.negf %192 : vector<16x128xf32>
    %194 = math.exp %193 : vector<16x128xf32>
    %cst_72 = arith.constant 1.000000e+00 : f32
    %195 = vector.broadcast %cst_72 : f32 to vector<16x128xf32>
    %196 = arith.addf %195, %194 : vector<16x128xf32>
    %197 = arith.divf %195, %196 : vector<16x128xf32>
    %198 = vector.extract_strided_slice %185 {offsets = [32, 0], sizes = [16, 128], strides = [1, 1]} : vector<64x128xf32> to vector<16x128xf32>
    %199 = math.tanh %198 : vector<16x128xf32>
    %200 = vector.extract_strided_slice %185 {offsets = [48, 0], sizes = [16, 128], strides = [1, 1]} : vector<64x128xf32> to vector<16x128xf32>
    %201 = arith.negf %200 : vector<16x128xf32>
    %202 = math.exp %201 : vector<16x128xf32>
    %cst_73 = arith.constant 1.000000e+00 : f32
    %203 = vector.broadcast %cst_73 : f32 to vector<16x128xf32>
    %204 = arith.addf %203, %202 : vector<16x128xf32>
    %205 = arith.divf %203, %204 : vector<16x128xf32>
    %206 = arith.mulf %197, %142 : vector<16x128xf32>
    %207 = arith.mulf %191, %199 : vector<16x128xf32>
    %208 = arith.addf %206, %207 : vector<16x128xf32>
    %209 = math.tanh %208 : vector<16x128xf32>
    %210 = arith.mulf %205, %209 : vector<16x128xf32>
    %211 = arith.addf %145, %210 : vector<16x128xf32>
    %c3_i32 = arith.constant 3 : i32
    %212 = arith.index_cast %c3_i32 : i32 to index
    %c0_74 = arith.constant 0 : index
    %c0_75 = arith.constant 0 : index
    %213 = vector.load %arg2[%212, %c0_74, %c0_75] : memref<8x8x128xf32, #tpu.memory_space<vmem>>, vector<1x8x128xf32>
    %214 = vector.shape_cast %213 : vector<1x8x128xf32> to vector<8x128xf32>
    %c0_76 = arith.constant 0 : index
    %c0_77 = arith.constant 0 : index
    %215 = vector.load %arg3[%c0_76, %c0_77] : memref<64x8xf32, #tpu.memory_space<vmem>>, vector<64x8xf32>
    %cst_78 = arith.constant dense<0.000000e+00> : vector<64x128xf32>
    %216 = tpu.matmul %215, %214, %cst_78 {dimension_numbers = #tpu.dot_dimension_numbers<[1], [0], [0], [1], [0, 0, 1, 1], [], []>} : vector<64x8xf32>, vector<8x128xf32>, vector<64x128xf32> -> vector<64x128xf32>
    %c0_79 = arith.constant 0 : index
    %c0_80 = arith.constant 0 : index
    %217 = vector.load %arg4[%c0_79, %c0_80] : memref<64x16xf32, #tpu.memory_space<vmem>>, vector<64x16xf32>
    %cst_81 = arith.constant dense<0.000000e+00> : vector<64x128xf32>
    %218 = tpu.matmul %217, %179, %cst_81 {dimension_numbers = #tpu.dot_dimension_numbers<[1], [0], [0], [1], [0, 0, 1, 1], [], []>} : vector<64x16xf32>, vector<16x128xf32>, vector<64x128xf32> -> vector<64x128xf32>
    %219 = arith.addf %216, %218 : vector<64x128xf32>
    %220 = arith.addf %219, %5 : vector<64x128xf32>
    %221 = vector.extract_strided_slice %220 {offsets = [0, 0], sizes = [16, 128], strides = [1, 1]} : vector<64x128xf32> to vector<16x128xf32>
    %222 = arith.negf %221 : vector<16x128xf32>
    %223 = math.exp %222 : vector<16x128xf32>
    %cst_82 = arith.constant 1.000000e+00 : f32
    %224 = vector.broadcast %cst_82 : f32 to vector<16x128xf32>
    %225 = arith.addf %224, %223 : vector<16x128xf32>
    %226 = arith.divf %224, %225 : vector<16x128xf32>
    %227 = vector.extract_strided_slice %220 {offsets = [16, 0], sizes = [16, 128], strides = [1, 1]} : vector<64x128xf32> to vector<16x128xf32>
    %228 = arith.negf %227 : vector<16x128xf32>
    %229 = math.exp %228 : vector<16x128xf32>
    %cst_83 = arith.constant 1.000000e+00 : f32
    %230 = vector.broadcast %cst_83 : f32 to vector<16x128xf32>
    %231 = arith.addf %230, %229 : vector<16x128xf32>
    %232 = arith.divf %230, %231 : vector<16x128xf32>
    %233 = vector.extract_strided_slice %220 {offsets = [32, 0], sizes = [16, 128], strides = [1, 1]} : vector<64x128xf32> to vector<16x128xf32>
    %234 = math.tanh %233 : vector<16x128xf32>
    %235 = vector.extract_strided_slice %220 {offsets = [48, 0], sizes = [16, 128], strides = [1, 1]} : vector<64x128xf32> to vector<16x128xf32>
    %236 = arith.negf %235 : vector<16x128xf32>
    %237 = math.exp %236 : vector<16x128xf32>
    %cst_84 = arith.constant 1.000000e+00 : f32
    %238 = vector.broadcast %cst_84 : f32 to vector<16x128xf32>
    %239 = arith.addf %238, %237 : vector<16x128xf32>
    %240 = arith.divf %238, %239 : vector<16x128xf32>
    %241 = arith.mulf %232, %177 : vector<16x128xf32>
    %242 = arith.mulf %226, %234 : vector<16x128xf32>
    %243 = arith.addf %241, %242 : vector<16x128xf32>
    %244 = math.tanh %243 : vector<16x128xf32>
    %245 = arith.mulf %240, %244 : vector<16x128xf32>
    %c0_85 = arith.constant 0 : index
    %c0_86 = arith.constant 0 : index
    %246 = vector.load %arg6[%c0_85, %c0_86] : memref<64x16xf32, #tpu.memory_space<vmem>>, vector<64x16xf32>
    %cst_87 = arith.constant dense<0.000000e+00> : vector<64x128xf32>
    %247 = tpu.matmul %246, %245, %cst_87 {dimension_numbers = #tpu.dot_dimension_numbers<[1], [0], [0], [1], [0, 0, 1, 1], [], []>} : vector<64x16xf32>, vector<16x128xf32>, vector<64x128xf32> -> vector<64x128xf32>
    %c0_88 = arith.constant 0 : index
    %c0_89 = arith.constant 0 : index
    %248 = vector.load %arg7[%c0_88, %c0_89] : memref<64x16xf32, #tpu.memory_space<vmem>>, vector<64x16xf32>
    %cst_90 = arith.constant dense<0.000000e+00> : vector<64x128xf32>
    %249 = tpu.matmul %248, %210, %cst_90 {dimension_numbers = #tpu.dot_dimension_numbers<[1], [0], [0], [1], [0, 0, 1, 1], [], []>} : vector<64x16xf32>, vector<16x128xf32>, vector<64x128xf32> -> vector<64x128xf32>
    %250 = arith.addf %247, %249 : vector<64x128xf32>
    %251 = arith.addf %250, %8 : vector<64x128xf32>
    %252 = vector.extract_strided_slice %251 {offsets = [0, 0], sizes = [16, 128], strides = [1, 1]} : vector<64x128xf32> to vector<16x128xf32>
    %253 = arith.negf %252 : vector<16x128xf32>
    %254 = math.exp %253 : vector<16x128xf32>
    %cst_91 = arith.constant 1.000000e+00 : f32
    %255 = vector.broadcast %cst_91 : f32 to vector<16x128xf32>
    %256 = arith.addf %255, %254 : vector<16x128xf32>
    %257 = arith.divf %255, %256 : vector<16x128xf32>
    %258 = vector.extract_strided_slice %251 {offsets = [16, 0], sizes = [16, 128], strides = [1, 1]} : vector<64x128xf32> to vector<16x128xf32>
    %259 = arith.negf %258 : vector<16x128xf32>
    %260 = math.exp %259 : vector<16x128xf32>
    %cst_92 = arith.constant 1.000000e+00 : f32
    %261 = vector.broadcast %cst_92 : f32 to vector<16x128xf32>
    %262 = arith.addf %261, %260 : vector<16x128xf32>
    %263 = arith.divf %261, %262 : vector<16x128xf32>
    %264 = vector.extract_strided_slice %251 {offsets = [32, 0], sizes = [16, 128], strides = [1, 1]} : vector<64x128xf32> to vector<16x128xf32>
    %265 = math.tanh %264 : vector<16x128xf32>
    %266 = vector.extract_strided_slice %251 {offsets = [48, 0], sizes = [16, 128], strides = [1, 1]} : vector<64x128xf32> to vector<16x128xf32>
    %267 = arith.negf %266 : vector<16x128xf32>
    %268 = math.exp %267 : vector<16x128xf32>
    %cst_93 = arith.constant 1.000000e+00 : f32
    %269 = vector.broadcast %cst_93 : f32 to vector<16x128xf32>
    %270 = arith.addf %269, %268 : vector<16x128xf32>
    %271 = arith.divf %269, %270 : vector<16x128xf32>
    %272 = arith.mulf %263, %208 : vector<16x128xf32>
    %273 = arith.mulf %257, %265 : vector<16x128xf32>
    %274 = arith.addf %272, %273 : vector<16x128xf32>
    %275 = math.tanh %274 : vector<16x128xf32>
    %276 = arith.mulf %271, %275 : vector<16x128xf32>
    %277 = arith.addf %211, %276 : vector<16x128xf32>
    %c4_i32 = arith.constant 4 : i32
    %278 = arith.index_cast %c4_i32 : i32 to index
    %c0_94 = arith.constant 0 : index
    %c0_95 = arith.constant 0 : index
    %279 = vector.load %arg2[%278, %c0_94, %c0_95] : memref<8x8x128xf32, #tpu.memory_space<vmem>>, vector<1x8x128xf32>
    %280 = vector.shape_cast %279 : vector<1x8x128xf32> to vector<8x128xf32>
    %c0_96 = arith.constant 0 : index
    %c0_97 = arith.constant 0 : index
    %281 = vector.load %arg3[%c0_96, %c0_97] : memref<64x8xf32, #tpu.memory_space<vmem>>, vector<64x8xf32>
    %cst_98 = arith.constant dense<0.000000e+00> : vector<64x128xf32>
    %282 = tpu.matmul %281, %280, %cst_98 {dimension_numbers = #tpu.dot_dimension_numbers<[1], [0], [0], [1], [0, 0, 1, 1], [], []>} : vector<64x8xf32>, vector<8x128xf32>, vector<64x128xf32> -> vector<64x128xf32>
    %c0_99 = arith.constant 0 : index
    %c0_100 = arith.constant 0 : index
    %283 = vector.load %arg4[%c0_99, %c0_100] : memref<64x16xf32, #tpu.memory_space<vmem>>, vector<64x16xf32>
    %cst_101 = arith.constant dense<0.000000e+00> : vector<64x128xf32>
    %284 = tpu.matmul %283, %245, %cst_101 {dimension_numbers = #tpu.dot_dimension_numbers<[1], [0], [0], [1], [0, 0, 1, 1], [], []>} : vector<64x16xf32>, vector<16x128xf32>, vector<64x128xf32> -> vector<64x128xf32>
    %285 = arith.addf %282, %284 : vector<64x128xf32>
    %286 = arith.addf %285, %5 : vector<64x128xf32>
    %287 = vector.extract_strided_slice %286 {offsets = [0, 0], sizes = [16, 128], strides = [1, 1]} : vector<64x128xf32> to vector<16x128xf32>
    %288 = arith.negf %287 : vector<16x128xf32>
    %289 = math.exp %288 : vector<16x128xf32>
    %cst_102 = arith.constant 1.000000e+00 : f32
    %290 = vector.broadcast %cst_102 : f32 to vector<16x128xf32>
    %291 = arith.addf %290, %289 : vector<16x128xf32>
    %292 = arith.divf %290, %291 : vector<16x128xf32>
    %293 = vector.extract_strided_slice %286 {offsets = [16, 0], sizes = [16, 128], strides = [1, 1]} : vector<64x128xf32> to vector<16x128xf32>
    %294 = arith.negf %293 : vector<16x128xf32>
    %295 = math.exp %294 : vector<16x128xf32>
    %cst_103 = arith.constant 1.000000e+00 : f32
    %296 = vector.broadcast %cst_103 : f32 to vector<16x128xf32>
    %297 = arith.addf %296, %295 : vector<16x128xf32>
    %298 = arith.divf %296, %297 : vector<16x128xf32>
    %299 = vector.extract_strided_slice %286 {offsets = [32, 0], sizes = [16, 128], strides = [1, 1]} : vector<64x128xf32> to vector<16x128xf32>
    %300 = math.tanh %299 : vector<16x128xf32>
    %301 = vector.extract_strided_slice %286 {offsets = [48, 0], sizes = [16, 128], strides = [1, 1]} : vector<64x128xf32> to vector<16x128xf32>
    %302 = arith.negf %301 : vector<16x128xf32>
    %303 = math.exp %302 : vector<16x128xf32>
    %cst_104 = arith.constant 1.000000e+00 : f32
    %304 = vector.broadcast %cst_104 : f32 to vector<16x128xf32>
    %305 = arith.addf %304, %303 : vector<16x128xf32>
    %306 = arith.divf %304, %305 : vector<16x128xf32>
    %307 = arith.mulf %298, %243 : vector<16x128xf32>
    %308 = arith.mulf %292, %300 : vector<16x128xf32>
    %309 = arith.addf %307, %308 : vector<16x128xf32>
    %310 = math.tanh %309 : vector<16x128xf32>
    %311 = arith.mulf %306, %310 : vector<16x128xf32>
    %c0_105 = arith.constant 0 : index
    %c0_106 = arith.constant 0 : index
    %312 = vector.load %arg6[%c0_105, %c0_106] : memref<64x16xf32, #tpu.memory_space<vmem>>, vector<64x16xf32>
    %cst_107 = arith.constant dense<0.000000e+00> : vector<64x128xf32>
    %313 = tpu.matmul %312, %311, %cst_107 {dimension_numbers = #tpu.dot_dimension_numbers<[1], [0], [0], [1], [0, 0, 1, 1], [], []>} : vector<64x16xf32>, vector<16x128xf32>, vector<64x128xf32> -> vector<64x128xf32>
    %c0_108 = arith.constant 0 : index
    %c0_109 = arith.constant 0 : index
    %314 = vector.load %arg7[%c0_108, %c0_109] : memref<64x16xf32, #tpu.memory_space<vmem>>, vector<64x16xf32>
    %cst_110 = arith.constant dense<0.000000e+00> : vector<64x128xf32>
    %315 = tpu.matmul %314, %276, %cst_110 {dimension_numbers = #tpu.dot_dimension_numbers<[1], [0], [0], [1], [0, 0, 1, 1], [], []>} : vector<64x16xf32>, vector<16x128xf32>, vector<64x128xf32> -> vector<64x128xf32>
    %316 = arith.addf %313, %315 : vector<64x128xf32>
    %317 = arith.addf %316, %8 : vector<64x128xf32>
    %318 = vector.extract_strided_slice %317 {offsets = [0, 0], sizes = [16, 128], strides = [1, 1]} : vector<64x128xf32> to vector<16x128xf32>
    %319 = arith.negf %318 : vector<16x128xf32>
    %320 = math.exp %319 : vector<16x128xf32>
    %cst_111 = arith.constant 1.000000e+00 : f32
    %321 = vector.broadcast %cst_111 : f32 to vector<16x128xf32>
    %322 = arith.addf %321, %320 : vector<16x128xf32>
    %323 = arith.divf %321, %322 : vector<16x128xf32>
    %324 = vector.extract_strided_slice %317 {offsets = [16, 0], sizes = [16, 128], strides = [1, 1]} : vector<64x128xf32> to vector<16x128xf32>
    %325 = arith.negf %324 : vector<16x128xf32>
    %326 = math.exp %325 : vector<16x128xf32>
    %cst_112 = arith.constant 1.000000e+00 : f32
    %327 = vector.broadcast %cst_112 : f32 to vector<16x128xf32>
    %328 = arith.addf %327, %326 : vector<16x128xf32>
    %329 = arith.divf %327, %328 : vector<16x128xf32>
    %330 = vector.extract_strided_slice %317 {offsets = [32, 0], sizes = [16, 128], strides = [1, 1]} : vector<64x128xf32> to vector<16x128xf32>
    %331 = math.tanh %330 : vector<16x128xf32>
    %332 = vector.extract_strided_slice %317 {offsets = [48, 0], sizes = [16, 128], strides = [1, 1]} : vector<64x128xf32> to vector<16x128xf32>
    %333 = arith.negf %332 : vector<16x128xf32>
    %334 = math.exp %333 : vector<16x128xf32>
    %cst_113 = arith.constant 1.000000e+00 : f32
    %335 = vector.broadcast %cst_113 : f32 to vector<16x128xf32>
    %336 = arith.addf %335, %334 : vector<16x128xf32>
    %337 = arith.divf %335, %336 : vector<16x128xf32>
    %338 = arith.mulf %329, %274 : vector<16x128xf32>
    %339 = arith.mulf %323, %331 : vector<16x128xf32>
    %340 = arith.addf %338, %339 : vector<16x128xf32>
    %341 = math.tanh %340 : vector<16x128xf32>
    %342 = arith.mulf %337, %341 : vector<16x128xf32>
    %343 = arith.addf %277, %342 : vector<16x128xf32>
    %c5_i32 = arith.constant 5 : i32
    %344 = arith.index_cast %c5_i32 : i32 to index
    %c0_114 = arith.constant 0 : index
    %c0_115 = arith.constant 0 : index
    %345 = vector.load %arg2[%344, %c0_114, %c0_115] : memref<8x8x128xf32, #tpu.memory_space<vmem>>, vector<1x8x128xf32>
    %346 = vector.shape_cast %345 : vector<1x8x128xf32> to vector<8x128xf32>
    %c0_116 = arith.constant 0 : index
    %c0_117 = arith.constant 0 : index
    %347 = vector.load %arg3[%c0_116, %c0_117] : memref<64x8xf32, #tpu.memory_space<vmem>>, vector<64x8xf32>
    %cst_118 = arith.constant dense<0.000000e+00> : vector<64x128xf32>
    %348 = tpu.matmul %347, %346, %cst_118 {dimension_numbers = #tpu.dot_dimension_numbers<[1], [0], [0], [1], [0, 0, 1, 1], [], []>} : vector<64x8xf32>, vector<8x128xf32>, vector<64x128xf32> -> vector<64x128xf32>
    %c0_119 = arith.constant 0 : index
    %c0_120 = arith.constant 0 : index
    %349 = vector.load %arg4[%c0_119, %c0_120] : memref<64x16xf32, #tpu.memory_space<vmem>>, vector<64x16xf32>
    %cst_121 = arith.constant dense<0.000000e+00> : vector<64x128xf32>
    %350 = tpu.matmul %349, %311, %cst_121 {dimension_numbers = #tpu.dot_dimension_numbers<[1], [0], [0], [1], [0, 0, 1, 1], [], []>} : vector<64x16xf32>, vector<16x128xf32>, vector<64x128xf32> -> vector<64x128xf32>
    %351 = arith.addf %348, %350 : vector<64x128xf32>
    %352 = arith.addf %351, %5 : vector<64x128xf32>
    %353 = vector.extract_strided_slice %352 {offsets = [0, 0], sizes = [16, 128], strides = [1, 1]} : vector<64x128xf32> to vector<16x128xf32>
    %354 = arith.negf %353 : vector<16x128xf32>
    %355 = math.exp %354 : vector<16x128xf32>
    %cst_122 = arith.constant 1.000000e+00 : f32
    %356 = vector.broadcast %cst_122 : f32 to vector<16x128xf32>
    %357 = arith.addf %356, %355 : vector<16x128xf32>
    %358 = arith.divf %356, %357 : vector<16x128xf32>
    %359 = vector.extract_strided_slice %352 {offsets = [16, 0], sizes = [16, 128], strides = [1, 1]} : vector<64x128xf32> to vector<16x128xf32>
    %360 = arith.negf %359 : vector<16x128xf32>
    %361 = math.exp %360 : vector<16x128xf32>
    %cst_123 = arith.constant 1.000000e+00 : f32
    %362 = vector.broadcast %cst_123 : f32 to vector<16x128xf32>
    %363 = arith.addf %362, %361 : vector<16x128xf32>
    %364 = arith.divf %362, %363 : vector<16x128xf32>
    %365 = vector.extract_strided_slice %352 {offsets = [32, 0], sizes = [16, 128], strides = [1, 1]} : vector<64x128xf32> to vector<16x128xf32>
    %366 = math.tanh %365 : vector<16x128xf32>
    %367 = vector.extract_strided_slice %352 {offsets = [48, 0], sizes = [16, 128], strides = [1, 1]} : vector<64x128xf32> to vector<16x128xf32>
    %368 = arith.negf %367 : vector<16x128xf32>
    %369 = math.exp %368 : vector<16x128xf32>
    %cst_124 = arith.constant 1.000000e+00 : f32
    %370 = vector.broadcast %cst_124 : f32 to vector<16x128xf32>
    %371 = arith.addf %370, %369 : vector<16x128xf32>
    %372 = arith.divf %370, %371 : vector<16x128xf32>
    %373 = arith.mulf %364, %309 : vector<16x128xf32>
    %374 = arith.mulf %358, %366 : vector<16x128xf32>
    %375 = arith.addf %373, %374 : vector<16x128xf32>
    %376 = math.tanh %375 : vector<16x128xf32>
    %377 = arith.mulf %372, %376 : vector<16x128xf32>
    %c0_125 = arith.constant 0 : index
    %c0_126 = arith.constant 0 : index
    %378 = vector.load %arg6[%c0_125, %c0_126] : memref<64x16xf32, #tpu.memory_space<vmem>>, vector<64x16xf32>
    %cst_127 = arith.constant dense<0.000000e+00> : vector<64x128xf32>
    %379 = tpu.matmul %378, %377, %cst_127 {dimension_numbers = #tpu.dot_dimension_numbers<[1], [0], [0], [1], [0, 0, 1, 1], [], []>} : vector<64x16xf32>, vector<16x128xf32>, vector<64x128xf32> -> vector<64x128xf32>
    %c0_128 = arith.constant 0 : index
    %c0_129 = arith.constant 0 : index
    %380 = vector.load %arg7[%c0_128, %c0_129] : memref<64x16xf32, #tpu.memory_space<vmem>>, vector<64x16xf32>
    %cst_130 = arith.constant dense<0.000000e+00> : vector<64x128xf32>
    %381 = tpu.matmul %380, %342, %cst_130 {dimension_numbers = #tpu.dot_dimension_numbers<[1], [0], [0], [1], [0, 0, 1, 1], [], []>} : vector<64x16xf32>, vector<16x128xf32>, vector<64x128xf32> -> vector<64x128xf32>
    %382 = arith.addf %379, %381 : vector<64x128xf32>
    %383 = arith.addf %382, %8 : vector<64x128xf32>
    %384 = vector.extract_strided_slice %383 {offsets = [0, 0], sizes = [16, 128], strides = [1, 1]} : vector<64x128xf32> to vector<16x128xf32>
    %385 = arith.negf %384 : vector<16x128xf32>
    %386 = math.exp %385 : vector<16x128xf32>
    %cst_131 = arith.constant 1.000000e+00 : f32
    %387 = vector.broadcast %cst_131 : f32 to vector<16x128xf32>
    %388 = arith.addf %387, %386 : vector<16x128xf32>
    %389 = arith.divf %387, %388 : vector<16x128xf32>
    %390 = vector.extract_strided_slice %383 {offsets = [16, 0], sizes = [16, 128], strides = [1, 1]} : vector<64x128xf32> to vector<16x128xf32>
    %391 = arith.negf %390 : vector<16x128xf32>
    %392 = math.exp %391 : vector<16x128xf32>
    %cst_132 = arith.constant 1.000000e+00 : f32
    %393 = vector.broadcast %cst_132 : f32 to vector<16x128xf32>
    %394 = arith.addf %393, %392 : vector<16x128xf32>
    %395 = arith.divf %393, %394 : vector<16x128xf32>
    %396 = vector.extract_strided_slice %383 {offsets = [32, 0], sizes = [16, 128], strides = [1, 1]} : vector<64x128xf32> to vector<16x128xf32>
    %397 = math.tanh %396 : vector<16x128xf32>
    %398 = vector.extract_strided_slice %383 {offsets = [48, 0], sizes = [16, 128], strides = [1, 1]} : vector<64x128xf32> to vector<16x128xf32>
    %399 = arith.negf %398 : vector<16x128xf32>
    %400 = math.exp %399 : vector<16x128xf32>
    %cst_133 = arith.constant 1.000000e+00 : f32
    %401 = vector.broadcast %cst_133 : f32 to vector<16x128xf32>
    %402 = arith.addf %401, %400 : vector<16x128xf32>
    %403 = arith.divf %401, %402 : vector<16x128xf32>
    %404 = arith.mulf %395, %340 : vector<16x128xf32>
    %405 = arith.mulf %389, %397 : vector<16x128xf32>
    %406 = arith.addf %404, %405 : vector<16x128xf32>
    %407 = math.tanh %406 : vector<16x128xf32>
    %408 = arith.mulf %403, %407 : vector<16x128xf32>
    %409 = arith.addf %343, %408 : vector<16x128xf32>
    %c6_i32 = arith.constant 6 : i32
    %410 = arith.index_cast %c6_i32 : i32 to index
    %c0_134 = arith.constant 0 : index
    %c0_135 = arith.constant 0 : index
    %411 = vector.load %arg2[%410, %c0_134, %c0_135] : memref<8x8x128xf32, #tpu.memory_space<vmem>>, vector<1x8x128xf32>
    %412 = vector.shape_cast %411 : vector<1x8x128xf32> to vector<8x128xf32>
    %c0_136 = arith.constant 0 : index
    %c0_137 = arith.constant 0 : index
    %413 = vector.load %arg3[%c0_136, %c0_137] : memref<64x8xf32, #tpu.memory_space<vmem>>, vector<64x8xf32>
    %cst_138 = arith.constant dense<0.000000e+00> : vector<64x128xf32>
    %414 = tpu.matmul %413, %412, %cst_138 {dimension_numbers = #tpu.dot_dimension_numbers<[1], [0], [0], [1], [0, 0, 1, 1], [], []>} : vector<64x8xf32>, vector<8x128xf32>, vector<64x128xf32> -> vector<64x128xf32>
    %c0_139 = arith.constant 0 : index
    %c0_140 = arith.constant 0 : index
    %415 = vector.load %arg4[%c0_139, %c0_140] : memref<64x16xf32, #tpu.memory_space<vmem>>, vector<64x16xf32>
    %cst_141 = arith.constant dense<0.000000e+00> : vector<64x128xf32>
    %416 = tpu.matmul %415, %377, %cst_141 {dimension_numbers = #tpu.dot_dimension_numbers<[1], [0], [0], [1], [0, 0, 1, 1], [], []>} : vector<64x16xf32>, vector<16x128xf32>, vector<64x128xf32> -> vector<64x128xf32>
    %417 = arith.addf %414, %416 : vector<64x128xf32>
    %418 = arith.addf %417, %5 : vector<64x128xf32>
    %419 = vector.extract_strided_slice %418 {offsets = [0, 0], sizes = [16, 128], strides = [1, 1]} : vector<64x128xf32> to vector<16x128xf32>
    %420 = arith.negf %419 : vector<16x128xf32>
    %421 = math.exp %420 : vector<16x128xf32>
    %cst_142 = arith.constant 1.000000e+00 : f32
    %422 = vector.broadcast %cst_142 : f32 to vector<16x128xf32>
    %423 = arith.addf %422, %421 : vector<16x128xf32>
    %424 = arith.divf %422, %423 : vector<16x128xf32>
    %425 = vector.extract_strided_slice %418 {offsets = [16, 0], sizes = [16, 128], strides = [1, 1]} : vector<64x128xf32> to vector<16x128xf32>
    %426 = arith.negf %425 : vector<16x128xf32>
    %427 = math.exp %426 : vector<16x128xf32>
    %cst_143 = arith.constant 1.000000e+00 : f32
    %428 = vector.broadcast %cst_143 : f32 to vector<16x128xf32>
    %429 = arith.addf %428, %427 : vector<16x128xf32>
    %430 = arith.divf %428, %429 : vector<16x128xf32>
    %431 = vector.extract_strided_slice %418 {offsets = [32, 0], sizes = [16, 128], strides = [1, 1]} : vector<64x128xf32> to vector<16x128xf32>
    %432 = math.tanh %431 : vector<16x128xf32>
    %433 = vector.extract_strided_slice %418 {offsets = [48, 0], sizes = [16, 128], strides = [1, 1]} : vector<64x128xf32> to vector<16x128xf32>
    %434 = arith.negf %433 : vector<16x128xf32>
    %435 = math.exp %434 : vector<16x128xf32>
    %cst_144 = arith.constant 1.000000e+00 : f32
    %436 = vector.broadcast %cst_144 : f32 to vector<16x128xf32>
    %437 = arith.addf %436, %435 : vector<16x128xf32>
    %438 = arith.divf %436, %437 : vector<16x128xf32>
    %439 = arith.mulf %430, %375 : vector<16x128xf32>
    %440 = arith.mulf %424, %432 : vector<16x128xf32>
    %441 = arith.addf %439, %440 : vector<16x128xf32>
    %442 = math.tanh %441 : vector<16x128xf32>
    %443 = arith.mulf %438, %442 : vector<16x128xf32>
    %c0_145 = arith.constant 0 : index
    %c0_146 = arith.constant 0 : index
    %444 = vector.load %arg6[%c0_145, %c0_146] : memref<64x16xf32, #tpu.memory_space<vmem>>, vector<64x16xf32>
    %cst_147 = arith.constant dense<0.000000e+00> : vector<64x128xf32>
    %445 = tpu.matmul %444, %443, %cst_147 {dimension_numbers = #tpu.dot_dimension_numbers<[1], [0], [0], [1], [0, 0, 1, 1], [], []>} : vector<64x16xf32>, vector<16x128xf32>, vector<64x128xf32> -> vector<64x128xf32>
    %c0_148 = arith.constant 0 : index
    %c0_149 = arith.constant 0 : index
    %446 = vector.load %arg7[%c0_148, %c0_149] : memref<64x16xf32, #tpu.memory_space<vmem>>, vector<64x16xf32>
    %cst_150 = arith.constant dense<0.000000e+00> : vector<64x128xf32>
    %447 = tpu.matmul %446, %408, %cst_150 {dimension_numbers = #tpu.dot_dimension_numbers<[1], [0], [0], [1], [0, 0, 1, 1], [], []>} : vector<64x16xf32>, vector<16x128xf32>, vector<64x128xf32> -> vector<64x128xf32>
    %448 = arith.addf %445, %447 : vector<64x128xf32>
    %449 = arith.addf %448, %8 : vector<64x128xf32>
    %450 = vector.extract_strided_slice %449 {offsets = [0, 0], sizes = [16, 128], strides = [1, 1]} : vector<64x128xf32> to vector<16x128xf32>
    %451 = arith.negf %450 : vector<16x128xf32>
    %452 = math.exp %451 : vector<16x128xf32>
    %cst_151 = arith.constant 1.000000e+00 : f32
    %453 = vector.broadcast %cst_151 : f32 to vector<16x128xf32>
    %454 = arith.addf %453, %452 : vector<16x128xf32>
    %455 = arith.divf %453, %454 : vector<16x128xf32>
    %456 = vector.extract_strided_slice %449 {offsets = [16, 0], sizes = [16, 128], strides = [1, 1]} : vector<64x128xf32> to vector<16x128xf32>
    %457 = arith.negf %456 : vector<16x128xf32>
    %458 = math.exp %457 : vector<16x128xf32>
    %cst_152 = arith.constant 1.000000e+00 : f32
    %459 = vector.broadcast %cst_152 : f32 to vector<16x128xf32>
    %460 = arith.addf %459, %458 : vector<16x128xf32>
    %461 = arith.divf %459, %460 : vector<16x128xf32>
    %462 = vector.extract_strided_slice %449 {offsets = [32, 0], sizes = [16, 128], strides = [1, 1]} : vector<64x128xf32> to vector<16x128xf32>
    %463 = math.tanh %462 : vector<16x128xf32>
    %464 = vector.extract_strided_slice %449 {offsets = [48, 0], sizes = [16, 128], strides = [1, 1]} : vector<64x128xf32> to vector<16x128xf32>
    %465 = arith.negf %464 : vector<16x128xf32>
    %466 = math.exp %465 : vector<16x128xf32>
    %cst_153 = arith.constant 1.000000e+00 : f32
    %467 = vector.broadcast %cst_153 : f32 to vector<16x128xf32>
    %468 = arith.addf %467, %466 : vector<16x128xf32>
    %469 = arith.divf %467, %468 : vector<16x128xf32>
    %470 = arith.mulf %461, %406 : vector<16x128xf32>
    %471 = arith.mulf %455, %463 : vector<16x128xf32>
    %472 = arith.addf %470, %471 : vector<16x128xf32>
    %473 = math.tanh %472 : vector<16x128xf32>
    %474 = arith.mulf %469, %473 : vector<16x128xf32>
    %475 = arith.addf %409, %474 : vector<16x128xf32>
    %c7_i32 = arith.constant 7 : i32
    %476 = arith.index_cast %c7_i32 : i32 to index
    %c0_154 = arith.constant 0 : index
    %c0_155 = arith.constant 0 : index
    %477 = vector.load %arg2[%476, %c0_154, %c0_155] : memref<8x8x128xf32, #tpu.memory_space<vmem>>, vector<1x8x128xf32>
    %478 = vector.shape_cast %477 : vector<1x8x128xf32> to vector<8x128xf32>
    %c0_156 = arith.constant 0 : index
    %c0_157 = arith.constant 0 : index
    %479 = vector.load %arg3[%c0_156, %c0_157] : memref<64x8xf32, #tpu.memory_space<vmem>>, vector<64x8xf32>
    %cst_158 = arith.constant dense<0.000000e+00> : vector<64x128xf32>
    %480 = tpu.matmul %479, %478, %cst_158 {dimension_numbers = #tpu.dot_dimension_numbers<[1], [0], [0], [1], [0, 0, 1, 1], [], []>} : vector<64x8xf32>, vector<8x128xf32>, vector<64x128xf32> -> vector<64x128xf32>
    %c0_159 = arith.constant 0 : index
    %c0_160 = arith.constant 0 : index
    %481 = vector.load %arg4[%c0_159, %c0_160] : memref<64x16xf32, #tpu.memory_space<vmem>>, vector<64x16xf32>
    %cst_161 = arith.constant dense<0.000000e+00> : vector<64x128xf32>
    %482 = tpu.matmul %481, %443, %cst_161 {dimension_numbers = #tpu.dot_dimension_numbers<[1], [0], [0], [1], [0, 0, 1, 1], [], []>} : vector<64x16xf32>, vector<16x128xf32>, vector<64x128xf32> -> vector<64x128xf32>
    %483 = arith.addf %480, %482 : vector<64x128xf32>
    %484 = arith.addf %483, %5 : vector<64x128xf32>
    %485 = vector.extract_strided_slice %484 {offsets = [0, 0], sizes = [16, 128], strides = [1, 1]} : vector<64x128xf32> to vector<16x128xf32>
    %486 = arith.negf %485 : vector<16x128xf32>
    %487 = math.exp %486 : vector<16x128xf32>
    %cst_162 = arith.constant 1.000000e+00 : f32
    %488 = vector.broadcast %cst_162 : f32 to vector<16x128xf32>
    %489 = arith.addf %488, %487 : vector<16x128xf32>
    %490 = arith.divf %488, %489 : vector<16x128xf32>
    %491 = vector.extract_strided_slice %484 {offsets = [16, 0], sizes = [16, 128], strides = [1, 1]} : vector<64x128xf32> to vector<16x128xf32>
    %492 = arith.negf %491 : vector<16x128xf32>
    %493 = math.exp %492 : vector<16x128xf32>
    %cst_163 = arith.constant 1.000000e+00 : f32
    %494 = vector.broadcast %cst_163 : f32 to vector<16x128xf32>
    %495 = arith.addf %494, %493 : vector<16x128xf32>
    %496 = arith.divf %494, %495 : vector<16x128xf32>
    %497 = vector.extract_strided_slice %484 {offsets = [32, 0], sizes = [16, 128], strides = [1, 1]} : vector<64x128xf32> to vector<16x128xf32>
    %498 = math.tanh %497 : vector<16x128xf32>
    %499 = vector.extract_strided_slice %484 {offsets = [48, 0], sizes = [16, 128], strides = [1, 1]} : vector<64x128xf32> to vector<16x128xf32>
    %500 = arith.negf %499 : vector<16x128xf32>
    %501 = math.exp %500 : vector<16x128xf32>
    %cst_164 = arith.constant 1.000000e+00 : f32
    %502 = vector.broadcast %cst_164 : f32 to vector<16x128xf32>
    %503 = arith.addf %502, %501 : vector<16x128xf32>
    %504 = arith.divf %502, %503 : vector<16x128xf32>
    %505 = arith.mulf %496, %441 : vector<16x128xf32>
    %506 = arith.mulf %490, %498 : vector<16x128xf32>
    %507 = arith.addf %505, %506 : vector<16x128xf32>
    %508 = math.tanh %507 : vector<16x128xf32>
    %509 = arith.mulf %504, %508 : vector<16x128xf32>
    %c0_165 = arith.constant 0 : index
    %c0_166 = arith.constant 0 : index
    %510 = vector.load %arg6[%c0_165, %c0_166] : memref<64x16xf32, #tpu.memory_space<vmem>>, vector<64x16xf32>
    %cst_167 = arith.constant dense<0.000000e+00> : vector<64x128xf32>
    %511 = tpu.matmul %510, %509, %cst_167 {dimension_numbers = #tpu.dot_dimension_numbers<[1], [0], [0], [1], [0, 0, 1, 1], [], []>} : vector<64x16xf32>, vector<16x128xf32>, vector<64x128xf32> -> vector<64x128xf32>
    %c0_168 = arith.constant 0 : index
    %c0_169 = arith.constant 0 : index
    %512 = vector.load %arg7[%c0_168, %c0_169] : memref<64x16xf32, #tpu.memory_space<vmem>>, vector<64x16xf32>
    %cst_170 = arith.constant dense<0.000000e+00> : vector<64x128xf32>
    %513 = tpu.matmul %512, %474, %cst_170 {dimension_numbers = #tpu.dot_dimension_numbers<[1], [0], [0], [1], [0, 0, 1, 1], [], []>} : vector<64x16xf32>, vector<16x128xf32>, vector<64x128xf32> -> vector<64x128xf32>
    %514 = arith.addf %511, %513 : vector<64x128xf32>
    %515 = arith.addf %514, %8 : vector<64x128xf32>
    %516 = vector.extract_strided_slice %515 {offsets = [0, 0], sizes = [16, 128], strides = [1, 1]} : vector<64x128xf32> to vector<16x128xf32>
    %517 = arith.negf %516 : vector<16x128xf32>
    %518 = math.exp %517 : vector<16x128xf32>
    %cst_171 = arith.constant 1.000000e+00 : f32
    %519 = vector.broadcast %cst_171 : f32 to vector<16x128xf32>
    %520 = arith.addf %519, %518 : vector<16x128xf32>
    %521 = arith.divf %519, %520 : vector<16x128xf32>
    %522 = vector.extract_strided_slice %515 {offsets = [16, 0], sizes = [16, 128], strides = [1, 1]} : vector<64x128xf32> to vector<16x128xf32>
    %523 = arith.negf %522 : vector<16x128xf32>
    %524 = math.exp %523 : vector<16x128xf32>
    %cst_172 = arith.constant 1.000000e+00 : f32
    %525 = vector.broadcast %cst_172 : f32 to vector<16x128xf32>
    %526 = arith.addf %525, %524 : vector<16x128xf32>
    %527 = arith.divf %525, %526 : vector<16x128xf32>
    %528 = vector.extract_strided_slice %515 {offsets = [32, 0], sizes = [16, 128], strides = [1, 1]} : vector<64x128xf32> to vector<16x128xf32>
    %529 = math.tanh %528 : vector<16x128xf32>
    %530 = vector.extract_strided_slice %515 {offsets = [48, 0], sizes = [16, 128], strides = [1, 1]} : vector<64x128xf32> to vector<16x128xf32>
    %531 = arith.negf %530 : vector<16x128xf32>
    %532 = math.exp %531 : vector<16x128xf32>
    %cst_173 = arith.constant 1.000000e+00 : f32
    %533 = vector.broadcast %cst_173 : f32 to vector<16x128xf32>
    %534 = arith.addf %533, %532 : vector<16x128xf32>
    %535 = arith.divf %533, %534 : vector<16x128xf32>
    %536 = arith.mulf %527, %472 : vector<16x128xf32>
    %537 = arith.mulf %521, %529 : vector<16x128xf32>
    %538 = arith.addf %536, %537 : vector<16x128xf32>
    %539 = math.tanh %538 : vector<16x128xf32>
    %540 = arith.mulf %535, %539 : vector<16x128xf32>
    %541 = arith.addf %475, %540 : vector<16x128xf32>
    %c8_i32 = arith.constant 8 : i32
    %c0_174 = arith.constant 0 : index
    %c0_175 = arith.constant 0 : index
    %542 = vector.load %arg12[%c0_174, %c0_175] : memref<16x128xf32, #tpu.memory_space<vmem>>, vector<16x128xf32>
    tpu.vector_store %arg12[%c0_174, %c0_175], %509 {strides = array<i32>} : memref<16x128xf32, #tpu.memory_space<vmem>>, vector<16x128xf32>,
    %c0_176 = arith.constant 0 : index
    %c0_177 = arith.constant 0 : index
    %543 = vector.load %arg13[%c0_176, %c0_177] : memref<16x128xf32, #tpu.memory_space<vmem>>, vector<16x128xf32>
    tpu.vector_store %arg13[%c0_176, %c0_177], %507 {strides = array<i32>} : memref<16x128xf32, #tpu.memory_space<vmem>>, vector<16x128xf32>,
    %c0_178 = arith.constant 0 : index
    %c0_179 = arith.constant 0 : index
    %544 = vector.load %arg14[%c0_178, %c0_179] : memref<16x128xf32, #tpu.memory_space<vmem>>, vector<16x128xf32>
    tpu.vector_store %arg14[%c0_178, %c0_179], %540 {strides = array<i32>} : memref<16x128xf32, #tpu.memory_space<vmem>>, vector<16x128xf32>,
    %c0_180 = arith.constant 0 : index
    %c0_181 = arith.constant 0 : index
    %545 = vector.load %arg15[%c0_180, %c0_181] : memref<16x128xf32, #tpu.memory_space<vmem>>, vector<16x128xf32>
    tpu.vector_store %arg15[%c0_180, %c0_181], %538 {strides = array<i32>} : memref<16x128xf32, #tpu.memory_space<vmem>>, vector<16x128xf32>,
    %c0_182 = arith.constant 0 : index
    %c0_183 = arith.constant 0 : index
    %546 = vector.load %arg16[%c0_182, %c0_183] : memref<16x128xf32, #tpu.memory_space<vmem>>, vector<16x128xf32>
    tpu.vector_store %arg16[%c0_182, %c0_183], %541 {strides = array<i32>} : memref<16x128xf32, #tpu.memory_space<vmem>>, vector<16x128xf32>,
    %c0_i32_184 = arith.constant 0 : i32
    %547 = arith.cmpi eq, %arg1, %c0_i32_184 : i32
    %548 = arith.extui %547 : i1 to i32
    %c0_i32_185 = arith.constant 0 : i32
    %549 = arith.cmpi ne, %548, %c0_i32_185 : i32
    scf.if %549 {
      %c0_186 = arith.constant 0 : index
      %c0_187 = arith.constant 0 : index
      %550 = vector.load %arg9[%c0_186, %c0_187] : memref<16x1xf32, #tpu.memory_space<vmem>>, vector<16x1xf32>
      %cst_188 = arith.constant 1.250000e-01 : f32
      %551 = vector.broadcast %cst_188 : f32 to vector<16x1xf32>
      %552 = arith.mulf %550, %551 : vector<16x1xf32>
      %553 = vector.broadcast %552 : vector<16x1xf32> to vector<16x128xf32>
      %554 = arith.mulf %541, %553 : vector<16x128xf32>
      %cst_189 = arith.constant dense<0.000000e+00> : vector<128xf32>
      %555 = vector.multi_reduction <add>, %554, %cst_189 [0] : vector<16x128xf32> to vector<128xf32>
      %556 = vector.shape_cast %555 : vector<128xf32> to vector<1x128xf32>
      %c0_190 = arith.constant 0 : index
      %c0_191 = arith.constant 0 : index
      %557 = vector.load %arg10[%c0_190, %c0_191] : memref<1x1xf32, #tpu.memory_space<vmem>>, vector<1x1xf32>
      %558 = vector.broadcast %557 : vector<1x1xf32> to vector<1x128xf32>
      %559 = arith.addf %556, %558 : vector<1x128xf32>
      %560 = vector.shape_cast %559 : vector<1x128xf32> to vector<1x1x128xf32>
      %c0_192 = arith.constant 0 : index
      %c0_193 = arith.constant 0 : index
      %c0_194 = arith.constant 0 : index
      %561 = vector.load %arg11[%c0_192, %c0_193, %c0_194] : memref<1x1x128xf32, #tpu.memory_space<vmem>>, vector<1x1x128xf32>
      tpu.vector_store %arg11[%c0_192, %c0_193, %c0_194], %560 {strides = array<i32>} : memref<1x1x128xf32, #tpu.memory_space<vmem>>, vector<1x1x128xf32>,
    } else {
    }
    return
  }
  func.func @transform_0(%arg0: i32, %arg1: i32) -> (i32, i32, i32) {
    %c0_i32 = arith.constant 0 : i32
    %c0_i32_0 = arith.constant 0 : i32
    return %arg1, %c0_i32, %arg0 : i32, i32, i32
  }
  func.func @transform_1(%arg0: i32, %arg1: i32) -> (i32, i32) {
    %c0_i32 = arith.constant 0 : i32
    %c0_i32_0 = arith.constant 0 : i32
    %c0_i32_1 = arith.constant 0 : i32
    return %c0_i32, %c0_i32_0 : i32, i32
  }
  func.func @transform_2(%arg0: i32, %arg1: i32) -> (i32, i32) {
    %c0_i32 = arith.constant 0 : i32
    %c0_i32_0 = arith.constant 0 : i32
    %c0_i32_1 = arith.constant 0 : i32
    return %c0_i32, %c0_i32_0 : i32, i32
  }
  func.func @transform_3(%arg0: i32, %arg1: i32) -> (i32, i32) {
    %c0_i32 = arith.constant 0 : i32
    %c0_i32_0 = arith.constant 0 : i32
    %c0_i32_1 = arith.constant 0 : i32
    return %c0_i32, %c0_i32_0 : i32, i32
  }
  func.func @transform_4(%arg0: i32, %arg1: i32) -> (i32, i32) {
    %c0_i32 = arith.constant 0 : i32
    %c0_i32_0 = arith.constant 0 : i32
    %c0_i32_1 = arith.constant 0 : i32
    return %c0_i32, %c0_i32_0 : i32, i32
  }
  func.func @transform_5(%arg0: i32, %arg1: i32) -> (i32, i32) {
    %c0_i32 = arith.constant 0 : i32
    %c0_i32_0 = arith.constant 0 : i32
    %c0_i32_1 = arith.constant 0 : i32
    return %c0_i32, %c0_i32_0 : i32, i32
  }
  func.func @transform_6(%arg0: i32, %arg1: i32) -> (i32, i32) {
    %c0_i32 = arith.constant 0 : i32
    %c0_i32_0 = arith.constant 0 : i32
    %c0_i32_1 = arith.constant 0 : i32
    return %c0_i32, %c0_i32_0 : i32, i32
  }
  func.func @transform_7(%arg0: i32, %arg1: i32) -> (i32, i32) {
    %c0_i32 = arith.constant 0 : i32
    %c0_i32_0 = arith.constant 0 : i32
    %c0_i32_1 = arith.constant 0 : i32
    return %c0_i32, %c0_i32_0 : i32, i32
  }
  func.func @transform_8(%arg0: i32, %arg1: i32) -> (i32, i32) {
    %c0_i32 = arith.constant 0 : i32
    %c0_i32_0 = arith.constant 0 : i32
    %c0_i32_1 = arith.constant 0 : i32
    return %c0_i32, %c0_i32_0 : i32, i32
  }
  func.func @transform_9(%arg0: i32, %arg1: i32) -> (i32, i32, i32) {
    %c0_i32 = arith.constant 0 : i32
    %c0_i32_0 = arith.constant 0 : i32
    %c0_i32_1 = arith.constant 0 : i32
    return %arg0, %c0_i32, %c0_i32_0 : i32, i32, i32
  }
}

</mosaic_0001>

<llo_original>
// kernel: tpu_custom_call.1
$region0: #{tpu_custom_call.1}
  #allocation0 [shape = 'u32[]', space=smem, size = 0x4, offset = 0x4, fixed_abs, tag = 'smem constant byte address 0x4 - core index']
  #allocation1 [shape = 'u32[144,128]{1,0:T(1,128)}', space=vmem, size = 0x12000, scoped, tag = 'internal scratch']
  #allocation2 [shape = 'f32[16,128]{1,0:T(8,128)}', space=vmem, size = 0x2000, scoped, tag = 'scratch operand']
  #allocation3 [shape = 'f32[16,128]{1,0:T(8,128)}', space=vmem, size = 0x2000, scoped, tag = 'scratch operand']
  #allocation4 [shape = 'f32[16,128]{1,0:T(8,128)}', space=vmem, size = 0x2000, scoped, tag = 'scratch operand']
  #allocation5 [shape = 'f32[16,128]{1,0:T(8,128)}', space=vmem, size = 0x2000, scoped, tag = 'scratch operand']
  #allocation6 [shape = 'f32[16,128]{1,0:T(8,128)}', space=vmem, size = 0x2000, scoped, tag = 'scratch operand']
  #allocation7 [shape = 'f32[1,1]{1,0:T(1,128)S(1)}', space=vmem, size = 0x200, scoped, tag = 'scoped memory for tpu_custom_call.1']
  %s0 = inlined_call_operand.vmem [shape: f32[8,8,128], index: 0, kind: input, shape index: {}]
  %s1 = inlined_call_operand.vmem [shape: f32[64,8], index: 1, kind: input, shape index: {}]
  %s2 = inlined_call_operand.vmem [shape: f32[64,16], index: 2, kind: input, shape index: {}]
  %s3 = inlined_call_operand.vmem [shape: f32[64,1], index: 3, kind: input, shape index: {}]
  %s4 = inlined_call_operand.vmem [shape: f32[64,16], index: 4, kind: input, shape index: {}]
  %s5 = inlined_call_operand.vmem [shape: f32[64,16], index: 5, kind: input, shape index: {}]
  %s6 = inlined_call_operand.vmem [shape: f32[64,1], index: 6, kind: input, shape index: {}]
  %s7 = inlined_call_operand.vmem [shape: f32[16,1], index: 7, kind: input, shape index: {}]
  %s8 = inlined_call_operand.<no memory space> [shape: f32[1,1], index: 8, kind: input, shape index: {}]
  %s9 = inlined_call_operand.hbm [shape: f32[1,1,128], index: 9, kind: output, shape index: {}]
  %s10 = sld [smem:[#allocation0]]
  $region54: #{tpu_custom_call.1} parent=0
    _
  %s12 = ssub.s32 1, %s10
  %s13 = scalar_select 0, %s12, %s10
  %v14 = vstv %s8
  %15 = vst [vmem:[#allocation7] sm:$0x1] %v14
  $region1: #{tpu_custom_call.1} parent=0
    #allocation8 [shape = 'u8[512]{0}', space=vmem, size = 0x400, scoped, tag = 'output window, operand 0, single buffered']
    #allocation9 [shape = 's32[1]{0}', space=sflag, size = 0x4, scoped, tag = 'scoped memory for tpu_custom_call.1']
    %16 = vsyncpa [#allocation9], 0
    // Predicated region
    $region2: #{tpu_custom_call.1} parent=1 // pred_check
      _
    $region3: #{tpu_custom_call.1} parent=1 // pred_check_branch
      %18 = sbr.rel (0) target = $region5
    $region4: #{tpu_custom_call.1} parent=1 // pred_region
      _
    $region5: #{tpu_custom_call.1} parent=1 // pred_fallthru
      _
    // Predicated region
    $region6: #{tpu_custom_call.1} parent=1 // pred_check
      _
    $region7: #{tpu_custom_call.1} parent=1 // pred_check_branch
      %20 = sbr.rel (0) target = $region9
    $region8: #{tpu_custom_call.1} parent=1 // pred_region
      _
    $region9: #{tpu_custom_call.1} parent=1 // pred_fallthru
      _
    // Predicated region
    $region10: #{tpu_custom_call.1} parent=1 // pred_check
      _
    $region11: #{tpu_custom_call.1} parent=1 // pred_check_branch
      %22 = sbr.rel (0) target = $region13
    $region12: #{tpu_custom_call.1} parent=1 // pred_region
      _
    $region13: #{tpu_custom_call.1} parent=1 // pred_fallthru
      _
    // Predicated region
    $region14: #{tpu_custom_call.1} parent=1 // pred_check
      _
    $region15: #{tpu_custom_call.1} parent=1 // pred_check_branch
      %24 = sbr.rel (0) target = $region17
    $region16: #{tpu_custom_call.1} parent=1 // pred_region
      _
    $region17: #{tpu_custom_call.1} parent=1 // pred_fallthru
      _
    // Predicated region
    $region18: #{tpu_custom_call.1} parent=1 // pred_check
      _
    $region19: #{tpu_custom_call.1} parent=1 // pred_check_branch
      %26 = sbr.rel (0) target = $region21
    $region20: #{tpu_custom_call.1} parent=1 // pred_region
      _
    $region21: #{tpu_custom_call.1} parent=1 // pred_fallthru
      _
    // Predicated region
    $region22: #{tpu_custom_call.1} parent=1 // pred_check
      _
    $region23: #{tpu_custom_call.1} parent=1 // pred_check_branch
      %28 = sbr.rel (0) target = $region25
    $region24: #{tpu_custom_call.1} parent=1 // pred_region
      _
    $region25: #{tpu_custom_call.1} parent=1 // pred_fallthru
      _
    // Predicated region
    $region26: #{tpu_custom_call.1} parent=1 // pred_check
      _
    $region27: #{tpu_custom_call.1} parent=1 // pred_check_branch
      %30 = sbr.rel (0) target = $region29
    $region28: #{tpu_custom_call.1} parent=1 // pred_region
      _
    $region29: #{tpu_custom_call.1} parent=1 // pred_fallthru
      _
    // Predicated region
    $region30: #{tpu_custom_call.1} parent=1 // pred_check
      _
    $region31: #{tpu_custom_call.1} parent=1 // pred_check_branch
      %32 = sbr.rel (0) target = $region33
    $region32: #{tpu_custom_call.1} parent=1 // pred_region
      _
    $region33: #{tpu_custom_call.1} parent=1 // pred_fallthru
      _
    // Predicated region
    $region34: #{tpu_custom_call.1} parent=1 // pred_check
      _
    $region35: #{tpu_custom_call.1} parent=1 // pred_check_branch
      %34 = sbr.rel (0) target = $region37
    $region36: #{tpu_custom_call.1} parent=1 // pred_region
      _
    $region37: #{tpu_custom_call.1} parent=1 // pred_fallthru
      _
    %p35 = scmp.eq.s32.totalorder 0, 0
    // Predicated region
    $region38: #{tpu_custom_call.1} parent=1 // pred_check
      %p36 = pneg %p35
    $region39: #{tpu_custom_call.1} parent=1 // pred_check_branch
      %38 = sbr.rel (%p36) target = $region41
    $region40: #{tpu_custom_call.1} parent=1 // pred_region
      %39 = vst [vmem:[#allocation2] sm:$0xff] 0.0
      %40 = vst [vmem:[#allocation2 + $0x8] sm:$0xff] 0.0
      %41 = vst [vmem:[#allocation3] sm:$0xff] 0.0
      %42 = vst [vmem:[#allocation3 + $0x8] sm:$0xff] 0.0
      %43 = vst [vmem:[#allocation4] sm:$0xff] 0.0
      %44 = vst [vmem:[#allocation4 + $0x8] sm:$0xff] 0.0
      %45 = vst [vmem:[#allocation5] sm:$0xff] 0.0
      %46 = vst [vmem:[#allocation5 + $0x8] sm:$0xff] 0.0
      %47 = vst [vmem:[#allocation6] sm:$0xff] 0.0
      %48 = vst [vmem:[#allocation6 + $0x8] sm:$0xff] 0.0
    $region41: #{tpu_custom_call.1} parent=1 // pred_fallthru
      _
    %v49 = vld [vmem:[%s3] sm:$0xff]
    %v50 = vld [vmem:[%s3 + $0x8] sm:$0xff]
    %v51 = vld [vmem:[%s3 + $0x10] sm:$0xff]
    %v52 = vld [vmem:[%s3 + $0x18] sm:$0xff]
    %v53 = vld [vmem:[%s3 + $0x20] sm:$0xff]
    %v54 = vld [vmem:[%s3 + $0x28] sm:$0xff]
    %v55 = vld [vmem:[%s3 + $0x30] sm:$0xff]
    %v56 = vld [vmem:[%s3 + $0x38] sm:$0xff]
    %58 = vset.pattern.permute.xlu0 0
    %59 = vperm.xlu0 %58, %v49
    %v60 = vpop.permute.xlu0 %59
    %63 = vset.pattern.permute.xlu0 0
    %64 = vperm.xlu0 %63, %v50
    %v65 = vpop.permute.xlu0 %64
    %68 = vset.pattern.permute.xlu0 0
    %69 = vperm.xlu0 %68, %v51
    %v70 = vpop.permute.xlu0 %69
    %73 = vset.pattern.permute.xlu0 0
    %74 = vperm.xlu0 %73, %v52
    %v75 = vpop.permute.xlu0 %74
    %78 = vset.pattern.permute.xlu0 0
    %79 = vperm.xlu0 %78, %v53
    %v80 = vpop.permute.xlu0 %79
    %83 = vset.pattern.permute.xlu0 0
    %84 = vperm.xlu0 %83, %v54
    %v85 = vpop.permute.xlu0 %84
    %88 = vset.pattern.permute.xlu0 0
    %89 = vperm.xlu0 %88, %v55
    %v90 = vpop.permute.xlu0 %89
    %93 = vset.pattern.permute.xlu0 0
    %94 = vperm.xlu0 %93, %v56
    %v95 = vpop.permute.xlu0 %94
    %v97 = vld [vmem:[%s6] sm:$0xff]
    %v98 = vld [vmem:[%s6 + $0x8] sm:$0xff]
    %v99 = vld [vmem:[%s6 + $0x10] sm:$0xff]
    %v100 = vld [vmem:[%s6 + $0x18] sm:$0xff]
    %v101 = vld [vmem:[%s6 + $0x20] sm:$0xff]
    %v102 = vld [vmem:[%s6 + $0x28] sm:$0xff]
    %v103 = vld [vmem:[%s6 + $0x30] sm:$0xff]
    %v104 = vld [vmem:[%s6 + $0x38] sm:$0xff]
    %106 = vset.pattern.permute.xlu0 0
    %107 = vperm.xlu0 %106, %v97
    %v108 = vpop.permute.xlu0 %107
    %111 = vset.pattern.permute.xlu0 0
    %112 = vperm.xlu0 %111, %v98
    %v113 = vpop.permute.xlu0 %112
    %116 = vset.pattern.permute.xlu0 0
    %117 = vperm.xlu0 %116, %v99
    %v118 = vpop.permute.xlu0 %117
    %121 = vset.pattern.permute.xlu0 0
    %122 = vperm.xlu0 %121, %v100
    %v123 = vpop.permute.xlu0 %122
    %126 = vset.pattern.permute.xlu0 0
    %127 = vperm.xlu0 %126, %v101
    %v128 = vpop.permute.xlu0 %127
    %131 = vset.pattern.permute.xlu0 0
    %132 = vperm.xlu0 %131, %v102
    %v133 = vpop.permute.xlu0 %132
    %136 = vset.pattern.permute.xlu0 0
    %137 = vperm.xlu0 %136, %v103
    %v138 = vpop.permute.xlu0 %137
    %141 = vset.pattern.permute.xlu0 0
    %142 = vperm.xlu0 %141, %v104
    %v143 = vpop.permute.xlu0 %142
    %v145 = vld [vmem:[#allocation2] sm:$0xff]
    %v146 = vld [vmem:[#allocation2 + $0x8] sm:$0xff]
    %v147 = vld [vmem:[#allocation3] sm:$0xff]
    %v148 = vld [vmem:[#allocation3 + $0x8] sm:$0xff]
    %v149 = vld [vmem:[#allocation4] sm:$0xff]
    %v150 = vld [vmem:[#allocation4 + $0x8] sm:$0xff]
    %v151 = vld [vmem:[#allocation5] sm:$0xff]
    %v152 = vld [vmem:[#allocation5 + $0x8] sm:$0xff]
    %v153 = vld [vmem:[#allocation6] sm:$0xff]
    %v154 = vld [vmem:[#allocation6 + $0x8] sm:$0xff]
    %v155 = vld [vmem:[%s0] sm:$0xff]
    %v156 = vld [vmem:[%s1] sm:$0xff]
    %v157 = vld [vmem:[%s1 + $0x8] sm:$0xff]
    %v158 = vld [vmem:[%s1 + $0x10] sm:$0xff]
    %v159 = vld [vmem:[%s1 + $0x18] sm:$0xff]
    %v160 = vld [vmem:[%s1 + $0x20] sm:$0xff]
    %v161 = vld [vmem:[%s1 + $0x28] sm:$0xff]
    %v162 = vld [vmem:[%s1 + $0x30] sm:$0xff]
    %v163 = vld [vmem:[%s1 + $0x38] sm:$0xff]
    %v164 = vld [vmem:[%s2] sm:$0xff]
    %v165 = vld [vmem:[%s2 + $0x8] sm:$0xff]
    %v166 = vld [vmem:[%s2 + $0x10] sm:$0xff]
    %v167 = vld [vmem:[%s2 + $0x18] sm:$0xff]
    %v168 = vld [vmem:[%s2 + $0x20] sm:$0xff]
    %v169 = vld [vmem:[%s2 + $0x28] sm:$0xff]
    %v170 = vld [vmem:[%s2 + $0x30] sm:$0xff]
    %v171 = vld [vmem:[%s2 + $0x38] sm:$0xff]
    %vm172 = vcmask 130048
    %v174 = vsel %vm172, %v164, 0
    %v177 = vsel %vm172, %v165, 0
    %v180 = vsel %vm172, %v166, 0
    %v183 = vsel %vm172, %v167, 0
    %v186 = vsel %vm172, %v168, 0
    %v189 = vsel %vm172, %v169, 0
    %v192 = vsel %vm172, %v170, 0
    %v195 = vsel %vm172, %v171, 0
    %197 = vmatprep.subr.mxu0 0.0
    %198 = vmatpush1.msra.mxu0 %v145
    %199 = vmatprep.subr.mxu0 0.0
    %200 = vmatpush1.msra.mxu0 %v146
    %201 = vmatprep.subr.mxu0 0.0
    %202 = vmatpush1.msra.mxu0 0.0
    %203 = vmatprep.subr.mxu0 0.0
    %204 = vmatpush1.msra.mxu0 0.0
    %205 = vmatprep.subr.mxu0 0.0
    %206 = vmatpush1.msra.mxu0 0.0
    %207 = vmatprep.subr.mxu0 0.0
    %208 = vmatpush1.msra.mxu0 0.0
    %209 = vmatprep.subr.mxu0 0.0
    %210 = vmatpush1.msra.mxu0 0.0
    %211 = vmatprep.subr.mxu0 0.0
    %212 = vmatpush1.msra.mxu0 0.0
    %213 = vmatprep.subr.mxu0 0.0
    %214 = vmatpush1.msra.mxu0 0.0
    %215 = vmatprep.subr.mxu0 0.0
    %216 = vmatpush1.msra.mxu0 0.0
    %217 = vmatprep.subr.mxu0 0.0
    %218 = vmatpush1.msra.mxu0 0.0
    %219 = vmatprep.subr.mxu0 0.0
    %220 = vmatpush1.msra.mxu0 0.0
    %221 = vmatprep.subr.mxu0 0.0
    %222 = vmatpush1.msra.mxu0 0.0
    %223 = vmatprep.subr.mxu0 0.0
    %224 = vmatpush1.msra.mxu0 0.0
    %225 = vmatprep.subr.mxu0 0.0
    %226 = vmatpush1.msra.mxu0 0.0
    %227 = vmatprep.subr.mxu0 0.0
    %228 = vmatpush1.msra.mxu0 0.0
    %229 = vmatprep.subr.mxu0 0.0
    %230 = vmatpush1.msra.mxu0 0.0
    %231 = vmatprep.subr.mxu0 0.0
    %232 = vmatpush1.msra.mxu0 0.0
    %233 = vmatprep.subr.mxu0 0.0
    %234 = vmatpush1.msra.mxu0 0.0
    %235 = vmatprep.subr.mxu0 0.0
    %236 = vmatpush1.msra.mxu0 0.0
    %237 = vmatprep.subr.mxu0 0.0
    %238 = vmatpush1.msra.mxu0 0.0
    %239 = vmatprep.subr.mxu0 0.0
    %240 = vmatpush1.msra.mxu0 0.0
    %241 = vmatprep.subr.mxu0 0.0
    %242 = vmatpush1.msra.mxu0 0.0
    %243 = vmatprep.subr.mxu0 0.0
    %244 = vmatpush1.msra.mxu0 0.0
    %245 = vmatprep.subr.mxu0 0.0
    %246 = vmatpush1.msra.mxu0 0.0
    %247 = vmatprep.subr.mxu0 0.0
    %248 = vmatpush1.msra.mxu0 0.0
    %249 = vmatprep.subr.mxu0 0.0
    %250 = vmatpush1.msra.mxu0 0.0
    %251 = vmatprep.subr.mxu0 0.0
    %252 = vmatpush1.msra.mxu0 0.0
    %253 = vmatprep.subr.mxu0 0.0
    %254 = vmatpush1.msra.mxu0 0.0
    %255 = vmatprep.subr.mxu0 0.0
    %256 = vmatpush1.msra.mxu0 0.0
    %257 = vmatprep.subr.mxu0 0.0
    %258 = vmatpush1.msra.mxu0 0.0
    %259 = vmatprep.subr.mxu0 0.0
    %260 = vmatpush1.msra.mxu0 0.0
    %261 = vmatprep.mubr.f32.mxu0 0.0
    %262 = vmatmul.mubr.f32.gmra.mrb[0].mxu0 %v174
    %v263 = vpop.f32.mrb[0].mxu0
    %v264 = vadd.f32 0.0, %v263
    %v265 = vpop.f32.mrb[0].mxu0
    %266 = vmatprep.mubr.f32.mxu0 0.0
    %267 = vmatmul.mubr.f32.gmra.mrb[0].mxu0 %v177
    %v268 = vpop.f32.mrb[0].mxu0
    %v269 = vadd.f32 0.0, %v268
    %v270 = vpop.f32.mrb[0].mxu0
    %271 = vmatprep.mubr.f32.mxu0 0.0
    %272 = vmatmul.mubr.f32.gmra.mrb[0].mxu0 %v180
    %v273 = vpop.f32.mrb[0].mxu0
    %v274 = vadd.f32 0.0, %v273
    %v275 = vpop.f32.mrb[0].mxu0
    %276 = vmatprep.mubr.f32.mxu0 0.0
    %277 = vmatmul.mubr.f32.gmra.mrb[0].mxu0 %v183
    %v278 = vpop.f32.mrb[0].mxu0
    %v279 = vadd.f32 0.0, %v278
    %v280 = vpop.f32.mrb[0].mxu0
    %281 = vmatprep.mubr.f32.mxu0 0.0
    %282 = vmatmul.mubr.f32.gmra.mrb[0].mxu0 %v186
    %v283 = vpop.f32.mrb[0].mxu0
    %v284 = vadd.f32 0.0, %v283
    %v285 = vpop.f32.mrb[0].mxu0
    %286 = vmatprep.mubr.f32.mxu0 0.0
    %287 = vmatmul.mubr.f32.gmra.mrb[0].mxu0 %v189
    %v288 = vpop.f32.mrb[0].mxu0
    %v289 = vadd.f32 0.0, %v288
    %v290 = vpop.f32.mrb[0].mxu0
    %291 = vmatprep.mubr.f32.mxu0 0.0
    %292 = vmatmul.mubr.f32.gmra.mrb[0].mxu0 %v192
    %v293 = vpop.f32.mrb[0].mxu0
    %v294 = vadd.f32 0.0, %v293
    %v295 = vpop.f32.mrb[0].mxu0
    %296 = vmatprep.mubr.f32.mxu0 0.0
    %297 = vmatmul.mubr.f32.gmra.mrb[0].mxu0 %v195
    %v298 = vpop.f32.mrb[0].mxu0
    %v299 = vadd.f32 0.0, %v298
    %v300 = vpop.f32.mrb[0].mxu0
    %301 = vdwg.mxu0
    %vm302 = vcmask 64512
    %v304 = vsel %vm302, %v156, 0
    %v307 = vsel %vm302, %v157, 0
    %v310 = vsel %vm302, %v158, 0
    %v313 = vsel %vm302, %v159, 0
    %v316 = vsel %vm302, %v160, 0
    %v319 = vsel %vm302, %v161, 0
    %v322 = vsel %vm302, %v162, 0
    %v325 = vsel %vm302, %v163, 0
    %327 = vmatprep.subr.mxu0 0.0
    %328 = vmatpush1.msra.mxu0 %v155
    %329 = vmatprep.subr.mxu0 0.0
    %330 = vmatpush1.msra.mxu0 0.0
    %331 = vmatprep.subr.mxu0 0.0
    %332 = vmatpush1.msra.mxu0 0.0
    %333 = vmatprep.subr.mxu0 0.0
    %334 = vmatpush1.msra.mxu0 0.0
    %335 = vmatprep.subr.mxu0 0.0
    %336 = vmatpush1.msra.mxu0 0.0
    %337 = vmatprep.subr.mxu0 0.0
    %338 = vmatpush1.msra.mxu0 0.0
    %339 = vmatprep.subr.mxu0 0.0
    %340 = vmatpush1.msra.mxu0 0.0
    %341 = vmatprep.subr.mxu0 0.0
    %342 = vmatpush1.msra.mxu0 0.0
    %343 = vmatprep.subr.mxu0 0.0
    %344 = vmatpush1.msra.mxu0 0.0
    %345 = vmatprep.subr.mxu0 0.0
    %346 = vmatpush1.msra.mxu0 0.0
    %347 = vmatprep.subr.mxu0 0.0
    %348 = vmatpush1.msra.mxu0 0.0
    %349 = vmatprep.subr.mxu0 0.0
    %350 = vmatpush1.msra.mxu0 0.0
    %351 = vmatprep.subr.mxu0 0.0
    %352 = vmatpush1.msra.mxu0 0.0
    %353 = vmatprep.subr.mxu0 0.0
    %354 = vmatpush1.msra.mxu0 0.0
    %355 = vmatprep.subr.mxu0 0.0
    %356 = vmatpush1.msra.mxu0 0.0
    %357 = vmatprep.subr.mxu0 0.0
    %358 = vmatpush1.msra.mxu0 0.0
    %359 = vmatprep.subr.mxu0 0.0
    %360 = vmatpush1.msra.mxu0 0.0
    %361 = vmatprep.subr.mxu0 0.0
    %362 = vmatpush1.msra.mxu0 0.0
    %363 = vmatprep.subr.mxu0 0.0
    %364 = vmatpush1.msra.mxu0 0.0
    %365 = vmatprep.subr.mxu0 0.0
    %366 = vmatpush1.msra.mxu0 0.0
    %367 = vmatprep.subr.mxu0 0.0
    %368 = vmatpush1.msra.mxu0 0.0
    %369 = vmatprep.subr.mxu0 0.0
    %370 = vmatpush1.msra.mxu0 0.0
    %371 = vmatprep.subr.mxu0 0.0
    %372 = vmatpush1.msra.mxu0 0.0
    %373 = vmatprep.subr.mxu0 0.0
    %374 = vmatpush1.msra.mxu0 0.0
    %375 = vmatprep.subr.mxu0 0.0
    %376 = vmatpush1.msra.mxu0 0.0
    %377 = vmatprep.subr.mxu0 0.0
    %378 = vmatpush1.msra.mxu0 0.0
    %379 = vmatprep.subr.mxu0 0.0
    %380 = vmatpush1.msra.mxu0 0.0
    %381 = vmatprep.subr.mxu0 0.0
    %382 = vmatpush1.msra.mxu0 0.0
    %383 = vmatprep.subr.mxu0 0.0
    %384 = vmatpush1.msra.mxu0 0.0
    %385 = vmatprep.subr.mxu0 0.0
    %386 = vmatpush1.msra.mxu0 0.0
    %387 = vmatprep.subr.mxu0 0.0
    %388 = vmatpush1.msra.mxu0 0.0
    %389 = vmatprep.subr.mxu0 0.0
    %390 = vmatpush1.msra.mxu0 0.0
    %391 = vmatprep.mubr.f32.mxu0 0.0
    %392 = vmatmul.mubr.f32.gmra.mrb[0].mxu0 %v304
    %v393 = vpop.f32.mrb[0].mxu0
    %v394 = vadd.f32 %v264, %v393
    %v395 = vpop.f32.mrb[0].mxu0
    %396 = vmatprep.mubr.f32.mxu0 0.0
    %397 = vmatmul.mubr.f32.gmra.mrb[0].mxu0 %v307
    %v398 = vpop.f32.mrb[0].mxu0
    %v399 = vadd.f32 %v269, %v398
    %v400 = vpop.f32.mrb[0].mxu0
    %401 = vmatprep.mubr.f32.mxu0 0.0
    %402 = vmatmul.mubr.f32.gmra.mrb[0].mxu0 %v310
    %v403 = vpop.f32.mrb[0].mxu0
    %v404 = vadd.f32 %v274, %v403
    %v405 = vpop.f32.mrb[0].mxu0
    %406 = vmatprep.mubr.f32.mxu0 0.0
    %407 = vmatmul.mubr.f32.gmra.mrb[0].mxu0 %v313
    %v408 = vpop.f32.mrb[0].mxu0
    %v409 = vadd.f32 %v279, %v408
    %v410 = vpop.f32.mrb[0].mxu0
    %411 = vmatprep.mubr.f32.mxu0 0.0
    %412 = vmatmul.mubr.f32.gmra.mrb[0].mxu0 %v316
    %v413 = vpop.f32.mrb[0].mxu0
    %v414 = vadd.f32 %v284, %v413
    %v415 = vpop.f32.mrb[0].mxu0
    %416 = vmatprep.mubr.f32.mxu0 0.0
    %417 = vmatmul.mubr.f32.gmra.mrb[0].mxu0 %v319
    %v418 = vpop.f32.mrb[0].mxu0
    %v419 = vadd.f32 %v289, %v418
    %v420 = vpop.f32.mrb[0].mxu0
    %421 = vmatprep.mubr.f32.mxu0 0.0
    %422 = vmatmul.mubr.f32.gmra.mrb[0].mxu0 %v322
    %v423 = vpop.f32.mrb[0].mxu0
    %v424 = vadd.f32 %v294, %v423
    %v425 = vpop.f32.mrb[0].mxu0
    %426 = vmatprep.mubr.f32.mxu0 0.0
    %427 = vmatmul.mubr.f32.gmra.mrb[0].mxu0 %v325
    %v428 = vpop.f32.mrb[0].mxu0
    %v429 = vadd.f32 %v299, %v428
    %v430 = vpop.f32.mrb[0].mxu0
    %431 = vdwg.mxu0
    %v432 = vadd.f32 %v394, %v60
    %v433 = vadd.f32 %v399, %v65
    %v434 = vadd.f32 %v404, %v70
    %v435 = vadd.f32 %v409, %v75
    %v436 = vadd.f32 %v414, %v80
    %v437 = vadd.f32 %v419, %v85
    %v438 = vadd.f32 %v424, %v90
    %v439 = vadd.f32 %v429, %v95
    %v440 = vxor.u32 %v432, 2147483648
    %v441 = vxor.u32 %v433, 2147483648
    %v442 = vmul.f32 %v440, 1.442695
    %v443 = vpow.pop %v442
    %v444 = vmul.f32 %v441, 1.442695
    %v445 = vpow.pop %v444
    %v446 = vadd.f32 %v443, 1.0
    %v447 = vadd.f32 %v445, 1.0
    %v448 = vrcp.pop %v446
    %v449 = vmul.f32 1.0, %v448
    %v450 = vrcp.pop %v447
    %v451 = vmul.f32 1.0, %v450
    %v452 = vxor.u32 %v434, 2147483648
    %v453 = vxor.u32 %v435, 2147483648
    %v454 = vmul.f32 %v452, 1.442695
    %v455 = vpow.pop %v454
    %v456 = vmul.f32 %v453, 1.442695
    %v457 = vpow.pop %v456
    %v458 = vadd.f32 %v455, 1.0
    %v459 = vadd.f32 %v457, 1.0
    %v460 = vrcp.pop %v458
    %v461 = vmul.f32 1.0, %v460
    %v462 = vrcp.pop %v459
    %v463 = vmul.f32 1.0, %v462
    %v464 = vtanh.pop %v436
    %v465 = vtanh.pop %v437
    %v466 = vxor.u32 %v438, 2147483648
    %v467 = vxor.u32 %v439, 2147483648
    %v468 = vmul.f32 %v466, 1.442695
    %v469 = vpow.pop %v468
    %v470 = vmul.f32 %v467, 1.442695
    %v471 = vpow.pop %v470
    %v472 = vadd.f32 %v469, 1.0
    %v473 = vadd.f32 %v471, 1.0
    %v474 = vrcp.pop %v472
    %v475 = vmul.f32 1.0, %v474
    %v476 = vrcp.pop %v473
    %v477 = vmul.f32 1.0, %v476
    %v478 = vmul.f32 %v461, %v147
    %v479 = vmul.f32 %v463, %v148
    %v480 = vmul.f32 %v449, %v464
    %v481 = vmul.f32 %v451, %v465
    %v482 = vadd.f32 %v478, %v480
    %v483 = vadd.f32 %v479, %v481
    %v484 = vtanh.pop %v482
    %v485 = vtanh.pop %v483
    %v486 = vmul.f32 %v475, %v484
    %v487 = vmul.f32 %v477, %v485
    %v488 = vld [vmem:[%s4] sm:$0xff]
    %v489 = vld [vmem:[%s4 + $0x8] sm:$0xff]
    %v490 = vld [vmem:[%s4 + $0x10] sm:$0xff]
    %v491 = vld [vmem:[%s4 + $0x18] sm:$0xff]
    %v492 = vld [vmem:[%s4 + $0x20] sm:$0xff]
    %v493 = vld [vmem:[%s4 + $0x28] sm:$0xff]
    %v494 = vld [vmem:[%s4 + $0x30] sm:$0xff]
    %v495 = vld [vmem:[%s4 + $0x38] sm:$0xff]
    %v496 = vld [vmem:[%s5] sm:$0xff]
    %v497 = vld [vmem:[%s5 + $0x8] sm:$0xff]
    %v498 = vld [vmem:[%s5 + $0x10] sm:$0xff]
    %v499 = vld [vmem:[%s5 + $0x18] sm:$0xff]
    %v500 = vld [vmem:[%s5 + $0x20] sm:$0xff]
    %v501 = vld [vmem:[%s5 + $0x28] sm:$0xff]
    %v502 = vld [vmem:[%s5 + $0x30] sm:$0xff]
    %v503 = vld [vmem:[%s5 + $0x38] sm:$0xff]
    %v505 = vsel %vm172, %v496, 0
    %v508 = vsel %vm172, %v497, 0
    %v511 = vsel %vm172, %v498, 0
    %v514 = vsel %vm172, %v499, 0
    %v517 = vsel %vm172, %v500, 0
    %v520 = vsel %vm172, %v501, 0
    %v523 = vsel %vm172, %v502, 0
    %v526 = vsel %vm172, %v503, 0
    %528 = vmatprep.subr.mxu0 0.0
    %529 = vmatpush1.msra.mxu0 %v149
    %530 = vmatprep.subr.mxu0 0.0
    %531 = vmatpush1.msra.mxu0 %v150
    %532 = vmatprep.subr.mxu0 0.0
    %533 = vmatpush1.msra.mxu0 0.0
    %534 = vmatprep.subr.mxu0 0.0
    %535 = vmatpush1.msra.mxu0 0.0
    %536 = vmatprep.subr.mxu0 0.0
    %537 = vmatpush1.msra.mxu0 0.0
    %538 = vmatprep.subr.mxu0 0.0
    %539 = vmatpush1.msra.mxu0 0.0
    %540 = vmatprep.subr.mxu0 0.0
    %541 = vmatpush1.msra.mxu0 0.0
    %542 = vmatprep.subr.mxu0 0.0
    %543 = vmatpush1.msra.mxu0 0.0
    %544 = vmatprep.subr.mxu0 0.0
    %545 = vmatpush1.msra.mxu0 0.0
    %546 = vmatprep.subr.mxu0 0.0
    %547 = vmatpush1.msra.mxu0 0.0
    %548 = vmatprep.subr.mxu0 0.0
    %549 = vmatpush1.msra.mxu0 0.0
    %550 = vmatprep.subr.mxu0 0.0
    %551 = vmatpush1.msra.mxu0 0.0
    %552 = vmatprep.subr.mxu0 0.0
    %553 = vmatpush1.msra.mxu0 0.0
    %554 = vmatprep.subr.mxu0 0.0
    %555 = vmatpush1.msra.mxu0 0.0
    %556 = vmatprep.subr.mxu0 0.0
    %557 = vmatpush1.msra.mxu0 0.0
    %558 = vmatprep.subr.mxu0 0.0
    %559 = vmatpush1.msra.mxu0 0.0
    %560 = vmatprep.subr.mxu0 0.0
    %561 = vmatpush1.msra.mxu0 0.0
    %562 = vmatprep.subr.mxu0 0.0
    %563 = vmatpush1.msra.mxu0 0.0
    %564 = vmatprep.subr.mxu0 0.0
    %565 = vmatpush1.msra.mxu0 0.0
    %566 = vmatprep.subr.mxu0 0.0
    %567 = vmatpush1.msra.mxu0 0.0
    %568 = vmatprep.subr.mxu0 0.0
    %569 = vmatpush1.msra.mxu0 0.0
    %570 = vmatprep.subr.mxu0 0.0
    %571 = vmatpush1.msra.mxu0 0.0
    %572 = vmatprep.subr.mxu0 0.0
    %573 = vmatpush1.msra.mxu0 0.0
    %574 = vmatprep.subr.mxu0 0.0
    %575 = vmatpush1.msra.mxu0 0.0
    %576 = vmatprep.subr.mxu0 0.0
    %577 = vmatpush1.msra.mxu0 0.0
    %578 = vmatprep.subr.mxu0 0.0
    %579 = vmatpush1.msra.mxu0 0.0
    %580 = vmatprep.subr.mxu0 0.0
    %581 = vmatpush1.msra.mxu0 0.0
    %582 = vmatprep.subr.mxu0 0.0
    %583 = vmatpush1.msra.mxu0 0.0
    %584 = vmatprep.subr.mxu0 0.0
    %585 = vmatpush1.msra.mxu0 0.0
    %586 = vmatprep.subr.mxu0 0.0
    %587 = vmatpush1.msra.mxu0 0.0
    %588 = vmatprep.subr.mxu0 0.0
    %589 = vmatpush1.msra.mxu0 0.0
    %590 = vmatprep.subr.mxu0 0.0
    %591 = vmatpush1.msra.mxu0 0.0
    %592 = vmatprep.mubr.f32.mxu0 0.0
    %593 = vmatmul.mubr.f32.gmra.mrb[0].mxu0 %v505
    %v594 = vpop.f32.mrb[0].mxu0
    %v595 = vadd.f32 0.0, %v594
    %v596 = vpop.f32.mrb[0].mxu0
    %597 = vmatprep.mubr.f32.mxu0 0.0
    %598 = vmatmul.mubr.f32.gmra.mrb[0].mxu0 %v508
    %v599 = vpop.f32.mrb[0].mxu0
    %v600 = vadd.f32 0.0, %v599
    %v601 = vpop.f32.mrb[0].mxu0
    %602 = vmatprep.mubr.f32.mxu0 0.0
    %603 = vmatmul.mubr.f32.gmra.mrb[0].mxu0 %v511
    %v604 = vpop.f32.mrb[0].mxu0
    %v605 = vadd.f32 0.0, %v604
    %v606 = vpop.f32.mrb[0].mxu0
    %607 = vmatprep.mubr.f32.mxu0 0.0
    %608 = vmatmul.mubr.f32.gmra.mrb[0].mxu0 %v514
    %v609 = vpop.f32.mrb[0].mxu0
    %v610 = vadd.f32 0.0, %v609
    %v611 = vpop.f32.mrb[0].mxu0
    %612 = vmatprep.mubr.f32.mxu0 0.0
    %613 = vmatmul.mubr.f32.gmra.mrb[0].mxu0 %v517
    %v614 = vpop.f32.mrb[0].mxu0
    %v615 = vadd.f32 0.0, %v614
    %v616 = vpop.f32.mrb[0].mxu0
    %617 = vmatprep.mubr.f32.mxu0 0.0
    %618 = vmatmul.mubr.f32.gmra.mrb[0].mxu0 %v520
    %v619 = vpop.f32.mrb[0].mxu0
    %v620 = vadd.f32 0.0, %v619
    %v621 = vpop.f32.mrb[0].mxu0
    %622 = vmatprep.mubr.f32.mxu0 0.0
    %623 = vmatmul.mubr.f32.gmra.mrb[0].mxu0 %v523
    %v624 = vpop.f32.mrb[0].mxu0
    %v625 = vadd.f32 0.0, %v624
    %v626 = vpop.f32.mrb[0].mxu0
    %627 = vmatprep.mubr.f32.mxu0 0.0
    %628 = vmatmul.mubr.f32.gmra.mrb[0].mxu0 %v526
    %v629 = vpop.f32.mrb[0].mxu0
    %v630 = vadd.f32 0.0, %v629
    %v631 = vpop.f32.mrb[0].mxu0
    %632 = vdwg.mxu0
    %v634 = vsel %vm172, %v488, 0
    %v637 = vsel %vm172, %v489, 0
    %v640 = vsel %vm172, %v490, 0
    %v643 = vsel %vm172, %v491, 0
    %v646 = vsel %vm172, %v492, 0
    %v649 = vsel %vm172, %v493, 0
    %v652 = vsel %vm172, %v494, 0
    %v655 = vsel %vm172, %v495, 0
    %657 = vmatprep.subr.mxu0 0.0
    %658 = vmatpush1.msra.mxu0 %v486
    %659 = vmatprep.subr.mxu0 0.0
    %660 = vmatpush1.msra.mxu0 %v487
    %661 = vmatprep.subr.mxu0 0.0
    %662 = vmatpush1.msra.mxu0 0.0
    %663 = vmatprep.subr.mxu0 0.0
    %664 = vmatpush1.msra.mxu0 0.0
    %665 = vmatprep.subr.mxu0 0.0
    %666 = vmatpush1.msra.mxu0 0.0
    %667 = vmatprep.subr.mxu0 0.0
    %668 = vmatpush1.msra.mxu0 0.0
    %669 = vmatprep.subr.mxu0 0.0
    %670 = vmatpush1.msra.mxu0 0.0
    %671 = vmatprep.subr.mxu0 0.0
    %672 = vmatpush1.msra.mxu0 0.0
    %673 = vmatprep.subr.mxu0 0.0
    %674 = vmatpush1.msra.mxu0 0.0
    %675 = vmatprep.subr.mxu0 0.0
    %676 = vmatpush1.msra.mxu0 0.0
    %677 = vmatprep.subr.mxu0 0.0
    %678 = vmatpush1.msra.mxu0 0.0
    %679 = vmatprep.subr.mxu0 0.0
    %680 = vmatpush1.msra.mxu0 0.0
    %681 = vmatprep.subr.mxu0 0.0
    %682 = vmatpush1.msra.mxu0 0.0
    %683 = vmatprep.subr.mxu0 0.0
    %684 = vmatpush1.msra.mxu0 0.0
    %685 = vmatprep.subr.mxu0 0.0
    %686 = vmatpush1.msra.mxu0 0.0
    %687 = vmatprep.subr.mxu0 0.0
    %688 = vmatpush1.msra.mxu0 0.0
    %689 = vmatprep.subr.mxu0 0.0
    %690 = vmatpush1.msra.mxu0 0.0
    %691 = vmatprep.subr.mxu0 0.0
    %692 = vmatpush1.msra.mxu0 0.0
    %693 = vmatprep.subr.mxu0 0.0
    %694 = vmatpush1.msra.mxu0 0.0
    %695 = vmatprep.subr.mxu0 0.0
    %696 = vmatpush1.msra.mxu0 0.0
    %697 = vmatprep.subr.mxu0 0.0
    %698 = vmatpush1.msra.mxu0 0.0
    %699 = vmatprep.subr.mxu0 0.0
    %700 = vmatpush1.msra.mxu0 0.0
    %701 = vmatprep.subr.mxu0 0.0
    %702 = vmatpush1.msra.mxu0 0.0
    %703 = vmatprep.subr.mxu0 0.0
    %704 = vmatpush1.msra.mxu0 0.0
    %705 = vmatprep.subr.mxu0 0.0
    %706 = vmatpush1.msra.mxu0 0.0
    %707 = vmatprep.subr.mxu0 0.0
    %708 = vmatpush1.msra.mxu0 0.0
    %709 = vmatprep.subr.mxu0 0.0
    %710 = vmatpush1.msra.mxu0 0.0
    %711 = vmatprep.subr.mxu0 0.0
    %712 = vmatpush1.msra.mxu0 0.0
    %713 = vmatprep.subr.mxu0 0.0
    %714 = vmatpush1.msra.mxu0 0.0
    %715 = vmatprep.subr.mxu0 0.0
    %716 = vmatpush1.msra.mxu0 0.0
    %717 = vmatprep.subr.mxu0 0.0
    %718 = vmatpush1.msra.mxu0 0.0
    %719 = vmatprep.subr.mxu0 0.0
    %720 = vmatpush1.msra.mxu0 0.0
    %721 = vmatprep.mubr.f32.mxu0 0.0
    %722 = vmatmul.mubr.f32.gmra.mrb[0].mxu0 %v634
    %v723 = vpop.f32.mrb[0].mxu0
    %v724 = vadd.f32 %v595, %v723
    %v725 = vpop.f32.mrb[0].mxu0
    %726 = vmatprep.mubr.f32.mxu0 0.0
    %727 = vmatmul.mubr.f32.gmra.mrb[0].mxu0 %v637
    %v728 = vpop.f32.mrb[0].mxu0
    %v729 = vadd.f32 %v600, %v728
    %v730 = vpop.f32.mrb[0].mxu0
    %731 = vmatprep.mubr.f32.mxu0 0.0
    %732 = vmatmul.mubr.f32.gmra.mrb[0].mxu0 %v640
    %v733 = vpop.f32.mrb[0].mxu0
    %v734 = vadd.f32 %v605, %v733
    %v735 = vpop.f32.mrb[0].mxu0
    %736 = vmatprep.mubr.f32.mxu0 0.0
    %737 = vmatmul.mubr.f32.gmra.mrb[0].mxu0 %v643
    %v738 = vpop.f32.mrb[0].mxu0
    %v739 = vadd.f32 %v610, %v738
    %v740 = vpop.f32.mrb[0].mxu0
    %741 = vmatprep.mubr.f32.mxu0 0.0
    %742 = vmatmul.mubr.f32.gmra.mrb[0].mxu0 %v646
    %v743 = vpop.f32.mrb[0].mxu0
    %v744 = vadd.f32 %v615, %v743
    %v745 = vpop.f32.mrb[0].mxu0
    %746 = vmatprep.mubr.f32.mxu0 0.0
    %747 = vmatmul.mubr.f32.gmra.mrb[0].mxu0 %v649
    %v748 = vpop.f32.mrb[0].mxu0
    %v749 = vadd.f32 %v620, %v748
    %v750 = vpop.f32.mrb[0].mxu0
    %751 = vmatprep.mubr.f32.mxu0 0.0
    %752 = vmatmul.mubr.f32.gmra.mrb[0].mxu0 %v652
    %v753 = vpop.f32.mrb[0].mxu0
    %v754 = vadd.f32 %v625, %v753
    %v755 = vpop.f32.mrb[0].mxu0
    %756 = vmatprep.mubr.f32.mxu0 0.0
    %757 = vmatmul.mubr.f32.gmra.mrb[0].mxu0 %v655
    %v758 = vpop.f32.mrb[0].mxu0
    %v759 = vadd.f32 %v630, %v758
    %v760 = vpop.f32.mrb[0].mxu0
    %761 = vdwg.mxu0
    %v762 = vadd.f32 %v724, %v108
    %v763 = vadd.f32 %v729, %v113
    %v764 = vadd.f32 %v734, %v118
    %v765 = vadd.f32 %v739, %v123
    %v766 = vadd.f32 %v744, %v128
    %v767 = vadd.f32 %v749, %v133
    %v768 = vadd.f32 %v754, %v138
    %v769 = vadd.f32 %v759, %v143
    %v770 = vxor.u32 %v762, 2147483648
    %v771 = vxor.u32 %v763, 2147483648
    %v772 = vmul.f32 %v770, 1.442695
    %v773 = vpow.pop %v772
    %v774 = vmul.f32 %v771, 1.442695
    %v775 = vpow.pop %v774
    %v776 = vadd.f32 %v773, 1.0
    %v777 = vadd.f32 %v775, 1.0
    %v778 = vrcp.pop %v776
    %v779 = vmul.f32 1.0, %v778
    %v780 = vrcp.pop %v777
    %v781 = vmul.f32 1.0, %v780
    %v782 = vxor.u32 %v764, 2147483648
    %v783 = vxor.u32 %v765, 2147483648
    %v784 = vmul.f32 %v782, 1.442695
    %v785 = vpow.pop %v784
    %v786 = vmul.f32 %v783, 1.442695
    %v787 = vpow.pop %v786
    %v788 = vadd.f32 %v785, 1.0
    %v789 = vadd.f32 %v787, 1.0
    %v790 = vrcp.pop %v788
    %v791 = vmul.f32 1.0, %v790
    %v792 = vrcp.pop %v789
    %v793 = vmul.f32 1.0, %v792
    %v794 = vtanh.pop %v766
    %v795 = vtanh.pop %v767
    %v796 = vxor.u32 %v768, 2147483648
    %v797 = vxor.u32 %v769, 2147483648
    %v798 = vmul.f32 %v796, 1.442695
    %v799 = vpow.pop %v798
    %v800 = vmul.f32 %v797, 1.442695
    %v801 = vpow.pop %v800
    %v802 = vadd.f32 %v799, 1.0
    %v803 = vadd.f32 %v801, 1.0
    %v804 = vrcp.pop %v802
    %v805 = vmul.f32 1.0, %v804
    %v806 = vrcp.pop %v803
    %v807 = vmul.f32 1.0, %v806
    %v808 = vmul.f32 %v791, %v151
    %v809 = vmul.f32 %v793, %v152
    %v810 = vmul.f32 %v779, %v794
    %v811 = vmul.f32 %v781, %v795
    %v812 = vadd.f32 %v808, %v810
    %v813 = vadd.f32 %v809, %v811
    %v814 = vtanh.pop %v812
    %v815 = vtanh.pop %v813
    %v816 = vmul.f32 %v805, %v814
    %v817 = vmul.f32 %v807, %v815
    %v818 = vadd.f32 %v153, %v816
    %v819 = vadd.f32 %v154, %v817
    %s820 = scalar_lea.vmem %s0, 8
    %v821 = vld [vmem:[%s820] sm:$0xff]
    %822 = vmatprep.subr.mxu0 0.0
    %823 = vmatpush1.msra.mxu0 %v486
    %824 = vmatprep.subr.mxu0 0.0
    %825 = vmatpush1.msra.mxu0 %v487
    %826 = vmatprep.subr.mxu0 0.0
    %827 = vmatpush1.msra.mxu0 0.0
    %828 = vmatprep.subr.mxu0 0.0
    %829 = vmatpush1.msra.mxu0 0.0
    %830 = vmatprep.subr.mxu0 0.0
    %831 = vmatpush1.msra.mxu0 0.0
    %832 = vmatprep.subr.mxu0 0.0
    %833 = vmatpush1.msra.mxu0 0.0
    %834 = vmatprep.subr.mxu0 0.0
    %835 = vmatpush1.msra.mxu0 0.0
    %836 = vmatprep.subr.mxu0 0.0
    %837 = vmatpush1.msra.mxu0 0.0
    %838 = vmatprep.subr.mxu0 0.0
    %839 = vmatpush1.msra.mxu0 0.0
    %840 = vmatprep.subr.mxu0 0.0
    %841 = vmatpush1.msra.mxu0 0.0
    %842 = vmatprep.subr.mxu0 0.0
    %843 = vmatpush1.msra.mxu0 0.0
    %844 = vmatprep.subr.mxu0 0.0
    %845 = vmatpush1.msra.mxu0 0.0
    %846 = vmatprep.subr.mxu0 0.0
    %847 = vmatpush1.msra.mxu0 0.0
    %848 = vmatprep.subr.mxu0 0.0
    %849 = vmatpush1.msra.mxu0 0.0
    %850 = vmatprep.subr.mxu0 0.0
    %851 = vmatpush1.msra.mxu0 0.0
    %852 = vmatprep.subr.mxu0 0.0
    %853 = vmatpush1.msra.mxu0 0.0
    %854 = vmatprep.subr.mxu0 0.0
    %855 = vmatpush1.msra.mxu0 0.0
    %856 = vmatprep.subr.mxu0 0.0
    %857 = vmatpush1.msra.mxu0 0.0
    %858 = vmatprep.subr.mxu0 0.0
    %859 = vmatpush1.msra.mxu0 0.0
    %860 = vmatprep.subr.mxu0 0.0
    %861 = vmatpush1.msra.mxu0 0.0
    %862 = vmatprep.subr.mxu0 0.0
    %863 = vmatpush1.msra.mxu0 0.0
    %864 = vmatprep.subr.mxu0 0.0
    %865 = vmatpush1.msra.mxu0 0.0
    %866 = vmatprep.subr.mxu0 0.0
    %867 = vmatpush1.msra.mxu0 0.0
    %868 = vmatprep.subr.mxu0 0.0
    %869 = vmatpush1.msra.mxu0 0.0
    %870 = vmatprep.subr.mxu0 0.0
    %871 = vmatpush1.msra.mxu0 0.0
    %872 = vmatprep.subr.mxu0 0.0
    %873 = vmatpush1.msra.mxu0 0.0
    %874 = vmatprep.subr.mxu0 0.0
    %875 = vmatpush1.msra.mxu0 0.0
    %876 = vmatprep.subr.mxu0 0.0
    %877 = vmatpush1.msra.mxu0 0.0
    %878 = vmatprep.subr.mxu0 0.0
    %879 = vmatpush1.msra.mxu0 0.0
    %880 = vmatprep.subr.mxu0 0.0
    %881 = vmatpush1.msra.mxu0 0.0
    %882 = vmatprep.subr.mxu0 0.0
    %883 = vmatpush1.msra.mxu0 0.0
    %884 = vmatprep.subr.mxu0 0.0
    %885 = vmatpush1.msra.mxu0 0.0
    %886 = vmatprep.mubr.f32.mxu0 0.0
    %887 = vmatmul.mubr.f32.gmra.mrb[0].mxu0 %v174
    %v888 = vpop.f32.mrb[0].mxu0
    %v889 = vadd.f32 0.0, %v888
    %v890 = vpop.f32.mrb[0].mxu0
    %891 = vmatprep.mubr.f32.mxu0 0.0
    %892 = vmatmul.mubr.f32.gmra.mrb[0].mxu0 %v177
    %v893 = vpop.f32.mrb[0].mxu0
    %v894 = vadd.f32 0.0, %v893
    %v895 = vpop.f32.mrb[0].mxu0
    %896 = vmatprep.mubr.f32.mxu0 0.0
    %897 = vmatmul.mubr.f32.gmra.mrb[0].mxu0 %v180
    %v898 = vpop.f32.mrb[0].mxu0
    %v899 = vadd.f32 0.0, %v898
    %v900 = vpop.f32.mrb[0].mxu0
    %901 = vmatprep.mubr.f32.mxu0 0.0
    %902 = vmatmul.mubr.f32.gmra.mrb[0].mxu0 %v183
    %v903 = vpop.f32.mrb[0].mxu0
    %v904 = vadd.f32 0.0, %v903
    %v905 = vpop.f32.mrb[0].mxu0
    %906 = vmatprep.mubr.f32.mxu0 0.0
    %907 = vmatmul.mubr.f32.gmra.mrb[0].mxu0 %v186
    %v908 = vpop.f32.mrb[0].mxu0
    %v909 = vadd.f32 0.0, %v908
    %v910 = vpop.f32.mrb[0].mxu0
    %911 = vmatprep.mubr.f32.mxu0 0.0
    %912 = vmatmul.mubr.f32.gmra.mrb[0].mxu0 %v189
    %v913 = vpop.f32.mrb[0].mxu0
    %v914 = vadd.f32 0.0, %v913
    %v915 = vpop.f32.mrb[0].mxu0
    %916 = vmatprep.mubr.f32.mxu0 0.0
    %917 = vmatmul.mubr.f32.gmra.mrb[0].mxu0 %v192
    %v918 = vpop.f32.mrb[0].mxu0
    %v919 = vadd.f32 0.0, %v918
    %v920 = vpop.f32.mrb[0].mxu0
    %921 = vmatprep.mubr.f32.mxu0 0.0
    %922 = vmatmul.mubr.f32.gmra.mrb[0].mxu0 %v195
    %v923 = vpop.f32.mrb[0].mxu0
    %v924 = vadd.f32 0.0, %v923
    %v925 = vpop.f32.mrb[0].mxu0
    %926 = vdwg.mxu0
    %927 = vmatprep.subr.mxu0 0.0
    %928 = vmatpush1.msra.mxu0 %v821
    %929 = vmatprep.subr.mxu0 0.0
    %930 = vmatpush1.msra.mxu0 0.0
    %931 = vmatprep.subr.mxu0 0.0
    %932 = vmatpush1.msra.mxu0 0.0
    %933 = vmatprep.subr.mxu0 0.0
    %934 = vmatpush1.msra.mxu0 0.0
    %935 = vmatprep.subr.mxu0 0.0
    %936 = vmatpush1.msra.mxu0 0.0
    %937 = vmatprep.subr.mxu0 0.0
    %938 = vmatpush1.msra.mxu0 0.0
    %939 = vmatprep.subr.mxu0 0.0
    %940 = vmatpush1.msra.mxu0 0.0
    %941 = vmatprep.subr.mxu0 0.0
    %942 = vmatpush1.msra.mxu0 0.0
    %943 = vmatprep.subr.mxu0 0.0
    %944 = vmatpush1.msra.mxu0 0.0
    %945 = vmatprep.subr.mxu0 0.0
    %946 = vmatpush1.msra.mxu0 0.0
    %947 = vmatprep.subr.mxu0 0.0
    %948 = vmatpush1.msra.mxu0 0.0
    %949 = vmatprep.subr.mxu0 0.0
    %950 = vmatpush1.msra.mxu0 0.0
    %951 = vmatprep.subr.mxu0 0.0
    %952 = vmatpush1.msra.mxu0 0.0
    %953 = vmatprep.subr.mxu0 0.0
    %954 = vmatpush1.msra.mxu0 0.0
    %955 = vmatprep.subr.mxu0 0.0
    %956 = vmatpush1.msra.mxu0 0.0
    %957 = vmatprep.subr.mxu0 0.0
    %958 = vmatpush1.msra.mxu0 0.0
    %959 = vmatprep.subr.mxu0 0.0
    %960 = vmatpush1.msra.mxu0 0.0
    %961 = vmatprep.subr.mxu0 0.0
    %962 = vmatpush1.msra.mxu0 0.0
    %963 = vmatprep.subr.mxu0 0.0
    %964 = vmatpush1.msra.mxu0 0.0
    %965 = vmatprep.subr.mxu0 0.0
    %966 = vmatpush1.msra.mxu0 0.0
    %967 = vmatprep.subr.mxu0 0.0
    %968 = vmatpush1.msra.mxu0 0.0
    %969 = vmatprep.subr.mxu0 0.0
    %970 = vmatpush1.msra.mxu0 0.0
    %971 = vmatprep.subr.mxu0 0.0
    %972 = vmatpush1.msra.mxu0 0.0
    %973 = vmatprep.subr.mxu0 0.0
    %974 = vmatpush1.msra.mxu0 0.0
    %975 = vmatprep.subr.mxu0 0.0
    %976 = vmatpush1.msra.mxu0 0.0
    %977 = vmatprep.subr.mxu0 0.0
    %978 = vmatpush1.msra.mxu0 0.0
    %979 = vmatprep.subr.mxu0 0.0
    %980 = vmatpush1.msra.mxu0 0.0
    %981 = vmatprep.subr.mxu0 0.0
    %982 = vmatpush1.msra.mxu0 0.0
    %983 = vmatprep.subr.mxu0 0.0
    %984 = vmatpush1.msra.mxu0 0.0
    %985 = vmatprep.subr.mxu0 0.0
    %986 = vmatpush1.msra.mxu0 0.0
    %987 = vmatprep.subr.mxu0 0.0
    %988 = vmatpush1.msra.mxu0 0.0
    %989 = vmatprep.subr.mxu0 0.0
    %990 = vmatpush1.msra.mxu0 0.0
    %991 = vmatprep.mubr.f32.mxu0 0.0
    %992 = vmatmul.mubr.f32.gmra.mrb[0].mxu0 %v304
    %v993 = vpop.f32.mrb[0].mxu0
    %v994 = vadd.f32 %v889, %v993
    %v995 = vpop.f32.mrb[0].mxu0
    %996 = vmatprep.mubr.f32.mxu0 0.0
    %997 = vmatmul.mubr.f32.gmra.mrb[0].mxu0 %v307
    %v998 = vpop.f32.mrb[0].mxu0
    %v999 = vadd.f32 %v894, %v998
    %v1000 = vpop.f32.mrb[0].mxu0
    %1001 = vmatprep.mubr.f32.mxu0 0.0
    %1002 = vmatmul.mubr.f32.gmra.mrb[0].mxu0 %v310
    %v1003 = vpop.f32.mrb[0].mxu0
    %v1004 = vadd.f32 %v899, %v1003
    %v1005 = vpop.f32.mrb[0].mxu0
    %1006 = vmatprep.mubr.f32.mxu0 0.0
    %1007 = vmatmul.mubr.f32.gmra.mrb[0].mxu0 %v313
    %v1008 = vpop.f32.mrb[0].mxu0
    %v1009 = vadd.f32 %v904, %v1008
    %v1010 = vpop.f32.mrb[0].mxu0
    %1011 = vmatprep.mubr.f32.mxu0 0.0
    %1012 = vmatmul.mubr.f32.gmra.mrb[0].mxu0 %v316
    %v1013 = vpop.f32.mrb[0].mxu0
    %v1014 = vadd.f32 %v909, %v1013
    %v1015 = vpop.f32.mrb[0].mxu0
    %1016 = vmatprep.mubr.f32.mxu0 0.0
    %1017 = vmatmul.mubr.f32.gmra.mrb[0].mxu0 %v319
    %v1018 = vpop.f32.mrb[0].mxu0
    %v1019 = vadd.f32 %v914, %v1018
    %v1020 = vpop.f32.mrb[0].mxu0
    %1021 = vmatprep.mubr.f32.mxu0 0.0
    %1022 = vmatmul.mubr.f32.gmra.mrb[0].mxu0 %v322
    %v1023 = vpop.f32.mrb[0].mxu0
    %v1024 = vadd.f32 %v919, %v1023
    %v1025 = vpop.f32.mrb[0].mxu0
    %1026 = vmatprep.mubr.f32.mxu0 0.0
    %1027 = vmatmul.mubr.f32.gmra.mrb[0].mxu0 %v325
    %v1028 = vpop.f32.mrb[0].mxu0
    %v1029 = vadd.f32 %v924, %v1028
    %v1030 = vpop.f32.mrb[0].mxu0
    %1031 = vdwg.mxu0
    %v1032 = vadd.f32 %v994, %v60
    %v1033 = vadd.f32 %v999, %v65
    %v1034 = vadd.f32 %v1004, %v70
    %v1035 = vadd.f32 %v1009, %v75
    %v1036 = vadd.f32 %v1014, %v80
    %v1037 = vadd.f32 %v1019, %v85
    %v1038 = vadd.f32 %v1024, %v90
    %v1039 = vadd.f32 %v1029, %v95
    %v1040 = vxor.u32 %v1032, 2147483648
    %v1041 = vxor.u32 %v1033, 2147483648
    %v1042 = vmul.f32 %v1040, 1.442695
    %v1043 = vpow.pop %v1042
    %v1044 = vmul.f32 %v1041, 1.442695
    %v1045 = vpow.pop %v1044
    %v1046 = vadd.f32 %v1043, 1.0
    %v1047 = vadd.f32 %v1045, 1.0
    %v1048 = vrcp.pop %v1046
    %v1049 = vmul.f32 1.0, %v1048
    %v1050 = vrcp.pop %v1047
    %v1051 = vmul.f32 1.0, %v1050
    %v1052 = vxor.u32 %v1034, 2147483648
    %v1053 = vxor.u32 %v1035, 2147483648
    %v1054 = vmul.f32 %v1052, 1.442695
    %v1055 = vpow.pop %v1054
    %v1056 = vmul.f32 %v1053, 1.442695
    %v1057 = vpow.pop %v1056
    %v1058 = vadd.f32 %v1055, 1.0
    %v1059 = vadd.f32 %v1057, 1.0
    %v1060 = vrcp.pop %v1058
    %v1061 = vmul.f32 1.0, %v1060
    %v1062 = vrcp.pop %v1059
    %v1063 = vmul.f32 1.0, %v1062
    %v1064 = vtanh.pop %v1036
    %v1065 = vtanh.pop %v1037
    %v1066 = vxor.u32 %v1038, 2147483648
    %v1067 = vxor.u32 %v1039, 2147483648
    %v1068 = vmul.f32 %v1066, 1.442695
    %v1069 = vpow.pop %v1068
    %v1070 = vmul.f32 %v1067, 1.442695
    %v1071 = vpow.pop %v1070
    %v1072 = vadd.f32 %v1069, 1.0
    %v1073 = vadd.f32 %v1071, 1.0
    %v1074 = vrcp.pop %v1072
    %v1075 = vmul.f32 1.0, %v1074
    %v1076 = vrcp.pop %v1073
    %v1077 = vmul.f32 1.0, %v1076
    %v1078 = vmul.f32 %v1061, %v482
    %v1079 = vmul.f32 %v1063, %v483
    %v1080 = vmul.f32 %v1049, %v1064
    %v1081 = vmul.f32 %v1051, %v1065
    %v1082 = vadd.f32 %v1078, %v1080
    %v1083 = vadd.f32 %v1079, %v1081
    %v1084 = vtanh.pop %v1082
    %v1085 = vtanh.pop %v1083
    %v1086 = vmul.f32 %v1075, %v1084
    %v1087 = vmul.f32 %v1077, %v1085
    %1088 = vmatprep.subr.mxu0 0.0
    %1089 = vmatpush1.msra.mxu0 %v816
    %1090 = vmatprep.subr.mxu0 0.0
    %1091 = vmatpush1.msra.mxu0 %v817
    %1092 = vmatprep.subr.mxu0 0.0
    %1093 = vmatpush1.msra.mxu0 0.0
    %1094 = vmatprep.subr.mxu0 0.0
    %1095 = vmatpush1.msra.mxu0 0.0
    %1096 = vmatprep.subr.mxu0 0.0
    %1097 = vmatpush1.msra.mxu0 0.0
    %1098 = vmatprep.subr.mxu0 0.0
    %1099 = vmatpush1.msra.mxu0 0.0
    %1100 = vmatprep.subr.mxu0 0.0
    %1101 = vmatpush1.msra.mxu0 0.0
    %1102 = vmatprep.subr.mxu0 0.0
    %1103 = vmatpush1.msra.mxu0 0.0
    %1104 = vmatprep.subr.mxu0 0.0
    %1105 = vmatpush1.msra.mxu0 0.0
    %1106 = vmatprep.subr.mxu0 0.0
    %1107 = vmatpush1.msra.mxu0 0.0
    %1108 = vmatprep.subr.mxu0 0.0
    %1109 = vmatpush1.msra.mxu0 0.0
    %1110 = vmatprep.subr.mxu0 0.0
    %1111 = vmatpush1.msra.mxu0 0.0
    %1112 = vmatprep.subr.mxu0 0.0
    %1113 = vmatpush1.msra.mxu0 0.0
    %1114 = vmatprep.subr.mxu0 0.0
    %1115 = vmatpush1.msra.mxu0 0.0
    %1116 = vmatprep.subr.mxu0 0.0
    %1117 = vmatpush1.msra.mxu0 0.0
    %1118 = vmatprep.subr.mxu0 0.0
    %1119 = vmatpush1.msra.mxu0 0.0
    %1120 = vmatprep.subr.mxu0 0.0
    %1121 = vmatpush1.msra.mxu0 0.0
    %1122 = vmatprep.subr.mxu0 0.0
    %1123 = vmatpush1.msra.mxu0 0.0
    %1124 = vmatprep.subr.mxu0 0.0
    %1125 = vmatpush1.msra.mxu0 0.0
    %1126 = vmatprep.subr.mxu0 0.0
    %1127 = vmatpush1.msra.mxu0 0.0
    %1128 = vmatprep.subr.mxu0 0.0
    %1129 = vmatpush1.msra.mxu0 0.0
    %1130 = vmatprep.subr.mxu0 0.0
    %1131 = vmatpush1.msra.mxu0 0.0
    %1132 = vmatprep.subr.mxu0 0.0
    %1133 = vmatpush1.msra.mxu0 0.0
    %1134 = vmatprep.subr.mxu0 0.0
    %1135 = vmatpush1.msra.mxu0 0.0
    %1136 = vmatprep.subr.mxu0 0.0
    %1137 = vmatpush1.msra.mxu0 0.0
    %1138 = vmatprep.subr.mxu0 0.0
    %1139 = vmatpush1.msra.mxu0 0.0
    %1140 = vmatprep.subr.mxu0 0.0
    %1141 = vmatpush1.msra.mxu0 0.0
    %1142 = vmatprep.subr.mxu0 0.0
    %1143 = vmatpush1.msra.mxu0 0.0
    %1144 = vmatprep.subr.mxu0 0.0
    %1145 = vmatpush1.msra.mxu0 0.0
    %1146 = vmatprep.subr.mxu0 0.0
    %1147 = vmatpush1.msra.mxu0 0.0
    %1148 = vmatprep.subr.mxu0 0.0
    %1149 = vmatpush1.msra.mxu0 0.0
    %1150 = vmatprep.subr.mxu0 0.0
    %1151 = vmatpush1.msra.mxu0 0.0
    %1152 = vmatprep.mubr.f32.mxu0 0.0
    %1153 = vmatmul.mubr.f32.gmra.mrb[0].mxu0 %v505
    %v1154 = vpop.f32.mrb[0].mxu0
    %v1155 = vadd.f32 0.0, %v1154
    %v1156 = vpop.f32.mrb[0].mxu0
    %1157 = vmatprep.mubr.f32.mxu0 0.0
    %1158 = vmatmul.mubr.f32.gmra.mrb[0].mxu0 %v508
    %v1159 = vpop.f32.mrb[0].mxu0
    %v1160 = vadd.f32 0.0, %v1159
    %v1161 = vpop.f32.mrb[0].mxu0
    %1162 = vmatprep.mubr.f32.mxu0 0.0
    %1163 = vmatmul.mubr.f32.gmra.mrb[0].mxu0 %v511
    %v1164 = vpop.f32.mrb[0].mxu0
    %v1165 = vadd.f32 0.0, %v1164
    %v1166 = vpop.f32.mrb[0].mxu0
    %1167 = vmatprep.mubr.f32.mxu0 0.0
    %1168 = vmatmul.mubr.f32.gmra.mrb[0].mxu0 %v514
    %v1169 = vpop.f32.mrb[0].mxu0
    %v1170 = vadd.f32 0.0, %v1169
    %v1171 = vpop.f32.mrb[0].mxu0
    %1172 = vmatprep.mubr.f32.mxu0 0.0
    %1173 = vmatmul.mubr.f32.gmra.mrb[0].mxu0 %v517
    %v1174 = vpop.f32.mrb[0].mxu0
    %v1175 = vadd.f32 0.0, %v1174
    %v1176 = vpop.f32.mrb[0].mxu0
    %1177 = vmatprep.mubr.f32.mxu0 0.0
    %1178 = vmatmul.mubr.f32.gmra.mrb[0].mxu0 %v520
    %v1179 = vpop.f32.mrb[0].mxu0
    %v1180 = vadd.f32 0.0, %v1179
    %v1181 = vpop.f32.mrb[0].mxu0
    %1182 = vmatprep.mubr.f32.mxu0 0.0
    %1183 = vmatmul.mubr.f32.gmra.mrb[0].mxu0 %v523
    %v1184 = vpop.f32.mrb[0].mxu0
    %v1185 = vadd.f32 0.0, %v1184
    %v1186 = vpop.f32.mrb[0].mxu0
    %1187 = vmatprep.mubr.f32.mxu0 0.0
    %1188 = vmatmul.mubr.f32.gmra.mrb[0].mxu0 %v526
    %v1189 = vpop.f32.mrb[0].mxu0
    %v1190 = vadd.f32 0.0, %v1189
    %v1191 = vpop.f32.mrb[0].mxu0
    %1192 = vdwg.mxu0
    %1193 = vmatprep.subr.mxu0 0.0
    %1194 = vmatpush1.msra.mxu0 %v1086
    %1195 = vmatprep.subr.mxu0 0.0
    %1196 = vmatpush1.msra.mxu0 %v1087
    %1197 = vmatprep.subr.mxu0 0.0
    %1198 = vmatpush1.msra.mxu0 0.0
    %1199 = vmatprep.subr.mxu0 0.0
    %1200 = vmatpush1.msra.mxu0 0.0
    %1201 = vmatprep.subr.mxu0 0.0
    %1202 = vmatpush1.msra.mxu0 0.0
    %1203 = vmatprep.subr.mxu0 0.0
    %1204 = vmatpush1.msra.mxu0 0.0
    %1205 = vmatprep.subr.mxu0 0.0
    %1206 = vmatpush1.msra.mxu0 0.0
    %1207 = vmatprep.subr.mxu0 0.0
    %1208 = vmatpush1.msra.mxu0 0.0
    %1209 = vmatprep.subr.mxu0 0.0
    %1210 = vmatpush1.msra.mxu0 0.0
    %1211 = vmatprep.subr.mxu0 0.0
    %1212 = vmatpush1.msra.mxu0 0.0
    %1213 = vmatprep.subr.mxu0 0.0
    %1214 = vmatpush1.msra.mxu0 0.0
    %1215 = vmatprep.subr.mxu0 0.0
    %1216 = vmatpush1.msra.mxu0 0.0
    %1217 = vmatprep.subr.mxu0 0.0
    %1218 = vmatpush1.msra.mxu0 0.0
    %1219 = vmatprep.subr.mxu0 0.0
    %1220 = vmatpush1.msra.mxu0 0.0
    %1221 = vmatprep.subr.mxu0 0.0
    %1222 = vmatpush1.msra.mxu0 0.0
    %1223 = vmatprep.subr.mxu0 0.0
    %1224 = vmatpush1.msra.mxu0 0.0
    %1225 = vmatprep.subr.mxu0 0.0
    %1226 = vmatpush1.msra.mxu0 0.0
    %1227 = vmatprep.subr.mxu0 0.0
    %1228 = vmatpush1.msra.mxu0 0.0
    %1229 = vmatprep.subr.mxu0 0.0
    %1230 = vmatpush1.msra.mxu0 0.0
    %1231 = vmatprep.subr.mxu0 0.0
    %1232 = vmatpush1.msra.mxu0 0.0
    %1233 = vmatprep.subr.mxu0 0.0
    %1234 = vmatpush1.msra.mxu0 0.0
    %1235 = vmatprep.subr.mxu0 0.0
    %1236 = vmatpush1.msra.mxu0 0.0
    %1237 = vmatprep.subr.mxu0 0.0
    %1238 = vmatpush1.msra.mxu0 0.0
    %1239 = vmatprep.subr.mxu0 0.0
    %1240 = vmatpush1.msra.mxu0 0.0
    %1241 = vmatprep.subr.mxu0 0.0
    %1242 = vmatpush1.msra.mxu0 0.0
    %1243 = vmatprep.subr.mxu0 0.0
    %1244 = vmatpush1.msra.mxu0 0.0
    %1245 = vmatprep.subr.mxu0 0.0
    %1246 = vmatpush1.msra.mxu0 0.0
    %1247 = vmatprep.subr.mxu0 0.0
    %1248 = vmatpush1.msra.mxu0 0.0
    %1249 = vmatprep.subr.mxu0 0.0
    %1250 = vmatpush1.msra.mxu0 0.0
    %1251 = vmatprep.subr.mxu0 0.0
    %1252 = vmatpush1.msra.mxu0 0.0
    %1253 = vmatprep.subr.mxu0 0.0
    %1254 = vmatpush1.msra.mxu0 0.0
    %1255 = vmatprep.subr.mxu0 0.0
    %1256 = vmatpush1.msra.mxu0 0.0
    %1257 = vmatprep.mubr.f32.mxu0 0.0
    %1258 = vmatmul.mubr.f32.gmra.mrb[0].mxu0 %v634
    %v1259 = vpop.f32.mrb[0].mxu0
    %v1260 = vadd.f32 %v1155, %v1259
    %v1261 = vpop.f32.mrb[0].mxu0
    %1262 = vmatprep.mubr.f32.mxu0 0.0
    %1263 = vmatmul.mubr.f32.gmra.mrb[0].mxu0 %v637
    %v1264 = vpop.f32.mrb[0].mxu0
    %v1265 = vadd.f32 %v1160, %v1264
    %v1266 = vpop.f32.mrb[0].mxu0
    %1267 = vmatprep.mubr.f32.mxu0 0.0
    %1268 = vmatmul.mubr.f32.gmra.mrb[0].mxu0 %v640
    %v1269 = vpop.f32.mrb[0].mxu0
    %v1270 = vadd.f32 %v1165, %v1269
    %v1271 = vpop.f32.mrb[0].mxu0
    %1272 = vmatprep.mubr.f32.mxu0 0.0
    %1273 = vmatmul.mubr.f32.gmra.mrb[0].mxu0 %v643
    %v1274 = vpop.f32.mrb[0].mxu0
    %v1275 = vadd.f32 %v1170, %v1274
    %v1276 = vpop.f32.mrb[0].mxu0
    %1277 = vmatprep.mubr.f32.mxu0 0.0
    %1278 = vmatmul.mubr.f32.gmra.mrb[0].mxu0 %v646
    %v1279 = vpop.f32.mrb[0].mxu0
    %v1280 = vadd.f32 %v1175, %v1279
    %v1281 = vpop.f32.mrb[0].mxu0
    %1282 = vmatprep.mubr.f32.mxu0 0.0
    %1283 = vmatmul.mubr.f32.gmra.mrb[0].mxu0 %v649
    %v1284 = vpop.f32.mrb[0].mxu0
    %v1285 = vadd.f32 %v1180, %v1284
    %v1286 = vpop.f32.mrb[0].mxu0
    %1287 = vmatprep.mubr.f32.mxu0 0.0
    %1288 = vmatmul.mubr.f32.gmra.mrb[0].mxu0 %v652
    %v1289 = vpop.f32.mrb[0].mxu0
    %v1290 = vadd.f32 %v1185, %v1289
    %v1291 = vpop.f32.mrb[0].mxu0
    %1292 = vmatprep.mubr.f32.mxu0 0.0
    %1293 = vmatmul.mubr.f32.gmra.mrb[0].mxu0 %v655
    %v1294 = vpop.f32.mrb[0].mxu0
    %v1295 = vadd.f32 %v1190, %v1294
    %v1296 = vpop.f32.mrb[0].mxu0
    %1297 = vdwg.mxu0
    %v1298 = vadd.f32 %v1260, %v108
    %v1299 = vadd.f32 %v1265, %v113
    %v1300 = vadd.f32 %v1270, %v118
    %v1301 = vadd.f32 %v1275, %v123
    %v1302 = vadd.f32 %v1280, %v128
    %v1303 = vadd.f32 %v1285, %v133
    %v1304 = vadd.f32 %v1290, %v138
    %v1305 = vadd.f32 %v1295, %v143
    %v1306 = vxor.u32 %v1298, 2147483648
    %v1307 = vxor.u32 %v1299, 2147483648
    %v1308 = vmul.f32 %v1306, 1.442695
    %v1309 = vpow.pop %v1308
    %v1310 = vmul.f32 %v1307, 1.442695
    %v1311 = vpow.pop %v1310
    %v1312 = vadd.f32 %v1309, 1.0
    %v1313 = vadd.f32 %v1311, 1.0
    %v1314 = vrcp.pop %v1312
    %v1315 = vmul.f32 1.0, %v1314
    %v1316 = vrcp.pop %v1313
    %v1317 = vmul.f32 1.0, %v1316
    %v1318 = vxor.u32 %v1300, 2147483648
    %v1319 = vxor.u32 %v1301, 2147483648
    %v1320 = vmul.f32 %v1318, 1.442695
    %v1321 = vpow.pop %v1320
    %v1322 = vmul.f32 %v1319, 1.442695
    %v1323 = vpow.pop %v1322
    %v1324 = vadd.f32 %v1321, 1.0
    %v1325 = vadd.f32 %v1323, 1.0
    %v1326 = vrcp.pop %v1324
    %v1327 = vmul.f32 1.0, %v1326
    %v1328 = vrcp.pop %v1325
    %v1329 = vmul.f32 1.0, %v1328
    %v1330 = vtanh.pop %v1302
    %v1331 = vtanh.pop %v1303
    %v1332 = vxor.u32 %v1304, 2147483648
    %v1333 = vxor.u32 %v1305, 2147483648
    %v1334 = vmul.f32 %v1332, 1.442695
    %v1335 = vpow.pop %v1334
    %v1336 = vmul.f32 %v1333, 1.442695
    %v1337 = vpow.pop %v1336
    %v1338 = vadd.f32 %v1335, 1.0
    %v1339 = vadd.f32 %v1337, 1.0
    %v1340 = vrcp.pop %v1338
    %v1341 = vmul.f32 1.0, %v1340
    %v1342 = vrcp.pop %v1339
    %v1343 = vmul.f32 1.0, %v1342
    %v1344 = vmul.f32 %v1327, %v812
    %v1345 = vmul.f32 %v1329, %v813
    %v1346 = vmul.f32 %v1315, %v1330
    %v1347 = vmul.f32 %v1317, %v1331
    %v1348 = vadd.f32 %v1344, %v1346
    %v1349 = vadd.f32 %v1345, %v1347
    %v1350 = vtanh.pop %v1348
    %v1351 = vtanh.pop %v1349
    %v1352 = vmul.f32 %v1341, %v1350
    %v1353 = vmul.f32 %v1343, %v1351
    %v1354 = vadd.f32 %v818, %v1352
    %v1355 = vadd.f32 %v819, %v1353
    %s1356 = scalar_lea.vmem %s0, 16
    %v1357 = vld [vmem:[%s1356] sm:$0xff]
    %1358 = vmatprep.subr.mxu0 0.0
    %1359 = vmatpush1.msra.mxu0 %v1086
    %1360 = vmatprep.subr.mxu0 0.0
    %1361 = vmatpush1.msra.mxu0 %v1087
    %1362 = vmatprep.subr.mxu0 0.0
    %1363 = vmatpush1.msra.mxu0 0.0
    %1364 = vmatprep.subr.mxu0 0.0
    %1365 = vmatpush1.msra.mxu0 0.0
    %1366 = vmatprep.subr.mxu0 0.0
    %1367 = vmatpush1.msra.mxu0 0.0
    %1368 = vmatprep.subr.mxu0 0.0
    %1369 = vmatpush1.msra.mxu0 0.0
    %1370 = vmatprep.subr.mxu0 0.0
    %1371 = vmatpush1.msra.mxu0 0.0
    %1372 = vmatprep.subr.mxu0 0.0
    %1373 = vmatpush1.msra.mxu0 0.0
    %1374 = vmatprep.subr.mxu0 0.0
    %1375 = vmatpush1.msra.mxu0 0.0
    %1376 = vmatprep.subr.mxu0 0.0
    %1377 = vmatpush1.msra.mxu0 0.0
    %1378 = vmatprep.subr.mxu0 0.0
    %1379 = vmatpush1.msra.mxu0 0.0
    %1380 = vmatprep.subr.mxu0 0.0
    %1381 = vmatpush1.msra.mxu0 0.0
    %1382 = vmatprep.subr.mxu0 0.0
    %1383 = vmatpush1.msra.mxu0 0.0
    %1384 = vmatprep.subr.mxu0 0.0
    %1385 = vmatpush1.msra.mxu0 0.0
    %1386 = vmatprep.subr.mxu0 0.0
    %1387 = vmatpush1.msra.mxu0 0.0
    %1388 = vmatprep.subr.mxu0 0.0
    %1389 = vmatpush1.msra.mxu0 0.0
    %1390 = vmatprep.subr.mxu0 0.0
    %1391 = vmatpush1.msra.mxu0 0.0
    %1392 = vmatprep.subr.mxu0 0.0
    %1393 = vmatpush1.msra.mxu0 0.0
    %1394 = vmatprep.subr.mxu0 0.0
    %1395 = vmatpush1.msra.mxu0 0.0
    %1396 = vmatprep.subr.mxu0 0.0
    %1397 = vmatpush1.msra.mxu0 0.0
    %1398 = vmatprep.subr.mxu0 0.0
    %1399 = vmatpush1.msra.mxu0 0.0
    %1400 = vmatprep.subr.mxu0 0.0
    %1401 = vmatpush1.msra.mxu0 0.0
    %1402 = vmatprep.subr.mxu0 0.0
    %1403 = vmatpush1.msra.mxu0 0.0
    %1404 = vmatprep.subr.mxu0 0.0
    %1405 = vmatpush1.msra.mxu0 0.0
    %1406 = vmatprep.subr.mxu0 0.0
    %1407 = vmatpush1.msra.mxu0 0.0
    %1408 = vmatprep.subr.mxu0 0.0
    %1409 = vmatpush1.msra.mxu0 0.0
    %1410 = vmatprep.subr.mxu0 0.0
    %1411 = vmatpush1.msra.mxu0 0.0
    %1412 = vmatprep.subr.mxu0 0.0
    %1413 = vmatpush1.msra.mxu0 0.0
    %1414 = vmatprep.subr.mxu0 0.0
    %1415 = vmatpush1.msra.mxu0 0.0
    %1416 = vmatprep.subr.mxu0 0.0
    %1417 = vmatpush1.msra.mxu0 0.0
    %1418 = vmatprep.subr.mxu0 0.0
    %1419 = vmatpush1.msra.mxu0 0.0
    %1420 = vmatprep.subr.mxu0 0.0
    %1421 = vmatpush1.msra.mxu0 0.0
    %1422 = vmatprep.mubr.f32.mxu0 0.0
    %1423 = vmatmul.mubr.f32.gmra.mrb[0].mxu0 %v174
    %v1424 = vpop.f32.mrb[0].mxu0
    %v1425 = vadd.f32 0.0, %v1424
    %v1426 = vpop.f32.mrb[0].mxu0
    %1427 = vmatprep.mubr.f32.mxu0 0.0
    %1428 = vmatmul.mubr.f32.gmra.mrb[0].mxu0 %v177
    %v1429 = vpop.f32.mrb[0].mxu0
    %v1430 = vadd.f32 0.0, %v1429
    %v1431 = vpop.f32.mrb[0].mxu0
    %1432 = vmatprep.mubr.f32.mxu0 0.0
    %1433 = vmatmul.mubr.f32.gmra.mrb[0].mxu0 %v180
    %v1434 = vpop.f32.mrb[0].mxu0
    %v1435 = vadd.f32 0.0, %v1434
    %v1436 = vpop.f32.mrb[0].mxu0
    %1437 = vmatprep.mubr.f32.mxu0 0.0
    %1438 = vmatmul.mubr.f32.gmra.mrb[0].mxu0 %v183
    %v1439 = vpop.f32.mrb[0].mxu0
    %v1440 = vadd.f32 0.0, %v1439
    %v1441 = vpop.f32.mrb[0].mxu0
    %1442 = vmatprep.mubr.f32.mxu0 0.0
    %1443 = vmatmul.mubr.f32.gmra.mrb[0].mxu0 %v186
    %v1444 = vpop.f32.mrb[0].mxu0
    %v1445 = vadd.f32 0.0, %v1444
    %v1446 = vpop.f32.mrb[0].mxu0
    %1447 = vmatprep.mubr.f32.mxu0 0.0
    %1448 = vmatmul.mubr.f32.gmra.mrb[0].mxu0 %v189
    %v1449 = vpop.f32.mrb[0].mxu0
    %v1450 = vadd.f32 0.0, %v1449
    %v1451 = vpop.f32.mrb[0].mxu0
    %1452 = vmatprep.mubr.f32.mxu0 0.0
    %1453 = vmatmul.mubr.f32.gmra.mrb[0].mxu0 %v192
    %v1454 = vpop.f32.mrb[0].mxu0
    %v1455 = vadd.f32 0.0, %v1454
    %v1456 = vpop.f32.mrb[0].mxu0
    %1457 = vmatprep.mubr.f32.mxu0 0.0
    %1458 = vmatmul.mubr.f32.gmra.mrb[0].mxu0 %v195
    %v1459 = vpop.f32.mrb[0].mxu0
    %v1460 = vadd.f32 0.0, %v1459
    %v1461 = vpop.f32.mrb[0].mxu0
    %1462 = vdwg.mxu0
    %1463 = vmatprep.subr.mxu0 0.0
    %1464 = vmatpush1.msra.mxu0 %v1357
    %1465 = vmatprep.subr.mxu0 0.0
    %1466 = vmatpush1.msra.mxu0 0.0
    %1467 = vmatprep.subr.mxu0 0.0
    %1468 = vmatpush1.msra.mxu0 0.0
    %1469 = vmatprep.subr.mxu0 0.0
    %1470 = vmatpush1.msra.mxu0 0.0
    %1471 = vmatprep.subr.mxu0 0.0
    %1472 = vmatpush1.msra.mxu0 0.0
    %1473 = vmatprep.subr.mxu0 0.0
    %1474 = vmatpush1.msra.mxu0 0.0
    %1475 = vmatprep.subr.mxu0 0.0
    %1476 = vmatpush1.msra.mxu0 0.0
    %1477 = vmatprep.subr.mxu0 0.0
    %1478 = vmatpush1.msra.mxu0 0.0
    %1479 = vmatprep.subr.mxu0 0.0
    %1480 = vmatpush1.msra.mxu0 0.0
    %1481 = vmatprep.subr.mxu0 0.0
    %1482 = vmatpush1.msra.mxu0 0.0
    %1483 = vmatprep.subr.mxu0 0.0
    %1484 = vmatpush1.msra.mxu0 0.0
    %1485 = vmatprep.subr.mxu0 0.0
    %1486 = vmatpush1.msra.mxu0 0.0
    %1487 = vmatprep.subr.mxu0 0.0
    %1488 = vmatpush1.msra.mxu0 0.0
    %1489 = vmatprep.subr.mxu0 0.0
    %1490 = vmatpush1.msra.mxu0 0.0
    %1491 = vmatprep.subr.mxu0 0.0
    %1492 = vmatpush1.msra.mxu0 0.0
    %1493 = vmatprep.subr.mxu0 0.0
    %1494 = vmatpush1.msra.mxu0 0.0
    %1495 = vmatprep.subr.mxu0 0.0
    %1496 = vmatpush1.msra.mxu0 0.0
    %1497 = vmatprep.subr.mxu0 0.0
    %1498 = vmatpush1.msra.mxu0 0.0
    %1499 = vmatprep.subr.mxu0 0.0
    %1500 = vmatpush1.msra.mxu0 0.0
    %1501 = vmatprep.subr.mxu0 0.0
    %1502 = vmatpush1.msra.mxu0 0.0
    %1503 = vmatprep.subr.mxu0 0.0
    %1504 = vmatpush1.msra.mxu0 0.0
    %1505 = vmatprep.subr.mxu0 0.0
    %1506 = vmatpush1.msra.mxu0 0.0
    %1507 = vmatprep.subr.mxu0 0.0
    %1508 = vmatpush1.msra.mxu0 0.0
    %1509 = vmatprep.subr.mxu0 0.0
    %1510 = vmatpush1.msra.mxu0 0.0
    %1511 = vmatprep.subr.mxu0 0.0
    %1512 = vmatpush1.msra.mxu0 0.0
    %1513 = vmatprep.subr.mxu0 0.0
    %1514 = vmatpush1.msra.mxu0 0.0
    %1515 = vmatprep.subr.mxu0 0.0
    %1516 = vmatpush1.msra.mxu0 0.0
    %1517 = vmatprep.subr.mxu0 0.0
    %1518 = vmatpush1.msra.mxu0 0.0
    %1519 = vmatprep.subr.mxu0 0.0
    %1520 = vmatpush1.msra.mxu0 0.0
    %1521 = vmatprep.subr.mxu0 0.0
    %1522 = vmatpush1.msra.mxu0 0.0
    %1523 = vmatprep.subr.mxu0 0.0
    %1524 = vmatpush1.msra.mxu0 0.0
    %1525 = vmatprep.subr.mxu0 0.0
    %1526 = vmatpush1.msra.mxu0 0.0
    %1527 = vmatprep.mubr.f32.mxu0 0.0
    %1528 = vmatmul.mubr.f32.gmra.mrb[0].mxu0 %v304
    %v1529 = vpop.f32.mrb[0].mxu0
    %v1530 = vadd.f32 %v1425, %v1529
    %v1531 = vpop.f32.mrb[0].mxu0
    %1532 = vmatprep.mubr.f32.mxu0 0.0
    %1533 = vmatmul.mubr.f32.gmra.mrb[0].mxu0 %v307
    %v1534 = vpop.f32.mrb[0].mxu0
    %v1535 = vadd.f32 %v1430, %v1534
    %v1536 = vpop.f32.mrb[0].mxu0
    %1537 = vmatprep.mubr.f32.mxu0 0.0
    %1538 = vmatmul.mubr.f32.gmra.mrb[0].mxu0 %v310
    %v1539 = vpop.f32.mrb[0].mxu0
    %v1540 = vadd.f32 %v1435, %v1539
    %v1541 = vpop.f32.mrb[0].mxu0
    %1542 = vmatprep.mubr.f32.mxu0 0.0
    %1543 = vmatmul.mubr.f32.gmra.mrb[0].mxu0 %v313
    %v1544 = vpop.f32.mrb[0].mxu0
    %v1545 = vadd.f32 %v1440, %v1544
    %v1546 = vpop.f32.mrb[0].mxu0
    %1547 = vmatprep.mubr.f32.mxu0 0.0
    %1548 = vmatmul.mubr.f32.gmra.mrb[0].mxu0 %v316
    %v1549 = vpop.f32.mrb[0].mxu0
    %v1550 = vadd.f32 %v1445, %v1549
    %v1551 = vpop.f32.mrb[0].mxu0
    %1552 = vmatprep.mubr.f32.mxu0 0.0
    %1553 = vmatmul.mubr.f32.gmra.mrb[0].mxu0 %v319
    %v1554 = vpop.f32.mrb[0].mxu0
    %v1555 = vadd.f32 %v1450, %v1554
    %v1556 = vpop.f32.mrb[0].mxu0
    %1557 = vmatprep.mubr.f32.mxu0 0.0
    %1558 = vmatmul.mubr.f32.gmra.mrb[0].mxu0 %v322
    %v1559 = vpop.f32.mrb[0].mxu0
    %v1560 = vadd.f32 %v1455, %v1559
    %v1561 = vpop.f32.mrb[0].mxu0
    %1562 = vmatprep.mubr.f32.mxu0 0.0
    %1563 = vmatmul.mubr.f32.gmra.mrb[0].mxu0 %v325
    %v1564 = vpop.f32.mrb[0].mxu0
    %v1565 = vadd.f32 %v1460, %v1564
    %v1566 = vpop.f32.mrb[0].mxu0
    %1567 = vdwg.mxu0
    %v1568 = vadd.f32 %v1530, %v60
    %v1569 = vadd.f32 %v1535, %v65
    %v1570 = vadd.f32 %v1540, %v70
    %v1571 = vadd.f32 %v1545, %v75
    %v1572 = vadd.f32 %v1550, %v80
    %v1573 = vadd.f32 %v1555, %v85
    %v1574 = vadd.f32 %v1560, %v90
    %v1575 = vadd.f32 %v1565, %v95
    %v1576 = vxor.u32 %v1568, 2147483648
    %v1577 = vxor.u32 %v1569, 2147483648
    %v1578 = vmul.f32 %v1576, 1.442695
    %v1579 = vpow.pop %v1578
    %v1580 = vmul.f32 %v1577, 1.442695
    %v1581 = vpow.pop %v1580
    %v1582 = vadd.f32 %v1579, 1.0
    %v1583 = vadd.f32 %v1581, 1.0
    %v1584 = vrcp.pop %v1582
    %v1585 = vmul.f32 1.0, %v1584
    %v1586 = vrcp.pop %v1583
    %v1587 = vmul.f32 1.0, %v1586
    %v1588 = vxor.u32 %v1570, 2147483648
    %v1589 = vxor.u32 %v1571, 2147483648
    %v1590 = vmul.f32 %v1588, 1.442695
    %v1591 = vpow.pop %v1590
    %v1592 = vmul.f32 %v1589, 1.442695
    %v1593 = vpow.pop %v1592
    %v1594 = vadd.f32 %v1591, 1.0
    %v1595 = vadd.f32 %v1593, 1.0
    %v1596 = vrcp.pop %v1594
    %v1597 = vmul.f32 1.0, %v1596
    %v1598 = vrcp.pop %v1595
    %v1599 = vmul.f32 1.0, %v1598
    %v1600 = vtanh.pop %v1572
    %v1601 = vtanh.pop %v1573
    %v1602 = vxor.u32 %v1574, 2147483648
    %v1603 = vxor.u32 %v1575, 2147483648
    %v1604 = vmul.f32 %v1602, 1.442695
    %v1605 = vpow.pop %v1604
    %v1606 = vmul.f32 %v1603, 1.442695
    %v1607 = vpow.pop %v1606
    %v1608 = vadd.f32 %v1605, 1.0
    %v1609 = vadd.f32 %v1607, 1.0
    %v1610 = vrcp.pop %v1608
    %v1611 = vmul.f32 1.0, %v1610
    %v1612 = vrcp.pop %v1609
    %v1613 = vmul.f32 1.0, %v1612
    %v1614 = vmul.f32 %v1597, %v1082
    %v1615 = vmul.f32 %v1599, %v1083
    %v1616 = vmul.f32 %v1585, %v1600
    %v1617 = vmul.f32 %v1587, %v1601
    %v1618 = vadd.f32 %v1614, %v1616
    %v1619 = vadd.f32 %v1615, %v1617
    %v1620 = vtanh.pop %v1618
    %v1621 = vtanh.pop %v1619
    %v1622 = vmul.f32 %v1611, %v1620
    %v1623 = vmul.f32 %v1613, %v1621
    %1624 = vmatprep.subr.mxu0 0.0
    %1625 = vmatpush1.msra.mxu0 %v1352
    %1626 = vmatprep.subr.mxu0 0.0
    %1627 = vmatpush1.msra.mxu0 %v1353
    %1628 = vmatprep.subr.mxu0 0.0
    %1629 = vmatpush1.msra.mxu0 0.0
    %1630 = vmatprep.subr.mxu0 0.0
    %1631 = vmatpush1.msra.mxu0 0.0
    %1632 = vmatprep.subr.mxu0 0.0
    %1633 = vmatpush1.msra.mxu0 0.0
    %1634 = vmatprep.subr.mxu0 0.0
    %1635 = vmatpush1.msra.mxu0 0.0
    %1636 = vmatprep.subr.mxu0 0.0
    %1637 = vmatpush1.msra.mxu0 0.0
    %1638 = vmatprep.subr.mxu0 0.0
    %1639 = vmatpush1.msra.mxu0 0.0
    %1640 = vmatprep.subr.mxu0 0.0
    %1641 = vmatpush1.msra.mxu0 0.0
    %1642 = vmatprep.subr.mxu0 0.0
    %1643 = vmatpush1.msra.mxu0 0.0
    %1644 = vmatprep.subr.mxu0 0.0
    %1645 = vmatpush1.msra.mxu0 0.0
    %1646 = vmatprep.subr.mxu0 0.0
    %1647 = vmatpush1.msra.mxu0 0.0
    %1648 = vmatprep.subr.mxu0 0.0
    %1649 = vmatpush1.msra.mxu0 0.0
    %1650 = vmatprep.subr.mxu0 0.0
    %1651 = vmatpush1.msra.mxu0 0.0
    %1652 = vmatprep.subr.mxu0 0.0
    %1653 = vmatpush1.msra.mxu0 0.0
    %1654 = vmatprep.subr.mxu0 0.0
    %1655 = vmatpush1.msra.mxu0 0.0
    %1656 = vmatprep.subr.mxu0 0.0
    %1657 = vmatpush1.msra.mxu0 0.0
    %1658 = vmatprep.subr.mxu0 0.0
    %1659 = vmatpush1.msra.mxu0 0.0
    %1660 = vmatprep.subr.mxu0 0.0
    %1661 = vmatpush1.msra.mxu0 0.0
    %1662 = vmatprep.subr.mxu0 0.0
    %1663 = vmatpush1.msra.mxu0 0.0
    %1664 = vmatprep.subr.mxu0 0.0
    %1665 = vmatpush1.msra.mxu0 0.0
    %1666 = vmatprep.subr.mxu0 0.0
    %1667 = vmatpush1.msra.mxu0 0.0
    %1668 = vmatprep.subr.mxu0 0.0
    %1669 = vmatpush1.msra.mxu0 0.0
    %1670 = vmatprep.subr.mxu0 0.0
    %1671 = vmatpush1.msra.mxu0 0.0
    %1672 = vmatprep.subr.mxu0 0.0
    %1673 = vmatpush1.msra.mxu0 0.0
    %1674 = vmatprep.subr.mxu0 0.0
    %1675 = vmatpush1.msra.mxu0 0.0
    %1676 = vmatprep.subr.mxu0 0.0
    %1677 = vmatpush1.msra.mxu0 0.0
    %1678 = vmatprep.subr.mxu0 0.0
    %1679 = vmatpush1.msra.mxu0 0.0
    %1680 = vmatprep.subr.mxu0 0.0
    %1681 = vmatpush1.msra.mxu0 0.0
    %1682 = vmatprep.subr.mxu0 0.0
    %1683 = vmatpush1.msra.mxu0 0.0
    %1684 = vmatprep.subr.mxu0 0.0
    %1685 = vmatpush1.msra.mxu0 0.0
    %1686 = vmatprep.subr.mxu0 0.0
    %1687 = vmatpush1.msra.mxu0 0.0
    %1688 = vmatprep.mubr.f32.mxu0 0.0
    %1689 = vmatmul.mubr.f32.gmra.mrb[0].mxu0 %v505
    %v1690 = vpop.f32.mrb[0].mxu0
    %v1691 = vadd.f32 0.0, %v1690
    %v1692 = vpop.f32.mrb[0].mxu0
    %1693 = vmatprep.mubr.f32.mxu0 0.0
    %1694 = vmatmul.mubr.f32.gmra.mrb[0].mxu0 %v508
    %v1695 = vpop.f32.mrb[0].mxu0
    %v1696 = vadd.f32 0.0, %v1695
    %v1697 = vpop.f32.mrb[0].mxu0
    %1698 = vmatprep.mubr.f32.mxu0 0.0
    %1699 = vmatmul.mubr.f32.gmra.mrb[0].mxu0 %v511
    %v1700 = vpop.f32.mrb[0].mxu0
    %v1701 = vadd.f32 0.0, %v1700
    %v1702 = vpop.f32.mrb[0].mxu0
    %1703 = vmatprep.mubr.f32.mxu0 0.0
    %1704 = vmatmul.mubr.f32.gmra.mrb[0].mxu0 %v514
    %v1705 = vpop.f32.mrb[0].mxu0
    %v1706 = vadd.f32 0.0, %v1705
    %v1707 = vpop.f32.mrb[0].mxu0
    %1708 = vmatprep.mubr.f32.mxu0 0.0
    %1709 = vmatmul.mubr.f32.gmra.mrb[0].mxu0 %v517
    %v1710 = vpop.f32.mrb[0].mxu0
    %v1711 = vadd.f32 0.0, %v1710
    %v1712 = vpop.f32.mrb[0].mxu0
    %1713 = vmatprep.mubr.f32.mxu0 0.0
    %1714 = vmatmul.mubr.f32.gmra.mrb[0].mxu0 %v520
    %v1715 = vpop.f32.mrb[0].mxu0
    %v1716 = vadd.f32 0.0, %v1715
    %v1717 = vpop.f32.mrb[0].mxu0
    %1718 = vmatprep.mubr.f32.mxu0 0.0
    %1719 = vmatmul.mubr.f32.gmra.mrb[0].mxu0 %v523
    %v1720 = vpop.f32.mrb[0].mxu0
    %v1721 = vadd.f32 0.0, %v1720
    %v1722 = vpop.f32.mrb[0].mxu0
    %1723 = vmatprep.mubr.f32.mxu0 0.0
    %1724 = vmatmul.mubr.f32.gmra.mrb[0].mxu0 %v526
    %v1725 = vpop.f32.mrb[0].mxu0
    %v1726 = vadd.f32 0.0, %v1725
    %v1727 = vpop.f32.mrb[0].mxu0
    %1728 = vdwg.mxu0
    %1729 = vmatprep.subr.mxu0 0.0
    %1730 = vmatpush1.msra.mxu0 %v1622
    %1731 = vmatprep.subr.mxu0 0.0
    %1732 = vmatpush1.msra.mxu0 %v1623
    %1733 = vmatprep.subr.mxu0 0.0
    %1734 = vmatpush1.msra.mxu0 0.0
    %1735 = vmatprep.subr.mxu0 0.0
    %1736 = vmatpush1.msra.mxu0 0.0
    %1737 = vmatprep.subr.mxu0 0.0
    %1738 = vmatpush1.msra.mxu0 0.0
    %1739 = vmatprep.subr.mxu0 0.0
    %1740 = vmatpush1.msra.mxu0 0.0
    %1741 = vmatprep.subr.mxu0 0.0
    %1742 = vmatpush1.msra.mxu0 0.0
    %1743 = vmatprep.subr.mxu0 0.0
    %1744 = vmatpush1.msra.mxu0 0.0
    %1745 = vmatprep.subr.mxu0 0.0
    %1746 = vmatpush1.msra.mxu0 0.0
    %1747 = vmatprep.subr.mxu0 0.0
    %1748 = vmatpush1.msra.mxu0 0.0
    %1749 = vmatprep.subr.mxu0 0.0
    %1750 = vmatpush1.msra.mxu0 0.0
    %1751 = vmatprep.subr.mxu0 0.0
    %1752 = vmatpush1.msra.mxu0 0.0
    %1753 = vmatprep.subr.mxu0 0.0
    %1754 = vmatpush1.msra.mxu0 0.0
    %1755 = vmatprep.subr.mxu0 0.0
    %1756 = vmatpush1.msra.mxu0 0.0
    %1757 = vmatprep.subr.mxu0 0.0
    %1758 = vmatpush1.msra.mxu0 0.0
    %1759 = vmatprep.subr.mxu0 0.0
    %1760 = vmatpush1.msra.mxu0 0.0
    %1761 = vmatprep.subr.mxu0 0.0
    %1762 = vmatpush1.msra.mxu0 0.0
    %1763 = vmatprep.subr.mxu0 0.0
    %1764 = vmatpush1.msra.mxu0 0.0
    %1765 = vmatprep.subr.mxu0 0.0
    %1766 = vmatpush1.msra.mxu0 0.0
    %1767 = vmatprep.subr.mxu0 0.0
    %1768 = vmatpush1.msra.mxu0 0.0
    %1769 = vmatprep.subr.mxu0 0.0
    %1770 = vmatpush1.msra.mxu0 0.0
    %1771 = vmatprep.subr.mxu0 0.0
    %1772 = vmatpush1.msra.mxu0 0.0
    %1773 = vmatprep.subr.mxu0 0.0
    %1774 = vmatpush1.msra.mxu0 0.0
    %1775 = vmatprep.subr.mxu0 0.0
    %1776 = vmatpush1.msra.mxu0 0.0
    %1777 = vmatprep.subr.mxu0 0.0
    %1778 = vmatpush1.msra.mxu0 0.0
    %1779 = vmatprep.subr.mxu0 0.0
    %1780 = vmatpush1.msra.mxu0 0.0
    %1781 = vmatprep.subr.mxu0 0.0
    %1782 = vmatpush1.msra.mxu0 0.0
    %1783 = vmatprep.subr.mxu0 0.0
    %1784 = vmatpush1.msra.mxu0 0.0
    %1785 = vmatprep.subr.mxu0 0.0
    %1786 = vmatpush1.msra.mxu0 0.0
    %1787 = vmatprep.subr.mxu0 0.0
    %1788 = vmatpush1.msra.mxu0 0.0
    %1789 = vmatprep.subr.mxu0 0.0
    %1790 = vmatpush1.msra.mxu0 0.0
    %1791 = vmatprep.subr.mxu0 0.0
    %1792 = vmatpush1.msra.mxu0 0.0
    %1793 = vmatprep.mubr.f32.mxu0 0.0
    %1794 = vmatmul.mubr.f32.gmra.mrb[0].mxu0 %v634
    %v1795 = vpop.f32.mrb[0].mxu0
    %v1796 = vadd.f32 %v1691, %v1795
    %v1797 = vpop.f32.mrb[0].mxu0
    %1798 = vmatprep.mubr.f32.mxu0 0.0
    %1799 = vmatmul.mubr.f32.gmra.mrb[0].mxu0 %v637
    %v1800 = vpop.f32.mrb[0].mxu0
    %v1801 = vadd.f32 %v1696, %v1800
    %v1802 = vpop.f32.mrb[0].mxu0
    %1803 = vmatprep.mubr.f32.mxu0 0.0
    %1804 = vmatmul.mubr.f32.gmra.mrb[0].mxu0 %v640
    %v1805 = vpop.f32.mrb[0].mxu0
    %v1806 = vadd.f32 %v1701, %v1805
    %v1807 = vpop.f32.mrb[0].mxu0
    %1808 = vmatprep.mubr.f32.mxu0 0.0
    %1809 = vmatmul.mubr.f32.gmra.mrb[0].mxu0 %v643
    %v1810 = vpop.f32.mrb[0].mxu0
    %v1811 = vadd.f32 %v1706, %v1810
    %v1812 = vpop.f32.mrb[0].mxu0
    %1813 = vmatprep.mubr.f32.mxu0 0.0
    %1814 = vmatmul.mubr.f32.gmra.mrb[0].mxu0 %v646
    %v1815 = vpop.f32.mrb[0].mxu0
    %v1816 = vadd.f32 %v1711, %v1815
    %v1817 = vpop.f32.mrb[0].mxu0
    %1818 = vmatprep.mubr.f32.mxu0 0.0
    %1819 = vmatmul.mubr.f32.gmra.mrb[0].mxu0 %v649
    %v1820 = vpop.f32.mrb[0].mxu0
    %v1821 = vadd.f32 %v1716, %v1820
    %v1822 = vpop.f32.mrb[0].mxu0
    %1823 = vmatprep.mubr.f32.mxu0 0.0
    %1824 = vmatmul.mubr.f32.gmra.mrb[0].mxu0 %v652
    %v1825 = vpop.f32.mrb[0].mxu0
    %v1826 = vadd.f32 %v1721, %v1825
    %v1827 = vpop.f32.mrb[0].mxu0
    %1828 = vmatprep.mubr.f32.mxu0 0.0
    %1829 = vmatmul.mubr.f32.gmra.mrb[0].mxu0 %v655
    %v1830 = vpop.f32.mrb[0].mxu0
    %v1831 = vadd.f32 %v1726, %v1830
    %v1832 = vpop.f32.mrb[0].mxu0
    %1833 = vdwg.mxu0
    %v1834 = vadd.f32 %v1796, %v108
    %v1835 = vadd.f32 %v1801, %v113
    %v1836 = vadd.f32 %v1806, %v118
    %v1837 = vadd.f32 %v1811, %v123
    %v1838 = vadd.f32 %v1816, %v128
    %v1839 = vadd.f32 %v1821, %v133
    %v1840 = vadd.f32 %v1826, %v138
    %v1841 = vadd.f32 %v1831, %v143
    %v1842 = vxor.u32 %v1834, 2147483648
    %v1843 = vxor.u32 %v1835, 2147483648
    %v1844 = vmul.f32 %v1842, 1.442695
    %v1845 = vpow.pop %v1844
    %v1846 = vmul.f32 %v1843, 1.442695
    %v1847 = vpow.pop %v1846
    %v1848 = vadd.f32 %v1845, 1.0
    %v1849 = vadd.f32 %v1847, 1.0
    %v1850 = vrcp.pop %v1848
    %v1851 = vmul.f32 1.0, %v1850
    %v1852 = vrcp.pop %v1849
    %v1853 = vmul.f32 1.0, %v1852
    %v1854 = vxor.u32 %v1836, 2147483648
    %v1855 = vxor.u32 %v1837, 2147483648
    %v1856 = vmul.f32 %v1854, 1.442695
    %v1857 = vpow.pop %v1856
    %v1858 = vmul.f32 %v1855, 1.442695
    %v1859 = vpow.pop %v1858
    %v1860 = vadd.f32 %v1857, 1.0
    %v1861 = vadd.f32 %v1859, 1.0
    %v1862 = vrcp.pop %v1860
    %v1863 = vmul.f32 1.0, %v1862
    %v1864 = vrcp.pop %v1861
    %v1865 = vmul.f32 1.0, %v1864
    %v1866 = vtanh.pop %v1838
    %v1867 = vtanh.pop %v1839
    %v1868 = vxor.u32 %v1840, 2147483648
    %v1869 = vxor.u32 %v1841, 2147483648
    %v1870 = vmul.f32 %v1868, 1.442695
    %v1871 = vpow.pop %v1870
    %v1872 = vmul.f32 %v1869, 1.442695
    %v1873 = vpow.pop %v1872
    %v1874 = vadd.f32 %v1871, 1.0
    %v1875 = vadd.f32 %v1873, 1.0
    %v1876 = vrcp.pop %v1874
    %v1877 = vmul.f32 1.0, %v1876
    %v1878 = vrcp.pop %v1875
    %v1879 = vmul.f32 1.0, %v1878
    %v1880 = vmul.f32 %v1863, %v1348
    %v1881 = vmul.f32 %v1865, %v1349
    %v1882 = vmul.f32 %v1851, %v1866
    %v1883 = vmul.f32 %v1853, %v1867
    %v1884 = vadd.f32 %v1880, %v1882
    %v1885 = vadd.f32 %v1881, %v1883
    %v1886 = vtanh.pop %v1884
    %v1887 = vtanh.pop %v1885
    %v1888 = vmul.f32 %v1877, %v1886
    %v1889 = vmul.f32 %v1879, %v1887
    %v1890 = vadd.f32 %v1354, %v1888
    %v1891 = vadd.f32 %v1355, %v1889
    %s1892 = scalar_lea.vmem %s0, 24
    %v1893 = vld [vmem:[%s1892] sm:$0xff]
    %1894 = vmatprep.subr.mxu0 0.0
    %1895 = vmatpush1.msra.mxu0 %v1622
    %1896 = vmatprep.subr.mxu0 0.0
    %1897 = vmatpush1.msra.mxu0 %v1623
    %1898 = vmatprep.subr.mxu0 0.0
    %1899 = vmatpush1.msra.mxu0 0.0
    %1900 = vmatprep.subr.mxu0 0.0
    %1901 = vmatpush1.msra.mxu0 0.0
    %1902 = vmatprep.subr.mxu0 0.0
    %1903 = vmatpush1.msra.mxu0 0.0
    %1904 = vmatprep.subr.mxu0 0.0
    %1905 = vmatpush1.msra.mxu0 0.0
    %1906 = vmatprep.subr.mxu0 0.0
    %1907 = vmatpush1.msra.mxu0 0.0
    %1908 = vmatprep.subr.mxu0 0.0
    %1909 = vmatpush1.msra.mxu0 0.0
    %1910 = vmatprep.subr.mxu0 0.0
    %1911 = vmatpush1.msra.mxu0 0.0
    %1912 = vmatprep.subr.mxu0 0.0
    %1913 = vmatpush1.msra.mxu0 0.0
    %1914 = vmatprep.subr.mxu0 0.0
    %1915 = vmatpush1.msra.mxu0 0.0
    %1916 = vmatprep.subr.mxu0 0.0
    %1917 = vmatpush1.msra.mxu0 0.0
    %1918 = vmatprep.subr.mxu0 0.0
    %1919 = vmatpush1.msra.mxu0 0.0
    %1920 = vmatprep.subr.mxu0 0.0
    %1921 = vmatpush1.msra.mxu0 0.0
    %1922 = vmatprep.subr.mxu0 0.0
    %1923 = vmatpush1.msra.mxu0 0.0
    %1924 = vmatprep.subr.mxu0 0.0
    %1925 = vmatpush1.msra.mxu0 0.0
    %1926 = vmatprep.subr.mxu0 0.0
    %1927 = vmatpush1.msra.mxu0 0.0
    %1928 = vmatprep.subr.mxu0 0.0
    %1929 = vmatpush1.msra.mxu0 0.0
    %1930 = vmatprep.subr.mxu0 0.0
    %1931 = vmatpush1.msra.mxu0 0.0
    %1932 = vmatprep.subr.mxu0 0.0
    %1933 = vmatpush1.msra.mxu0 0.0
    %1934 = vmatprep.subr.mxu0 0.0
    %1935 = vmatpush1.msra.mxu0 0.0
    %1936 = vmatprep.subr.mxu0 0.0
    %1937 = vmatpush1.msra.mxu0 0.0
    %1938 = vmatprep.subr.mxu0 0.0
    %1939 = vmatpush1.msra.mxu0 0.0
    %1940 = vmatprep.subr.mxu0 0.0
    %1941 = vmatpush1.msra.mxu0 0.0
    %1942 = vmatprep.subr.mxu0 0.0
    %1943 = vmatpush1.msra.mxu0 0.0
    %1944 = vmatprep.subr.mxu0 0.0
    %1945 = vmatpush1.msra.mxu0 0.0
    %1946 = vmatprep.subr.mxu0 0.0
    %1947 = vmatpush1.msra.mxu0 0.0
    %1948 = vmatprep.subr.mxu0 0.0
    %1949 = vmatpush1.msra.mxu0 0.0
    %1950 = vmatprep.subr.mxu0 0.0
    %1951 = vmatpush1.msra.mxu0 0.0
    %1952 = vmatprep.subr.mxu0 0.0
    %1953 = vmatpush1.msra.mxu0 0.0
    %1954 = vmatprep.subr.mxu0 0.0
    %1955 = vmatpush1.msra.mxu0 0.0
    %1956 = vmatprep.subr.mxu0 0.0
    %1957 = vmatpush1.msra.mxu0 0.0
    %1958 = vmatprep.mubr.f32.mxu0 0.0
    %1959 = vmatmul.mubr.f32.gmra.mrb[0].mxu0 %v174
    %v1960 = vpop.f32.mrb[0].mxu0
    %v1961 = vadd.f32 0.0, %v1960
    %v1962 = vpop.f32.mrb[0].mxu0
    %1963 = vmatprep.mubr.f32.mxu0 0.0
    %1964 = vmatmul.mubr.f32.gmra.mrb[0].mxu0 %v177
    %v1965 = vpop.f32.mrb[0].mxu0
    %v1966 = vadd.f32 0.0, %v1965
    %v1967 = vpop.f32.mrb[0].mxu0
    %1968 = vmatprep.mubr.f32.mxu0 0.0
    %1969 = vmatmul.mubr.f32.gmra.mrb[0].mxu0 %v180
    %v1970 = vpop.f32.mrb[0].mxu0
    %v1971 = vadd.f32 0.0, %v1970
    %v1972 = vpop.f32.mrb[0].mxu0
    %1973 = vmatprep.mubr.f32.mxu0 0.0
    %1974 = vmatmul.mubr.f32.gmra.mrb[0].mxu0 %v183
    %v1975 = vpop.f32.mrb[0].mxu0
    %v1976 = vadd.f32 0.0, %v1975
    %v1977 = vpop.f32.mrb[0].mxu0
    %1978 = vmatprep.mubr.f32.mxu0 0.0
    %1979 = vmatmul.mubr.f32.gmra.mrb[0].mxu0 %v186
    %v1980 = vpop.f32.mrb[0].mxu0
    %v1981 = vadd.f32 0.0, %v1980
    %v1982 = vpop.f32.mrb[0].mxu0
    %1983 = vmatprep.mubr.f32.mxu0 0.0
    %1984 = vmatmul.mubr.f32.gmra.mrb[0].mxu0 %v189
    %v1985 = vpop.f32.mrb[0].mxu0
    %v1986 = vadd.f32 0.0, %v1985
    %v1987 = vpop.f32.mrb[0].mxu0
    %1988 = vmatprep.mubr.f32.mxu0 0.0
    %1989 = vmatmul.mubr.f32.gmra.mrb[0].mxu0 %v192
    %v1990 = vpop.f32.mrb[0].mxu0
    %v1991 = vadd.f32 0.0, %v1990
    %v1992 = vpop.f32.mrb[0].mxu0
    %1993 = vmatprep.mubr.f32.mxu0 0.0
    %1994 = vmatmul.mubr.f32.gmra.mrb[0].mxu0 %v195
    %v1995 = vpop.f32.mrb[0].mxu0
    %v1996 = vadd.f32 0.0, %v1995
    %v1997 = vpop.f32.mrb[0].mxu0
    %1998 = vdwg.mxu0
    %1999 = vmatprep.subr.mxu0 0.0
    %2000 = vmatpush1.msra.mxu0 %v1893
    %2001 = vmatprep.subr.mxu0 0.0
    %2002 = vmatpush1.msra.mxu0 0.0
    %2003 = vmatprep.subr.mxu0 0.0
    %2004 = vmatpush1.msra.mxu0 0.0
    %2005 = vmatprep.subr.mxu0 0.0
    %2006 = vmatpush1.msra.mxu0 0.0
    %2007 = vmatprep.subr.mxu0 0.0
    %2008 = vmatpush1.msra.mxu0 0.0
    %2009 = vmatprep.subr.mxu0 0.0
    %2010 = vmatpush1.msra.mxu0 0.0
    %2011 = vmatprep.subr.mxu0 0.0
    %2012 = vmatpush1.msra.mxu0 0.0
    %2013 = vmatprep.subr.mxu0 0.0
    %2014 = vmatpush1.msra.mxu0 0.0
    %2015 = vmatprep.subr.mxu0 0.0
    %2016 = vmatpush1.msra.mxu0 0.0
    %2017 = vmatprep.subr.mxu0 0.0
    %2018 = vmatpush1.msra.mxu0 0.0
    %2019 = vmatprep.subr.mxu0 0.0
    %2020 = vmatpush1.msra.mxu0 0.0
    %2021 = vmatprep.subr.mxu0 0.0
    %2022 = vmatpush1.msra.mxu0 0.0
    %2023 = vmatprep.subr.mxu0 0.0
    %2024 = vmatpush1.msra.mxu0 0.0
    %2025 = vmatprep.subr.mxu0 0.0
    %2026 = vmatpush1.msra.mxu0 0.0
    %2027 = vmatprep.subr.mxu0 0.0
    %2028 = vmatpush1.msra.mxu0 0.0
    %2029 = vmatprep.subr.mxu0 0.0
    %2030 = vmatpush1.msra.mxu0 0.0
    %2031 = vmatprep.subr.mxu0 0.0
    %2032 = vmatpush1.msra.mxu0 0.0
    %2033 = vmatprep.subr.mxu0 0.0
    %2034 = vmatpush1.msra.mxu0 0.0
    %2035 = vmatprep.subr.mxu0 0.0
    %2036 = vmatpush1.msra.mxu0 0.0
    %2037 = vmatprep.subr.mxu0 0.0
    %2038 = vmatpush1.msra.mxu0 0.0
    %2039 = vmatprep.subr.mxu0 0.0
    %2040 = vmatpush1.msra.mxu0 0.0
    %2041 = vmatprep.subr.mxu0 0.0
    %2042 = vmatpush1.msra.mxu0 0.0
    %2043 = vmatprep.subr.mxu0 0.0
    %2044 = vmatpush1.msra.mxu0 0.0
    %2045 = vmatprep.subr.mxu0 0.0
    %2046 = vmatpush1.msra.mxu0 0.0
    %2047 = vmatprep.subr.mxu0 0.0
    %2048 = vmatpush1.msra.mxu0 0.0
    %2049 = vmatprep.subr.mxu0 0.0
    %2050 = vmatpush1.msra.mxu0 0.0
    %2051 = vmatprep.subr.mxu0 0.0
    %2052 = vmatpush1.msra.mxu0 0.0
    %2053 = vmatprep.subr.mxu0 0.0
    %2054 = vmatpush1.msra.mxu0 0.0
    %2055 = vmatprep.subr.mxu0 0.0
    %2056 = vmatpush1.msra.mxu0 0.0
    %2057 = vmatprep.subr.mxu0 0.0
    %2058 = vmatpush1.msra.mxu0 0.0
    %2059 = vmatprep.subr.mxu0 0.0
    %2060 = vmatpush1.msra.mxu0 0.0
    %2061 = vmatprep.subr.mxu0 0.0
    %2062 = vmatpush1.msra.mxu0 0.0
    %2063 = vmatprep.mubr.f32.mxu0 0.0
    %2064 = vmatmul.mubr.f32.gmra.mrb[0].mxu0 %v304
    %v2065 = vpop.f32.mrb[0].mxu0
    %v2066 = vadd.f32 %v1961, %v2065
    %v2067 = vpop.f32.mrb[0].mxu0
    %2068 = vmatprep.mubr.f32.mxu0 0.0
    %2069 = vmatmul.mubr.f32.gmra.mrb[0].mxu0 %v307
    %v2070 = vpop.f32.mrb[0].mxu0
    %v2071 = vadd.f32 %v1966, %v2070
    %v2072 = vpop.f32.mrb[0].mxu0
    %2073 = vmatprep.mubr.f32.mxu0 0.0
    %2074 = vmatmul.mubr.f32.gmra.mrb[0].mxu0 %v310
    %v2075 = vpop.f32.mrb[0].mxu0
    %v2076 = vadd.f32 %v1971, %v2075
    %v2077 = vpop.f32.mrb[0].mxu0
    %2078 = vmatprep.mubr.f32.mxu0 0.0
    %2079 = vmatmul.mubr.f32.gmra.mrb[0].mxu0 %v313
    %v2080 = vpop.f32.mrb[0].mxu0
    %v2081 = vadd.f32 %v1976, %v2080
    %v2082 = vpop.f32.mrb[0].mxu0
    %2083 = vmatprep.mubr.f32.mxu0 0.0
    %2084 = vmatmul.mubr.f32.gmra.mrb[0].mxu0 %v316
    %v2085 = vpop.f32.mrb[0].mxu0
    %v2086 = vadd.f32 %v1981, %v2085
    %v2087 = vpop.f32.mrb[0].mxu0
    %2088 = vmatprep.mubr.f32.mxu0 0.0
    %2089 = vmatmul.mubr.f32.gmra.mrb[0].mxu0 %v319
    %v2090 = vpop.f32.mrb[0].mxu0
    %v2091 = vadd.f32 %v1986, %v2090
    %v2092 = vpop.f32.mrb[0].mxu0
    %2093 = vmatprep.mubr.f32.mxu0 0.0
    %2094 = vmatmul.mubr.f32.gmra.mrb[0].mxu0 %v322
    %v2095 = vpop.f32.mrb[0].mxu0
    %v2096 = vadd.f32 %v1991, %v2095
    %v2097 = vpop.f32.mrb[0].mxu0
    %2098 = vmatprep.mubr.f32.mxu0 0.0
    %2099 = vmatmul.mubr.f32.gmra.mrb[0].mxu0 %v325
    %v2100 = vpop.f32.mrb[0].mxu0
    %v2101 = vadd.f32 %v1996, %v2100
    %v2102 = vpop.f32.mrb[0].mxu0
    %2103 = vdwg.mxu0
    %v2104 = vadd.f32 %v2066, %v60
    %v2105 = vadd.f32 %v2071, %v65
    %v2106 = vadd.f32 %v2076, %v70
    %v2107 = vadd.f32 %v2081, %v75
    %v2108 = vadd.f32 %v2086, %v80
    %v2109 = vadd.f32 %v2091, %v85
    %v2110 = vadd.f32 %v2096, %v90
    %v2111 = vadd.f32 %v2101, %v95
    %v2112 = vxor.u32 %v2104, 2147483648
    %v2113 = vxor.u32 %v2105, 2147483648
    %v2114 = vmul.f32 %v2112, 1.442695
    %v2115 = vpow.pop %v2114
    %v2116 = vmul.f32 %v2113, 1.442695
    %v2117 = vpow.pop %v2116
    %v2118 = vadd.f32 %v2115, 1.0
    %v2119 = vadd.f32 %v2117, 1.0
    %v2120 = vrcp.pop %v2118
    %v2121 = vmul.f32 1.0, %v2120
    %v2122 = vrcp.pop %v2119
    %v2123 = vmul.f32 1.0, %v2122
    %v2124 = vxor.u32 %v2106, 2147483648
    %v2125 = vxor.u32 %v2107, 2147483648
    %v2126 = vmul.f32 %v2124, 1.442695
    %v2127 = vpow.pop %v2126
    %v2128 = vmul.f32 %v2125, 1.442695
    %v2129 = vpow.pop %v2128
    %v2130 = vadd.f32 %v2127, 1.0
    %v2131 = vadd.f32 %v2129, 1.0
    %v2132 = vrcp.pop %v2130
    %v2133 = vmul.f32 1.0, %v2132
    %v2134 = vrcp.pop %v2131
    %v2135 = vmul.f32 1.0, %v2134
    %v2136 = vtanh.pop %v2108
    %v2137 = vtanh.pop %v2109
    %v2138 = vxor.u32 %v2110, 2147483648
    %v2139 = vxor.u32 %v2111, 2147483648
    %v2140 = vmul.f32 %v2138, 1.442695
    %v2141 = vpow.pop %v2140
    %v2142 = vmul.f32 %v2139, 1.442695
    %v2143 = vpow.pop %v2142
    %v2144 = vadd.f32 %v2141, 1.0
    %v2145 = vadd.f32 %v2143, 1.0
    %v2146 = vrcp.pop %v2144
    %v2147 = vmul.f32 1.0, %v2146
    %v2148 = vrcp.pop %v2145
    %v2149 = vmul.f32 1.0, %v2148
    %v2150 = vmul.f32 %v2133, %v1618
    %v2151 = vmul.f32 %v2135, %v1619
    %v2152 = vmul.f32 %v2121, %v2136
    %v2153 = vmul.f32 %v2123, %v2137
    %v2154 = vadd.f32 %v2150, %v2152
    %v2155 = vadd.f32 %v2151, %v2153
    %v2156 = vtanh.pop %v2154
    %v2157 = vtanh.pop %v2155
    %v2158 = vmul.f32 %v2147, %v2156
    %v2159 = vmul.f32 %v2149, %v2157
    %2160 = vmatprep.subr.mxu0 0.0
    %2161 = vmatpush1.msra.mxu0 %v1888
    %2162 = vmatprep.subr.mxu0 0.0
    %2163 = vmatpush1.msra.mxu0 %v1889
    %2164 = vmatprep.subr.mxu0 0.0
    %2165 = vmatpush1.msra.mxu0 0.0
    %2166 = vmatprep.subr.mxu0 0.0
    %2167 = vmatpush1.msra.mxu0 0.0
    %2168 = vmatprep.subr.mxu0 0.0
    %2169 = vmatpush1.msra.mxu0 0.0
    %2170 = vmatprep.subr.mxu0 0.0
    %2171 = vmatpush1.msra.mxu0 0.0
    %2172 = vmatprep.subr.mxu0 0.0
    %2173 = vmatpush1.msra.mxu0 0.0
    %2174 = vmatprep.subr.mxu0 0.0
    %2175 = vmatpush1.msra.mxu0 0.0
    %2176 = vmatprep.subr.mxu0 0.0
    %2177 = vmatpush1.msra.mxu0 0.0
    %2178 = vmatprep.subr.mxu0 0.0
    %2179 = vmatpush1.msra.mxu0 0.0
    %2180 = vmatprep.subr.mxu0 0.0
    %2181 = vmatpush1.msra.mxu0 0.0
    %2182 = vmatprep.subr.mxu0 0.0
    %2183 = vmatpush1.msra.mxu0 0.0
    %2184 = vmatprep.subr.mxu0 0.0
    %2185 = vmatpush1.msra.mxu0 0.0
    %2186 = vmatprep.subr.mxu0 0.0
    %2187 = vmatpush1.msra.mxu0 0.0
    %2188 = vmatprep.subr.mxu0 0.0
    %2189 = vmatpush1.msra.mxu0 0.0
    %2190 = vmatprep.subr.mxu0 0.0
    %2191 = vmatpush1.msra.mxu0 0.0
    %2192 = vmatprep.subr.mxu0 0.0
    %2193 = vmatpush1.msra.mxu0 0.0
    %2194 = vmatprep.subr.mxu0 0.0
    %2195 = vmatpush1.msra.mxu0 0.0
    %2196 = vmatprep.subr.mxu0 0.0
    %2197 = vmatpush1.msra.mxu0 0.0
    %2198 = vmatprep.subr.mxu0 0.0
    %2199 = vmatpush1.msra.mxu0 0.0
    %2200 = vmatprep.subr.mxu0 0.0
    %2201 = vmatpush1.msra.mxu0 0.0
    %2202 = vmatprep.subr.mxu0 0.0
    %2203 = vmatpush1.msra.mxu0 0.0
    %2204 = vmatprep.subr.mxu0 0.0
    %2205 = vmatpush1.msra.mxu0 0.0
    %2206 = vmatprep.subr.mxu0 0.0
    %2207 = vmatpush1.msra.mxu0 0.0
    %2208 = vmatprep.subr.mxu0 0.0
    %2209 = vmatpush1.msra.mxu0 0.0
    %2210 = vmatprep.subr.mxu0 0.0
    %2211 = vmatpush1.msra.mxu0 0.0
    %2212 = vmatprep.subr.mxu0 0.0
    %2213 = vmatpush1.msra.mxu0 0.0
    %2214 = vmatprep.subr.mxu0 0.0
    %2215 = vmatpush1.msra.mxu0 0.0
    %2216 = vmatprep.subr.mxu0 0.0
    %2217 = vmatpush1.msra.mxu0 0.0
    %2218 = vmatprep.subr.mxu0 0.0
    %2219 = vmatpush1.msra.mxu0 0.0
    %2220 = vmatprep.subr.mxu0 0.0
    %2221 = vmatpush1.msra.mxu0 0.0
    %2222 = vmatprep.subr.mxu0 0.0
    %2223 = vmatpush1.msra.mxu0 0.0
    %2224 = vmatprep.mubr.f32.mxu0 0.0
    %2225 = vmatmul.mubr.f32.gmra.mrb[0].mxu0 %v505
    %v2226 = vpop.f32.mrb[0].mxu0
    %v2227 = vadd.f32 0.0, %v2226
    %v2228 = vpop.f32.mrb[0].mxu0
    %2229 = vmatprep.mubr.f32.mxu0 0.0
    %2230 = vmatmul.mubr.f32.gmra.mrb[0].mxu0 %v508
    %v2231 = vpop.f32.mrb[0].mxu0
    %v2232 = vadd.f32 0.0, %v2231
    %v2233 = vpop.f32.mrb[0].mxu0
    %2234 = vmatprep.mubr.f32.mxu0 0.0
    %2235 = vmatmul.mubr.f32.gmra.mrb[0].mxu0 %v511
    %v2236 = vpop.f32.mrb[0].mxu0
    %v2237 = vadd.f32 0.0, %v2236
    %v2238 = vpop.f32.mrb[0].mxu0
    %2239 = vmatprep.mubr.f32.mxu0 0.0
    %2240 = vmatmul.mubr.f32.gmra.mrb[0].mxu0 %v514
    %v2241 = vpop.f32.mrb[0].mxu0
    %v2242 = vadd.f32 0.0, %v2241
    %v2243 = vpop.f32.mrb[0].mxu0
    %2244 = vmatprep.mubr.f32.mxu0 0.0
    %2245 = vmatmul.mubr.f32.gmra.mrb[0].mxu0 %v517
    %v2246 = vpop.f32.mrb[0].mxu0
    %v2247 = vadd.f32 0.0, %v2246
    %v2248 = vpop.f32.mrb[0].mxu0
    %2249 = vmatprep.mubr.f32.mxu0 0.0
    %2250 = vmatmul.mubr.f32.gmra.mrb[0].mxu0 %v520
    %v2251 = vpop.f32.mrb[0].mxu0
    %v2252 = vadd.f32 0.0, %v2251
    %v2253 = vpop.f32.mrb[0].mxu0
    %2254 = vmatprep.mubr.f32.mxu0 0.0
    %2255 = vmatmul.mubr.f32.gmra.mrb[0].mxu0 %v523
    %v2256 = vpop.f32.mrb[0].mxu0
    %v2257 = vadd.f32 0.0, %v2256
    %v2258 = vpop.f32.mrb[0].mxu0
    %2259 = vmatprep.mubr.f32.mxu0 0.0
    %2260 = vmatmul.mubr.f32.gmra.mrb[0].mxu0 %v526
    %v2261 = vpop.f32.mrb[0].mxu0
    %v2262 = vadd.f32 0.0, %v2261
    %v2263 = vpop.f32.mrb[0].mxu0
    %2264 = vdwg.mxu0
    %2265 = vmatprep.subr.mxu0 0.0
    %2266 = vmatpush1.msra.mxu0 %v2158
    %2267 = vmatprep.subr.mxu0 0.0
    %2268 = vmatpush1.msra.mxu0 %v2159
    %2269 = vmatprep.subr.mxu0 0.0
    %2270 = vmatpush1.msra.mxu0 0.0
    %2271 = vmatprep.subr.mxu0 0.0
    %2272 = vmatpush1.msra.mxu0 0.0
    %2273 = vmatprep.subr.mxu0 0.0
    %2274 = vmatpush1.msra.mxu0 0.0
    %2275 = vmatprep.subr.mxu0 0.0
    %2276 = vmatpush1.msra.mxu0 0.0
    %2277 = vmatprep.subr.mxu0 0.0
    %2278 = vmatpush1.msra.mxu0 0.0
    %2279 = vmatprep.subr.mxu0 0.0
    %2280 = vmatpush1.msra.mxu0 0.0
    %2281 = vmatprep.subr.mxu0 0.0
    %2282 = vmatpush1.msra.mxu0 0.0
    %2283 = vmatprep.subr.mxu0 0.0
    %2284 = vmatpush1.msra.mxu0 0.0
    %2285 = vmatprep.subr.mxu0 0.0
    %2286 = vmatpush1.msra.mxu0 0.0
    %2287 = vmatprep.subr.mxu0 0.0
    %2288 = vmatpush1.msra.mxu0 0.0
    %2289 = vmatprep.subr.mxu0 0.0
    %2290 = vmatpush1.msra.mxu0 0.0
    %2291 = vmatprep.subr.mxu0 0.0
    %2292 = vmatpush1.msra.mxu0 0.0
    %2293 = vmatprep.subr.mxu0 0.0
    %2294 = vmatpush1.msra.mxu0 0.0
    %2295 = vmatprep.subr.mxu0 0.0
    %2296 = vmatpush1.msra.mxu0 0.0
    %2297 = vmatprep.subr.mxu0 0.0
    %2298 = vmatpush1.msra.mxu0 0.0
    %2299 = vmatprep.subr.mxu0 0.0
    %2300 = vmatpush1.msra.mxu0 0.0
    %2301 = vmatprep.subr.mxu0 0.0
    %2302 = vmatpush1.msra.mxu0 0.0
    %2303 = vmatprep.subr.mxu0 0.0
    %2304 = vmatpush1.msra.mxu0 0.0
    %2305 = vmatprep.subr.mxu0 0.0
    %2306 = vmatpush1.msra.mxu0 0.0
    %2307 = vmatprep.subr.mxu0 0.0
    %2308 = vmatpush1.msra.mxu0 0.0
    %2309 = vmatprep.subr.mxu0 0.0
    %2310 = vmatpush1.msra.mxu0 0.0
    %2311 = vmatprep.subr.mxu0 0.0
    %2312 = vmatpush1.msra.mxu0 0.0
    %2313 = vmatprep.subr.mxu0 0.0
    %2314 = vmatpush1.msra.mxu0 0.0
    %2315 = vmatprep.subr.mxu0 0.0
    %2316 = vmatpush1.msra.mxu0 0.0
    %2317 = vmatprep.subr.mxu0 0.0
    %2318 = vmatpush1.msra.mxu0 0.0
    %2319 = vmatprep.subr.mxu0 0.0
    %2320 = vmatpush1.msra.mxu0 0.0
    %2321 = vmatprep.subr.mxu0 0.0
    %2322 = vmatpush1.msra.mxu0 0.0
    %2323 = vmatprep.subr.mxu0 0.0
    %2324 = vmatpush1.msra.mxu0 0.0
    %2325 = vmatprep.subr.mxu0 0.0
    %2326 = vmatpush1.msra.mxu0 0.0
    %2327 = vmatprep.subr.mxu0 0.0
    %2328 = vmatpush1.msra.mxu0 0.0
    %2329 = vmatprep.mubr.f32.mxu0 0.0
    %2330 = vmatmul.mubr.f32.gmra.mrb[0].mxu0 %v634
    %v2331 = vpop.f32.mrb[0].mxu0
    %v2332 = vadd.f32 %v2227, %v2331
    %v2333 = vpop.f32.mrb[0].mxu0
    %2334 = vmatprep.mubr.f32.mxu0 0.0
    %2335 = vmatmul.mubr.f32.gmra.mrb[0].mxu0 %v637
    %v2336 = vpop.f32.mrb[0].mxu0
    %v2337 = vadd.f32 %v2232, %v2336
    %v2338 = vpop.f32.mrb[0].mxu0
    %2339 = vmatprep.mubr.f32.mxu0 0.0
    %2340 = vmatmul.mubr.f32.gmra.mrb[0].mxu0 %v640
    %v2341 = vpop.f32.mrb[0].mxu0
    %v2342 = vadd.f32 %v2237, %v2341
    %v2343 = vpop.f32.mrb[0].mxu0
    %2344 = vmatprep.mubr.f32.mxu0 0.0
    %2345 = vmatmul.mubr.f32.gmra.mrb[0].mxu0 %v643
    %v2346 = vpop.f32.mrb[0].mxu0
    %v2347 = vadd.f32 %v2242, %v2346
    %v2348 = vpop.f32.mrb[0].mxu0
    %2349 = vmatprep.mubr.f32.mxu0 0.0
    %2350 = vmatmul.mubr.f32.gmra.mrb[0].mxu0 %v646
    %v2351 = vpop.f32.mrb[0].mxu0
    %v2352 = vadd.f32 %v2247, %v2351
    %v2353 = vpop.f32.mrb[0].mxu0
    %2354 = vmatprep.mubr.f32.mxu0 0.0
    %2355 = vmatmul.mubr.f32.gmra.mrb[0].mxu0 %v649
    %v2356 = vpop.f32.mrb[0].mxu0
    %v2357 = vadd.f32 %v2252, %v2356
    %v2358 = vpop.f32.mrb[0].mxu0
    %2359 = vmatprep.mubr.f32.mxu0 0.0
    %2360 = vmatmul.mubr.f32.gmra.mrb[0].mxu0 %v652
    %v2361 = vpop.f32.mrb[0].mxu0
    %v2362 = vadd.f32 %v2257, %v2361
    %v2363 = vpop.f32.mrb[0].mxu0
    %2364 = vmatprep.mubr.f32.mxu0 0.0
    %2365 = vmatmul.mubr.f32.gmra.mrb[0].mxu0 %v655
    %v2366 = vpop.f32.mrb[0].mxu0
    %v2367 = vadd.f32 %v2262, %v2366
    %v2368 = vpop.f32.mrb[0].mxu0
    %2369 = vdwg.mxu0
    %v2370 = vadd.f32 %v2332, %v108
    %v2371 = vadd.f32 %v2337, %v113
    %v2372 = vadd.f32 %v2342, %v118
    %v2373 = vadd.f32 %v2347, %v123
    %v2374 = vadd.f32 %v2352, %v128
    %v2375 = vadd.f32 %v2357, %v133
    %v2376 = vadd.f32 %v2362, %v138
    %v2377 = vadd.f32 %v2367, %v143
    %v2378 = vxor.u32 %v2370, 2147483648
    %v2379 = vxor.u32 %v2371, 2147483648
    %v2380 = vmul.f32 %v2378, 1.442695
    %v2381 = vpow.pop %v2380
    %v2382 = vmul.f32 %v2379, 1.442695
    %v2383 = vpow.pop %v2382
    %v2384 = vadd.f32 %v2381, 1.0
    %v2385 = vadd.f32 %v2383, 1.0
    %v2386 = vrcp.pop %v2384
    %v2387 = vmul.f32 1.0, %v2386
    %v2388 = vrcp.pop %v2385
    %v2389 = vmul.f32 1.0, %v2388
    %v2390 = vxor.u32 %v2372, 2147483648
    %v2391 = vxor.u32 %v2373, 2147483648
    %v2392 = vmul.f32 %v2390, 1.442695
    %v2393 = vpow.pop %v2392
    %v2394 = vmul.f32 %v2391, 1.442695
    %v2395 = vpow.pop %v2394
    %v2396 = vadd.f32 %v2393, 1.0
    %v2397 = vadd.f32 %v2395, 1.0
    %v2398 = vrcp.pop %v2396
    %v2399 = vmul.f32 1.0, %v2398
    %v2400 = vrcp.pop %v2397
    %v2401 = vmul.f32 1.0, %v2400
    %v2402 = vtanh.pop %v2374
    %v2403 = vtanh.pop %v2375
    %v2404 = vxor.u32 %v2376, 2147483648
    %v2405 = vxor.u32 %v2377, 2147483648
    %v2406 = vmul.f32 %v2404, 1.442695
    %v2407 = vpow.pop %v2406
    %v2408 = vmul.f32 %v2405, 1.442695
    %v2409 = vpow.pop %v2408
    %v2410 = vadd.f32 %v2407, 1.0
    %v2411 = vadd.f32 %v2409, 1.0
    %v2412 = vrcp.pop %v2410
    %v2413 = vmul.f32 1.0, %v2412
    %v2414 = vrcp.pop %v2411
    %v2415 = vmul.f32 1.0, %v2414
    %v2416 = vmul.f32 %v2399, %v1884
    %v2417 = vmul.f32 %v2401, %v1885
    %v2418 = vmul.f32 %v2387, %v2402
    %v2419 = vmul.f32 %v2389, %v2403
    %v2420 = vadd.f32 %v2416, %v2418
    %v2421 = vadd.f32 %v2417, %v2419
    %v2422 = vtanh.pop %v2420
    %v2423 = vtanh.pop %v2421
    %v2424 = vmul.f32 %v2413, %v2422
    %v2425 = vmul.f32 %v2415, %v2423
    %v2426 = vadd.f32 %v1890, %v2424
    %v2427 = vadd.f32 %v1891, %v2425
    %s2428 = scalar_lea.vmem %s0, 32
    %v2429 = vld [vmem:[%s2428] sm:$0xff]
    %2430 = vmatprep.subr.mxu0 0.0
    %2431 = vmatpush1.msra.mxu0 %v2158
    %2432 = vmatprep.subr.mxu0 0.0
    %2433 = vmatpush1.msra.mxu0 %v2159
    %2434 = vmatprep.subr.mxu0 0.0
    %2435 = vmatpush1.msra.mxu0 0.0
    %2436 = vmatprep.subr.mxu0 0.0
    %2437 = vmatpush1.msra.mxu0 0.0
    %2438 = vmatprep.subr.mxu0 0.0
    %2439 = vmatpush1.msra.mxu0 0.0
    %2440 = vmatprep.subr.mxu0 0.0
    %2441 = vmatpush1.msra.mxu0 0.0
    %2442 = vmatprep.subr.mxu0 0.0
    %2443 = vmatpush1.msra.mxu0 0.0
    %2444 = vmatprep.subr.mxu0 0.0
    %2445 = vmatpush1.msra.mxu0 0.0
    %2446 = vmatprep.subr.mxu0 0.0
    %2447 = vmatpush1.msra.mxu0 0.0
    %2448 = vmatprep.subr.mxu0 0.0
    %2449 = vmatpush1.msra.mxu0 0.0
    %2450 = vmatprep.subr.mxu0 0.0
    %2451 = vmatpush1.msra.mxu0 0.0
    %2452 = vmatprep.subr.mxu0 0.0
    %2453 = vmatpush1.msra.mxu0 0.0
    %2454 = vmatprep.subr.mxu0 0.0
    %2455 = vmatpush1.msra.mxu0 0.0
    %2456 = vmatprep.subr.mxu0 0.0
    %2457 = vmatpush1.msra.mxu0 0.0
    %2458 = vmatprep.subr.mxu0 0.0
    %2459 = vmatpush1.msra.mxu0 0.0
    %2460 = vmatprep.subr.mxu0 0.0
    %2461 = vmatpush1.msra.mxu0 0.0
    %2462 = vmatprep.subr.mxu0 0.0
    %2463 = vmatpush1.msra.mxu0 0.0
    %2464 = vmatprep.subr.mxu0 0.0
    %2465 = vmatpush1.msra.mxu0 0.0
    %2466 = vmatprep.subr.mxu0 0.0
    %2467 = vmatpush1.msra.mxu0 0.0
    %2468 = vmatprep.subr.mxu0 0.0
    %2469 = vmatpush1.msra.mxu0 0.0
    %2470 = vmatprep.subr.mxu0 0.0
    %2471 = vmatpush1.msra.mxu0 0.0
    %2472 = vmatprep.subr.mxu0 0.0
    %2473 = vmatpush1.msra.mxu0 0.0
    %2474 = vmatprep.subr.mxu0 0.0
    %2475 = vmatpush1.msra.mxu0 0.0
    %2476 = vmatprep.subr.mxu0 0.0
    %2477 = vmatpush1.msra.mxu0 0.0
    %2478 = vmatprep.subr.mxu0 0.0
    %2479 = vmatpush1.msra.mxu0 0.0
    %2480 = vmatprep.subr.mxu0 0.0
    %2481 = vmatpush1.msra.mxu0 0.0
    %2482 = vmatprep.subr.mxu0 0.0
    %2483 = vmatpush1.msra.mxu0 0.0
    %2484 = vmatprep.subr.mxu0 0.0
    %2485 = vmatpush1.msra.mxu0 0.0
    %2486 = vmatprep.subr.mxu0 0.0
    %2487 = vmatpush1.msra.mxu0 0.0
    %2488 = vmatprep.subr.mxu0 0.0
    %2489 = vmatpush1.msra.mxu0 0.0
    %2490 = vmatprep.subr.mxu0 0.0
    %2491 = vmatpush1.msra.mxu0 0.0
    %2492 = vmatprep.subr.mxu0 0.0
    %2493 = vmatpush1.msra.mxu0 0.0
    %2494 = vmatprep.mubr.f32.mxu0 0.0
    %2495 = vmatmul.mubr.f32.gmra.mrb[0].mxu0 %v174
    %v2496 = vpop.f32.mrb[0].mxu0
    %v2497 = vadd.f32 0.0, %v2496
    %v2498 = vpop.f32.mrb[0].mxu0
    %2499 = vmatprep.mubr.f32.mxu0 0.0
    %2500 = vmatmul.mubr.f32.gmra.mrb[0].mxu0 %v177
    %v2501 = vpop.f32.mrb[0].mxu0
    %v2502 = vadd.f32 0.0, %v2501
    %v2503 = vpop.f32.mrb[0].mxu0
    %2504 = vmatprep.mubr.f32.mxu0 0.0
    %2505 = vmatmul.mubr.f32.gmra.mrb[0].mxu0 %v180
    %v2506 = vpop.f32.mrb[0].mxu0
    %v2507 = vadd.f32 0.0, %v2506
    %v2508 = vpop.f32.mrb[0].mxu0
    %2509 = vmatprep.mubr.f32.mxu0 0.0
    %2510 = vmatmul.mubr.f32.gmra.mrb[0].mxu0 %v183
    %v2511 = vpop.f32.mrb[0].mxu0
    %v2512 = vadd.f32 0.0, %v2511
    %v2513 = vpop.f32.mrb[0].mxu0
    %2514 = vmatprep.mubr.f32.mxu0 0.0
    %2515 = vmatmul.mubr.f32.gmra.mrb[0].mxu0 %v186
    %v2516 = vpop.f32.mrb[0].mxu0
    %v2517 = vadd.f32 0.0, %v2516
    %v2518 = vpop.f32.mrb[0].mxu0
    %2519 = vmatprep.mubr.f32.mxu0 0.0
    %2520 = vmatmul.mubr.f32.gmra.mrb[0].mxu0 %v189
    %v2521 = vpop.f32.mrb[0].mxu0
    %v2522 = vadd.f32 0.0, %v2521
    %v2523 = vpop.f32.mrb[0].mxu0
    %2524 = vmatprep.mubr.f32.mxu0 0.0
    %2525 = vmatmul.mubr.f32.gmra.mrb[0].mxu0 %v192
    %v2526 = vpop.f32.mrb[0].mxu0
    %v2527 = vadd.f32 0.0, %v2526
    %v2528 = vpop.f32.mrb[0].mxu0
    %2529 = vmatprep.mubr.f32.mxu0 0.0
    %2530 = vmatmul.mubr.f32.gmra.mrb[0].mxu0 %v195
    %v2531 = vpop.f32.mrb[0].mxu0
    %v2532 = vadd.f32 0.0, %v2531
    %v2533 = vpop.f32.mrb[0].mxu0
    %2534 = vdwg.mxu0
    %2535 = vmatprep.subr.mxu0 0.0
    %2536 = vmatpush1.msra.mxu0 %v2429
    %2537 = vmatprep.subr.mxu0 0.0
    %2538 = vmatpush1.msra.mxu0 0.0
    %2539 = vmatprep.subr.mxu0 0.0
    %2540 = vmatpush1.msra.mxu0 0.0
    %2541 = vmatprep.subr.mxu0 0.0
    %2542 = vmatpush1.msra.mxu0 0.0
    %2543 = vmatprep.subr.mxu0 0.0
    %2544 = vmatpush1.msra.mxu0 0.0
    %2545 = vmatprep.subr.mxu0 0.0
    %2546 = vmatpush1.msra.mxu0 0.0
    %2547 = vmatprep.subr.mxu0 0.0
    %2548 = vmatpush1.msra.mxu0 0.0
    %2549 = vmatprep.subr.mxu0 0.0
    %2550 = vmatpush1.msra.mxu0 0.0
    %2551 = vmatprep.subr.mxu0 0.0
    %2552 = vmatpush1.msra.mxu0 0.0
    %2553 = vmatprep.subr.mxu0 0.0
    %2554 = vmatpush1.msra.mxu0 0.0
    %2555 = vmatprep.subr.mxu0 0.0
    %2556 = vmatpush1.msra.mxu0 0.0
    %2557 = vmatprep.subr.mxu0 0.0
    %2558 = vmatpush1.msra.mxu0 0.0
    %2559 = vmatprep.subr.mxu0 0.0
    %2560 = vmatpush1.msra.mxu0 0.0
    %2561 = vmatprep.subr.mxu0 0.0
    %2562 = vmatpush1.msra.mxu0 0.0
    %2563 = vmatprep.subr.mxu0 0.0
    %2564 = vmatpush1.msra.mxu0 0.0
    %2565 = vmatprep.subr.mxu0 0.0
    %2566 = vmatpush1.msra.mxu0 0.0
    %2567 = vmatprep.subr.mxu0 0.0
    %2568 = vmatpush1.msra.mxu0 0.0
    %2569 = vmatprep.subr.mxu0 0.0
    %2570 = vmatpush1.msra.mxu0 0.0
    %2571 = vmatprep.subr.mxu0 0.0
    %2572 = vmatpush1.msra.mxu0 0.0
    %2573 = vmatprep.subr.mxu0 0.0
    %2574 = vmatpush1.msra.mxu0 0.0
    %2575 = vmatprep.subr.mxu0 0.0
    %2576 = vmatpush1.msra.mxu0 0.0
    %2577 = vmatprep.subr.mxu0 0.0
    %2578 = vmatpush1.msra.mxu0 0.0
    %2579 = vmatprep.subr.mxu0 0.0
    %2580 = vmatpush1.msra.mxu0 0.0
    %2581 = vmatprep.subr.mxu0 0.0
    %2582 = vmatpush1.msra.mxu0 0.0
    %2583 = vmatprep.subr.mxu0 0.0
    %2584 = vmatpush1.msra.mxu0 0.0
    %2585 = vmatprep.subr.mxu0 0.0
    %2586 = vmatpush1.msra.mxu0 0.0
    %2587 = vmatprep.subr.mxu0 0.0
    %2588 = vmatpush1.msra.mxu0 0.0
    %2589 = vmatprep.subr.mxu0 0.0
    %2590 = vmatpush1.msra.mxu0 0.0
    %2591 = vmatprep.subr.mxu0 0.0
    %2592 = vmatpush1.msra.mxu0 0.0
    %2593 = vmatprep.subr.mxu0 0.0
    %2594 = vmatpush1.msra.mxu0 0.0
    %2595 = vmatprep.subr.mxu0 0.0
    %2596 = vmatpush1.msra.mxu0 0.0
    %2597 = vmatprep.subr.mxu0 0.0
    %2598 = vmatpush1.msra.mxu0 0.0
    %2599 = vmatprep.mubr.f32.mxu0 0.0
    %2600 = vmatmul.mubr.f32.gmra.mrb[0].mxu0 %v304
    %v2601 = vpop.f32.mrb[0].mxu0
    %v2602 = vadd.f32 %v2497, %v2601
    %v2603 = vpop.f32.mrb[0].mxu0
    %2604 = vmatprep.mubr.f32.mxu0 0.0
    %2605 = vmatmul.mubr.f32.gmra.mrb[0].mxu0 %v307
    %v2606 = vpop.f32.mrb[0].mxu0
    %v2607 = vadd.f32 %v2502, %v2606
    %v2608 = vpop.f32.mrb[0].mxu0
    %2609 = vmatprep.mubr.f32.mxu0 0.0
    %2610 = vmatmul.mubr.f32.gmra.mrb[0].mxu0 %v310
    %v2611 = vpop.f32.mrb[0].mxu0
    %v2612 = vadd.f32 %v2507, %v2611
    %v2613 = vpop.f32.mrb[0].mxu0
    %2614 = vmatprep.mubr.f32.mxu0 0.0
    %2615 = vmatmul.mubr.f32.gmra.mrb[0].mxu0 %v313
    %v2616 = vpop.f32.mrb[0].mxu0
    %v2617 = vadd.f32 %v2512, %v2616
    %v2618 = vpop.f32.mrb[0].mxu0
    %2619 = vmatprep.mubr.f32.mxu0 0.0
    %2620 = vmatmul.mubr.f32.gmra.mrb[0].mxu0 %v316
    %v2621 = vpop.f32.mrb[0].mxu0
    %v2622 = vadd.f32 %v2517, %v2621
    %v2623 = vpop.f32.mrb[0].mxu0
    %2624 = vmatprep.mubr.f32.mxu0 0.0
    %2625 = vmatmul.mubr.f32.gmra.mrb[0].mxu0 %v319
    %v2626 = vpop.f32.mrb[0].mxu0
    %v2627 = vadd.f32 %v2522, %v2626
    %v2628 = vpop.f32.mrb[0].mxu0
    %2629 = vmatprep.mubr.f32.mxu0 0.0
    %2630 = vmatmul.mubr.f32.gmra.mrb[0].mxu0 %v322
    %v2631 = vpop.f32.mrb[0].mxu0
    %v2632 = vadd.f32 %v2527, %v2631
    %v2633 = vpop.f32.mrb[0].mxu0
    %2634 = vmatprep.mubr.f32.mxu0 0.0
    %2635 = vmatmul.mubr.f32.gmra.mrb[0].mxu0 %v325
    %v2636 = vpop.f32.mrb[0].mxu0
    %v2637 = vadd.f32 %v2532, %v2636
    %v2638 = vpop.f32.mrb[0].mxu0
    %2639 = vdwg.mxu0
    %v2640 = vadd.f32 %v2602, %v60
    %v2641 = vadd.f32 %v2607, %v65
    %v2642 = vadd.f32 %v2612, %v70
    %v2643 = vadd.f32 %v2617, %v75
    %v2644 = vadd.f32 %v2622, %v80
    %v2645 = vadd.f32 %v2627, %v85
    %v2646 = vadd.f32 %v2632, %v90
    %v2647 = vadd.f32 %v2637, %v95
    %v2648 = vxor.u32 %v2640, 2147483648
    %v2649 = vxor.u32 %v2641, 2147483648
    %v2650 = vmul.f32 %v2648, 1.442695
    %v2651 = vpow.pop %v2650
    %v2652 = vmul.f32 %v2649, 1.442695
    %v2653 = vpow.pop %v2652
    %v2654 = vadd.f32 %v2651, 1.0
    %v2655 = vadd.f32 %v2653, 1.0
    %v2656 = vrcp.pop %v2654
    %v2657 = vmul.f32 1.0, %v2656
    %v2658 = vrcp.pop %v2655
    %v2659 = vmul.f32 1.0, %v2658
    %v2660 = vxor.u32 %v2642, 2147483648
    %v2661 = vxor.u32 %v2643, 2147483648
    %v2662 = vmul.f32 %v2660, 1.442695
    %v2663 = vpow.pop %v2662
    %v2664 = vmul.f32 %v2661, 1.442695
    %v2665 = vpow.pop %v2664
    %v2666 = vadd.f32 %v2663, 1.0
    %v2667 = vadd.f32 %v2665, 1.0
    %v2668 = vrcp.pop %v2666
    %v2669 = vmul.f32 1.0, %v2668
    %v2670 = vrcp.pop %v2667
    %v2671 = vmul.f32 1.0, %v2670
    %v2672 = vtanh.pop %v2644
    %v2673 = vtanh.pop %v2645
    %v2674 = vxor.u32 %v2646, 2147483648
    %v2675 = vxor.u32 %v2647, 2147483648
    %v2676 = vmul.f32 %v2674, 1.442695
    %v2677 = vpow.pop %v2676
    %v2678 = vmul.f32 %v2675, 1.442695
    %v2679 = vpow.pop %v2678
    %v2680 = vadd.f32 %v2677, 1.0
    %v2681 = vadd.f32 %v2679, 1.0
    %v2682 = vrcp.pop %v2680
    %v2683 = vmul.f32 1.0, %v2682
    %v2684 = vrcp.pop %v2681
    %v2685 = vmul.f32 1.0, %v2684
    %v2686 = vmul.f32 %v2669, %v2154
    %v2687 = vmul.f32 %v2671, %v2155
    %v2688 = vmul.f32 %v2657, %v2672
    %v2689 = vmul.f32 %v2659, %v2673
    %v2690 = vadd.f32 %v2686, %v2688
    %v2691 = vadd.f32 %v2687, %v2689
    %v2692 = vtanh.pop %v2690
    %v2693 = vtanh.pop %v2691
    %v2694 = vmul.f32 %v2683, %v2692
    %v2695 = vmul.f32 %v2685, %v2693
    %2696 = vmatprep.subr.mxu0 0.0
    %2697 = vmatpush1.msra.mxu0 %v2424
    %2698 = vmatprep.subr.mxu0 0.0
    %2699 = vmatpush1.msra.mxu0 %v2425
    %2700 = vmatprep.subr.mxu0 0.0
    %2701 = vmatpush1.msra.mxu0 0.0
    %2702 = vmatprep.subr.mxu0 0.0
    %2703 = vmatpush1.msra.mxu0 0.0
    %2704 = vmatprep.subr.mxu0 0.0
    %2705 = vmatpush1.msra.mxu0 0.0
    %2706 = vmatprep.subr.mxu0 0.0
    %2707 = vmatpush1.msra.mxu0 0.0
    %2708 = vmatprep.subr.mxu0 0.0
    %2709 = vmatpush1.msra.mxu0 0.0
    %2710 = vmatprep.subr.mxu0 0.0
    %2711 = vmatpush1.msra.mxu0 0.0
    %2712 = vmatprep.subr.mxu0 0.0
    %2713 = vmatpush1.msra.mxu0 0.0
    %2714 = vmatprep.subr.mxu0 0.0
    %2715 = vmatpush1.msra.mxu0 0.0
    %2716 = vmatprep.subr.mxu0 0.0
    %2717 = vmatpush1.msra.mxu0 0.0
    %2718 = vmatprep.subr.mxu0 0.0
    %2719 = vmatpush1.msra.mxu0 0.0
    %2720 = vmatprep.subr.mxu0 0.0
    %2721 = vmatpush1.msra.mxu0 0.0
    %2722 = vmatprep.subr.mxu0 0.0
    %2723 = vmatpush1.msra.mxu0 0.0
    %2724 = vmatprep.subr.mxu0 0.0
    %2725 = vmatpush1.msra.mxu0 0.0
    %2726 = vmatprep.subr.mxu0 0.0
    %2727 = vmatpush1.msra.mxu0 0.0
    %2728 = vmatprep.subr.mxu0 0.0
    %2729 = vmatpush1.msra.mxu0 0.0
    %2730 = vmatprep.subr.mxu0 0.0
    %2731 = vmatpush1.msra.mxu0 0.0
    %2732 = vmatprep.subr.mxu0 0.0
    %2733 = vmatpush1.msra.mxu0 0.0
    %2734 = vmatprep.subr.mxu0 0.0
    %2735 = vmatpush1.msra.mxu0 0.0
    %2736 = vmatprep.subr.mxu0 0.0
    %2737 = vmatpush1.msra.mxu0 0.0
    %2738 = vmatprep.subr.mxu0 0.0
    %2739 = vmatpush1.msra.mxu0 0.0
    %2740 = vmatprep.subr.mxu0 0.0
    %2741 = vmatpush1.msra.mxu0 0.0
    %2742 = vmatprep.subr.mxu0 0.0
    %2743 = vmatpush1.msra.mxu0 0.0
    %2744 = vmatprep.subr.mxu0 0.0
    %2745 = vmatpush1.msra.mxu0 0.0
    %2746 = vmatprep.subr.mxu0 0.0
    %2747 = vmatpush1.msra.mxu0 0.0
    %2748 = vmatprep.subr.mxu0 0.0
    %2749 = vmatpush1.msra.mxu0 0.0
    %2750 = vmatprep.subr.mxu0 0.0
    %2751 = vmatpush1.msra.mxu0 0.0
    %2752 = vmatprep.subr.mxu0 0.0
    %2753 = vmatpush1.msra.mxu0 0.0
    %2754 = vmatprep.subr.mxu0 0.0
    %2755 = vmatpush1.msra.mxu0 0.0
    %2756 = vmatprep.subr.mxu0 0.0
    %2757 = vmatpush1.msra.mxu0 0.0
    %2758 = vmatprep.subr.mxu0 0.0
    %2759 = vmatpush1.msra.mxu0 0.0
    %2760 = vmatprep.mubr.f32.mxu0 0.0
    %2761 = vmatmul.mubr.f32.gmra.mrb[0].mxu0 %v505
    %v2762 = vpop.f32.mrb[0].mxu0
    %v2763 = vadd.f32 0.0, %v2762
    %v2764 = vpop.f32.mrb[0].mxu0
    %2765 = vmatprep.mubr.f32.mxu0 0.0
    %2766 = vmatmul.mubr.f32.gmra.mrb[0].mxu0 %v508
    %v2767 = vpop.f32.mrb[0].mxu0
    %v2768 = vadd.f32 0.0, %v2767
    %v2769 = vpop.f32.mrb[0].mxu0
    %2770 = vmatprep.mubr.f32.mxu0 0.0
    %2771 = vmatmul.mubr.f32.gmra.mrb[0].mxu0 %v511
    %v2772 = vpop.f32.mrb[0].mxu0
    %v2773 = vadd.f32 0.0, %v2772
    %v2774 = vpop.f32.mrb[0].mxu0
    %2775 = vmatprep.mubr.f32.mxu0 0.0
    %2776 = vmatmul.mubr.f32.gmra.mrb[0].mxu0 %v514
    %v2777 = vpop.f32.mrb[0].mxu0
    %v2778 = vadd.f32 0.0, %v2777
    %v2779 = vpop.f32.mrb[0].mxu0
    %2780 = vmatprep.mubr.f32.mxu0 0.0
    %2781 = vmatmul.mubr.f32.gmra.mrb[0].mxu0 %v517
    %v2782 = vpop.f32.mrb[0].mxu0
    %v2783 = vadd.f32 0.0, %v2782
    %v2784 = vpop.f32.mrb[0].mxu0
    %2785 = vmatprep.mubr.f32.mxu0 0.0
    %2786 = vmatmul.mubr.f32.gmra.mrb[0].mxu0 %v520
    %v2787 = vpop.f32.mrb[0].mxu0
    %v2788 = vadd.f32 0.0, %v2787
    %v2789 = vpop.f32.mrb[0].mxu0
    %2790 = vmatprep.mubr.f32.mxu0 0.0
    %2791 = vmatmul.mubr.f32.gmra.mrb[0].mxu0 %v523
    %v2792 = vpop.f32.mrb[0].mxu0
    %v2793 = vadd.f32 0.0, %v2792
    %v2794 = vpop.f32.mrb[0].mxu0
    %2795 = vmatprep.mubr.f32.mxu0 0.0
    %2796 = vmatmul.mubr.f32.gmra.mrb[0].mxu0 %v526
    %v2797 = vpop.f32.mrb[0].mxu0
    %v2798 = vadd.f32 0.0, %v2797
    %v2799 = vpop.f32.mrb[0].mxu0
    %2800 = vdwg.mxu0
    %2801 = vmatprep.subr.mxu0 0.0
    %2802 = vmatpush1.msra.mxu0 %v2694
    %2803 = vmatprep.subr.mxu0 0.0
    %2804 = vmatpush1.msra.mxu0 %v2695
    %2805 = vmatprep.subr.mxu0 0.0
    %2806 = vmatpush1.msra.mxu0 0.0
    %2807 = vmatprep.subr.mxu0 0.0
    %2808 = vmatpush1.msra.mxu0 0.0
    %2809 = vmatprep.subr.mxu0 0.0
    %2810 = vmatpush1.msra.mxu0 0.0
    %2811 = vmatprep.subr.mxu0 0.0
    %2812 = vmatpush1.msra.mxu0 0.0
    %2813 = vmatprep.subr.mxu0 0.0
    %2814 = vmatpush1.msra.mxu0 0.0
    %2815 = vmatprep.subr.mxu0 0.0
    %2816 = vmatpush1.msra.mxu0 0.0
    %2817 = vmatprep.subr.mxu0 0.0
    %2818 = vmatpush1.msra.mxu0 0.0
    %2819 = vmatprep.subr.mxu0 0.0
    %2820 = vmatpush1.msra.mxu0 0.0
    %2821 = vmatprep.subr.mxu0 0.0
    %2822 = vmatpush1.msra.mxu0 0.0
    %2823 = vmatprep.subr.mxu0 0.0
    %2824 = vmatpush1.msra.mxu0 0.0
    %2825 = vmatprep.subr.mxu0 0.0
    %2826 = vmatpush1.msra.mxu0 0.0
    %2827 = vmatprep.subr.mxu0 0.0
    %2828 = vmatpush1.msra.mxu0 0.0
    %2829 = vmatprep.subr.mxu0 0.0
    %2830 = vmatpush1.msra.mxu0 0.0
    %2831 = vmatprep.subr.mxu0 0.0
    %2832 = vmatpush1.msra.mxu0 0.0
    %2833 = vmatprep.subr.mxu0 0.0
    %2834 = vmatpush1.msra.mxu0 0.0
    %2835 = vmatprep.subr.mxu0 0.0
    %2836 = vmatpush1.msra.mxu0 0.0
    %2837 = vmatprep.subr.mxu0 0.0
    %2838 = vmatpush1.msra.mxu0 0.0
    %2839 = vmatprep.subr.mxu0 0.0
    %2840 = vmatpush1.msra.mxu0 0.0
    %2841 = vmatprep.subr.mxu0 0.0
    %2842 = vmatpush1.msra.mxu0 0.0
    %2843 = vmatprep.subr.mxu0 0.0
    %2844 = vmatpush1.msra.mxu0 0.0
    %2845 = vmatprep.subr.mxu0 0.0
    %2846 = vmatpush1.msra.mxu0 0.0
    %2847 = vmatprep.subr.mxu0 0.0
    %2848 = vmatpush1.msra.mxu0 0.0
    %2849 = vmatprep.subr.mxu0 0.0
    %2850 = vmatpush1.msra.mxu0 0.0
    %2851 = vmatprep.subr.mxu0 0.0
    %2852 = vmatpush1.msra.mxu0 0.0
    %2853 = vmatprep.subr.mxu0 0.0
    %2854 = vmatpush1.msra.mxu0 0.0
    %2855 = vmatprep.subr.mxu0 0.0
    %2856 = vmatpush1.msra.mxu0 0.0
    %2857 = vmatprep.subr.mxu0 0.0
    %2858 = vmatpush1.msra.mxu0 0.0
    %2859 = vmatprep.subr.mxu0 0.0
    %2860 = vmatpush1.msra.mxu0 0.0
    %2861 = vmatprep.subr.mxu0 0.0
    %2862 = vmatpush1.msra.mxu0 0.0
    %2863 = vmatprep.subr.mxu0 0.0
    %2864 = vmatpush1.msra.mxu0 0.0
    %2865 = vmatprep.mubr.f32.mxu0 0.0
    %2866 = vmatmul.mubr.f32.gmra.mrb[0].mxu0 %v634
    %v2867 = vpop.f32.mrb[0].mxu0
    %v2868 = vadd.f32 %v2763, %v2867
    %v2869 = vpop.f32.mrb[0].mxu0
    %2870 = vmatprep.mubr.f32.mxu0 0.0
    %2871 = vmatmul.mubr.f32.gmra.mrb[0].mxu0 %v637
    %v2872 = vpop.f32.mrb[0].mxu0
    %v2873 = vadd.f32 %v2768, %v2872
    %v2874 = vpop.f32.mrb[0].mxu0
    %2875 = vmatprep.mubr.f32.mxu0 0.0
    %2876 = vmatmul.mubr.f32.gmra.mrb[0].mxu0 %v640
    %v2877 = vpop.f32.mrb[0].mxu0
    %v2878 = vadd.f32 %v2773, %v2877
    %v2879 = vpop.f32.mrb[0].mxu0
    %2880 = vmatprep.mubr.f32.mxu0 0.0
    %2881 = vmatmul.mubr.f32.gmra.mrb[0].mxu0 %v643
    %v2882 = vpop.f32.mrb[0].mxu0
    %v2883 = vadd.f32 %v2778, %v2882
    %v2884 = vpop.f32.mrb[0].mxu0
    %2885 = vmatprep.mubr.f32.mxu0 0.0
    %2886 = vmatmul.mubr.f32.gmra.mrb[0].mxu0 %v646
    %v2887 = vpop.f32.mrb[0].mxu0
    %v2888 = vadd.f32 %v2783, %v2887
    %v2889 = vpop.f32.mrb[0].mxu0
    %2890 = vmatprep.mubr.f32.mxu0 0.0
    %2891 = vmatmul.mubr.f32.gmra.mrb[0].mxu0 %v649
    %v2892 = vpop.f32.mrb[0].mxu0
    %v2893 = vadd.f32 %v2788, %v2892
    %v2894 = vpop.f32.mrb[0].mxu0
    %2895 = vmatprep.mubr.f32.mxu0 0.0
    %2896 = vmatmul.mubr.f32.gmra.mrb[0].mxu0 %v652
    %v2897 = vpop.f32.mrb[0].mxu0
    %v2898 = vadd.f32 %v2793, %v2897
    %v2899 = vpop.f32.mrb[0].mxu0
    %2900 = vmatprep.mubr.f32.mxu0 0.0
    %2901 = vmatmul.mubr.f32.gmra.mrb[0].mxu0 %v655
    %v2902 = vpop.f32.mrb[0].mxu0
    %v2903 = vadd.f32 %v2798, %v2902
    %v2904 = vpop.f32.mrb[0].mxu0
    %2905 = vdwg.mxu0
    %v2906 = vadd.f32 %v2868, %v108
    %v2907 = vadd.f32 %v2873, %v113
    %v2908 = vadd.f32 %v2878, %v118
    %v2909 = vadd.f32 %v2883, %v123
    %v2910 = vadd.f32 %v2888, %v128
    %v2911 = vadd.f32 %v2893, %v133
    %v2912 = vadd.f32 %v2898, %v138
    %v2913 = vadd.f32 %v2903, %v143
    %v2914 = vxor.u32 %v2906, 2147483648
    %v2915 = vxor.u32 %v2907, 2147483648
    %v2916 = vmul.f32 %v2914, 1.442695
    %v2917 = vpow.pop %v2916
    %v2918 = vmul.f32 %v2915, 1.442695
    %v2919 = vpow.pop %v2918
    %v2920 = vadd.f32 %v2917, 1.0
    %v2921 = vadd.f32 %v2919, 1.0
    %v2922 = vrcp.pop %v2920
    %v2923 = vmul.f32 1.0, %v2922
    %v2924 = vrcp.pop %v2921
    %v2925 = vmul.f32 1.0, %v2924
    %v2926 = vxor.u32 %v2908, 2147483648
    %v2927 = vxor.u32 %v2909, 2147483648
    %v2928 = vmul.f32 %v2926, 1.442695
    %v2929 = vpow.pop %v2928
    %v2930 = vmul.f32 %v2927, 1.442695
    %v2931 = vpow.pop %v2930
    %v2932 = vadd.f32 %v2929, 1.0
    %v2933 = vadd.f32 %v2931, 1.0
    %v2934 = vrcp.pop %v2932
    %v2935 = vmul.f32 1.0, %v2934
    %v2936 = vrcp.pop %v2933
    %v2937 = vmul.f32 1.0, %v2936
    %v2938 = vtanh.pop %v2910
    %v2939 = vtanh.pop %v2911
    %v2940 = vxor.u32 %v2912, 2147483648
    %v2941 = vxor.u32 %v2913, 2147483648
    %v2942 = vmul.f32 %v2940, 1.442695
    %v2943 = vpow.pop %v2942
    %v2944 = vmul.f32 %v2941, 1.442695
    %v2945 = vpow.pop %v2944
    %v2946 = vadd.f32 %v2943, 1.0
    %v2947 = vadd.f32 %v2945, 1.0
    %v2948 = vrcp.pop %v2946
    %v2949 = vmul.f32 1.0, %v2948
    %v2950 = vrcp.pop %v2947
    %v2951 = vmul.f32 1.0, %v2950
    %v2952 = vmul.f32 %v2935, %v2420
    %v2953 = vmul.f32 %v2937, %v2421
    %v2954 = vmul.f32 %v2923, %v2938
    %v2955 = vmul.f32 %v2925, %v2939
    %v2956 = vadd.f32 %v2952, %v2954
    %v2957 = vadd.f32 %v2953, %v2955
    %v2958 = vtanh.pop %v2956
    %v2959 = vtanh.pop %v2957
    %v2960 = vmul.f32 %v2949, %v2958
    %v2961 = vmul.f32 %v2951, %v2959
    %v2962 = vadd.f32 %v2426, %v2960
    %v2963 = vadd.f32 %v2427, %v2961
    %s2964 = scalar_lea.vmem %s0, 40
    %v2965 = vld [vmem:[%s2964] sm:$0xff]
    %2966 = vmatprep.subr.mxu0 0.0
    %2967 = vmatpush1.msra.mxu0 %v2694
    %2968 = vmatprep.subr.mxu0 0.0
    %2969 = vmatpush1.msra.mxu0 %v2695
    %2970 = vmatprep.subr.mxu0 0.0
    %2971 = vmatpush1.msra.mxu0 0.0
    %2972 = vmatprep.subr.mxu0 0.0
    %2973 = vmatpush1.msra.mxu0 0.0
    %2974 = vmatprep.subr.mxu0 0.0
    %2975 = vmatpush1.msra.mxu0 0.0
    %2976 = vmatprep.subr.mxu0 0.0
    %2977 = vmatpush1.msra.mxu0 0.0
    %2978 = vmatprep.subr.mxu0 0.0
    %2979 = vmatpush1.msra.mxu0 0.0
    %2980 = vmatprep.subr.mxu0 0.0
    %2981 = vmatpush1.msra.mxu0 0.0
    %2982 = vmatprep.subr.mxu0 0.0
    %2983 = vmatpush1.msra.mxu0 0.0
    %2984 = vmatprep.subr.mxu0 0.0
    %2985 = vmatpush1.msra.mxu0 0.0
    %2986 = vmatprep.subr.mxu0 0.0
    %2987 = vmatpush1.msra.mxu0 0.0
    %2988 = vmatprep.subr.mxu0 0.0
    %2989 = vmatpush1.msra.mxu0 0.0
    %2990 = vmatprep.subr.mxu0 0.0
    %2991 = vmatpush1.msra.mxu0 0.0
    %2992 = vmatprep.subr.mxu0 0.0
    %2993 = vmatpush1.msra.mxu0 0.0
    %2994 = vmatprep.subr.mxu0 0.0
    %2995 = vmatpush1.msra.mxu0 0.0
    %2996 = vmatprep.subr.mxu0 0.0
    %2997 = vmatpush1.msra.mxu0 0.0
    %2998 = vmatprep.subr.mxu0 0.0
    %2999 = vmatpush1.msra.mxu0 0.0
    %3000 = vmatprep.subr.mxu0 0.0
    %3001 = vmatpush1.msra.mxu0 0.0
    %3002 = vmatprep.subr.mxu0 0.0
    %3003 = vmatpush1.msra.mxu0 0.0
    %3004 = vmatprep.subr.mxu0 0.0
    %3005 = vmatpush1.msra.mxu0 0.0
    %3006 = vmatprep.subr.mxu0 0.0
    %3007 = vmatpush1.msra.mxu0 0.0
    %3008 = vmatprep.subr.mxu0 0.0
    %3009 = vmatpush1.msra.mxu0 0.0
    %3010 = vmatprep.subr.mxu0 0.0
    %3011 = vmatpush1.msra.mxu0 0.0
    %3012 = vmatprep.subr.mxu0 0.0
    %3013 = vmatpush1.msra.mxu0 0.0
    %3014 = vmatprep.subr.mxu0 0.0
    %3015 = vmatpush1.msra.mxu0 0.0
    %3016 = vmatprep.subr.mxu0 0.0
    %3017 = vmatpush1.msra.mxu0 0.0
    %3018 = vmatprep.subr.mxu0 0.0
    %3019 = vmatpush1.msra.mxu0 0.0
    %3020 = vmatprep.subr.mxu0 0.0
    %3021 = vmatpush1.msra.mxu0 0.0
    %3022 = vmatprep.subr.mxu0 0.0
    %3023 = vmatpush1.msra.mxu0 0.0
    %3024 = vmatprep.subr.mxu0 0.0
    %3025 = vmatpush1.msra.mxu0 0.0
    %3026 = vmatprep.subr.mxu0 0.0
    %3027 = vmatpush1.msra.mxu0 0.0
    %3028 = vmatprep.subr.mxu0 0.0
    %3029 = vmatpush1.msra.mxu0 0.0
    %3030 = vmatprep.mubr.f32.mxu0 0.0
    %3031 = vmatmul.mubr.f32.gmra.mrb[0].mxu0 %v174
    %v3032 = vpop.f32.mrb[0].mxu0
    %v3033 = vadd.f32 0.0, %v3032
    %v3034 = vpop.f32.mrb[0].mxu0
    %3035 = vmatprep.mubr.f32.mxu0 0.0
    %3036 = vmatmul.mubr.f32.gmra.mrb[0].mxu0 %v177
    %v3037 = vpop.f32.mrb[0].mxu0
    %v3038 = vadd.f32 0.0, %v3037
    %v3039 = vpop.f32.mrb[0].mxu0
    %3040 = vmatprep.mubr.f32.mxu0 0.0
    %3041 = vmatmul.mubr.f32.gmra.mrb[0].mxu0 %v180
    %v3042 = vpop.f32.mrb[0].mxu0
    %v3043 = vadd.f32 0.0, %v3042
    %v3044 = vpop.f32.mrb[0].mxu0
    %3045 = vmatprep.mubr.f32.mxu0 0.0
    %3046 = vmatmul.mubr.f32.gmra.mrb[0].mxu0 %v183
    %v3047 = vpop.f32.mrb[0].mxu0
    %v3048 = vadd.f32 0.0, %v3047
    %v3049 = vpop.f32.mrb[0].mxu0
    %3050 = vmatprep.mubr.f32.mxu0 0.0
    %3051 = vmatmul.mubr.f32.gmra.mrb[0].mxu0 %v186
    %v3052 = vpop.f32.mrb[0].mxu0
    %v3053 = vadd.f32 0.0, %v3052
    %v3054 = vpop.f32.mrb[0].mxu0
    %3055 = vmatprep.mubr.f32.mxu0 0.0
    %3056 = vmatmul.mubr.f32.gmra.mrb[0].mxu0 %v189
    %v3057 = vpop.f32.mrb[0].mxu0
    %v3058 = vadd.f32 0.0, %v3057
    %v3059 = vpop.f32.mrb[0].mxu0
    %3060 = vmatprep.mubr.f32.mxu0 0.0
    %3061 = vmatmul.mubr.f32.gmra.mrb[0].mxu0 %v192
    %v3062 = vpop.f32.mrb[0].mxu0
    %v3063 = vadd.f32 0.0, %v3062
    %v3064 = vpop.f32.mrb[0].mxu0
    %3065 = vmatprep.mubr.f32.mxu0 0.0
    %3066 = vmatmul.mubr.f32.gmra.mrb[0].mxu0 %v195
    %v3067 = vpop.f32.mrb[0].mxu0
    %v3068 = vadd.f32 0.0, %v3067
    %v3069 = vpop.f32.mrb[0].mxu0
    %3070 = vdwg.mxu0
    %3071 = vmatprep.subr.mxu0 0.0
    %3072 = vmatpush1.msra.mxu0 %v2965
    %3073 = vmatprep.subr.mxu0 0.0
    %3074 = vmatpush1.msra.mxu0 0.0
    %3075 = vmatprep.subr.mxu0 0.0
    %3076 = vmatpush1.msra.mxu0 0.0
    %3077 = vmatprep.subr.mxu0 0.0
    %3078 = vmatpush1.msra.mxu0 0.0
    %3079 = vmatprep.subr.mxu0 0.0
    %3080 = vmatpush1.msra.mxu0 0.0
    %3081 = vmatprep.subr.mxu0 0.0
    %3082 = vmatpush1.msra.mxu0 0.0
    %3083 = vmatprep.subr.mxu0 0.0
    %3084 = vmatpush1.msra.mxu0 0.0
    %3085 = vmatprep.subr.mxu0 0.0
    %3086 = vmatpush1.msra.mxu0 0.0
    %3087 = vmatprep.subr.mxu0 0.0
    %3088 = vmatpush1.msra.mxu0 0.0
    %3089 = vmatprep.subr.mxu0 0.0
    %3090 = vmatpush1.msra.mxu0 0.0
    %3091 = vmatprep.subr.mxu0 0.0
    %3092 = vmatpush1.msra.mxu0 0.0
    %3093 = vmatprep.subr.mxu0 0.0
    %3094 = vmatpush1.msra.mxu0 0.0
    %3095 = vmatprep.subr.mxu0 0.0
    %3096 = vmatpush1.msra.mxu0 0.0
    %3097 = vmatprep.subr.mxu0 0.0
    %3098 = vmatpush1.msra.mxu0 0.0
    %3099 = vmatprep.subr.mxu0 0.0
    %3100 = vmatpush1.msra.mxu0 0.0
    %3101 = vmatprep.subr.mxu0 0.0
    %3102 = vmatpush1.msra.mxu0 0.0
    %3103 = vmatprep.subr.mxu0 0.0
    %3104 = vmatpush1.msra.mxu0 0.0
    %3105 = vmatprep.subr.mxu0 0.0
    %3106 = vmatpush1.msra.mxu0 0.0
    %3107 = vmatprep.subr.mxu0 0.0
    %3108 = vmatpush1.msra.mxu0 0.0
    %3109 = vmatprep.subr.mxu0 0.0
    %3110 = vmatpush1.msra.mxu0 0.0
    %3111 = vmatprep.subr.mxu0 0.0
    %3112 = vmatpush1.msra.mxu0 0.0
    %3113 = vmatprep.subr.mxu0 0.0
    %3114 = vmatpush1.msra.mxu0 0.0
    %3115 = vmatprep.subr.mxu0 0.0
    %3116 = vmatpush1.msra.mxu0 0.0
    %3117 = vmatprep.subr.mxu0 0.0
    %3118 = vmatpush1.msra.mxu0 0.0
    %3119 = vmatprep.subr.mxu0 0.0
    %3120 = vmatpush1.msra.mxu0 0.0
    %3121 = vmatprep.subr.mxu0 0.0
    %3122 = vmatpush1.msra.mxu0 0.0
    %3123 = vmatprep.subr.mxu0 0.0
    %3124 = vmatpush1.msra.mxu0 0.0
    %3125 = vmatprep.subr.mxu0 0.0
    %3126 = vmatpush1.msra.mxu0 0.0
    %3127 = vmatprep.subr.mxu0 0.0
    %3128 = vmatpush1.msra.mxu0 0.0
    %3129 = vmatprep.subr.mxu0 0.0
    %3130 = vmatpush1.msra.mxu0 0.0
    %3131 = vmatprep.subr.mxu0 0.0
    %3132 = vmatpush1.msra.mxu0 0.0
    %3133 = vmatprep.subr.mxu0 0.0
    %3134 = vmatpush1.msra.mxu0 0.0
    %3135 = vmatprep.mubr.f32.mxu0 0.0
    %3136 = vmatmul.mubr.f32.gmra.mrb[0].mxu0 %v304
    %v3137 = vpop.f32.mrb[0].mxu0
    %v3138 = vadd.f32 %v3033, %v3137
    %v3139 = vpop.f32.mrb[0].mxu0
    %3140 = vmatprep.mubr.f32.mxu0 0.0
    %3141 = vmatmul.mubr.f32.gmra.mrb[0].mxu0 %v307
    %v3142 = vpop.f32.mrb[0].mxu0
    %v3143 = vadd.f32 %v3038, %v3142
    %v3144 = vpop.f32.mrb[0].mxu0
    %3145 = vmatprep.mubr.f32.mxu0 0.0
    %3146 = vmatmul.mubr.f32.gmra.mrb[0].mxu0 %v310
    %v3147 = vpop.f32.mrb[0].mxu0
    %v3148 = vadd.f32 %v3043, %v3147
    %v3149 = vpop.f32.mrb[0].mxu0
    %3150 = vmatprep.mubr.f32.mxu0 0.0
    %3151 = vmatmul.mubr.f32.gmra.mrb[0].mxu0 %v313
    %v3152 = vpop.f32.mrb[0].mxu0
    %v3153 = vadd.f32 %v3048, %v3152
    %v3154 = vpop.f32.mrb[0].mxu0
    %3155 = vmatprep.mubr.f32.mxu0 0.0
    %3156 = vmatmul.mubr.f32.gmra.mrb[0].mxu0 %v316
    %v3157 = vpop.f32.mrb[0].mxu0
    %v3158 = vadd.f32 %v3053, %v3157
    %v3159 = vpop.f32.mrb[0].mxu0
    %3160 = vmatprep.mubr.f32.mxu0 0.0
    %3161 = vmatmul.mubr.f32.gmra.mrb[0].mxu0 %v319
    %v3162 = vpop.f32.mrb[0].mxu0
    %v3163 = vadd.f32 %v3058, %v3162
    %v3164 = vpop.f32.mrb[0].mxu0
    %3165 = vmatprep.mubr.f32.mxu0 0.0
    %3166 = vmatmul.mubr.f32.gmra.mrb[0].mxu0 %v322
    %v3167 = vpop.f32.mrb[0].mxu0
    %v3168 = vadd.f32 %v3063, %v3167
    %v3169 = vpop.f32.mrb[0].mxu0
    %3170 = vmatprep.mubr.f32.mxu0 0.0
    %3171 = vmatmul.mubr.f32.gmra.mrb[0].mxu0 %v325
    %v3172 = vpop.f32.mrb[0].mxu0
    %v3173 = vadd.f32 %v3068, %v3172
    %v3174 = vpop.f32.mrb[0].mxu0
    %3175 = vdwg.mxu0
    %v3176 = vadd.f32 %v3138, %v60
    %v3177 = vadd.f32 %v3143, %v65
    %v3178 = vadd.f32 %v3148, %v70
    %v3179 = vadd.f32 %v3153, %v75
    %v3180 = vadd.f32 %v3158, %v80
    %v3181 = vadd.f32 %v3163, %v85
    %v3182 = vadd.f32 %v3168, %v90
    %v3183 = vadd.f32 %v3173, %v95
    %v3184 = vxor.u32 %v3176, 2147483648
    %v3185 = vxor.u32 %v3177, 2147483648
    %v3186 = vmul.f32 %v3184, 1.442695
    %v3187 = vpow.pop %v3186
    %v3188 = vmul.f32 %v3185, 1.442695
    %v3189 = vpow.pop %v3188
    %v3190 = vadd.f32 %v3187, 1.0
    %v3191 = vadd.f32 %v3189, 1.0
    %v3192 = vrcp.pop %v3190
    %v3193 = vmul.f32 1.0, %v3192
    %v3194 = vrcp.pop %v3191
    %v3195 = vmul.f32 1.0, %v3194
    %v3196 = vxor.u32 %v3178, 2147483648
    %v3197 = vxor.u32 %v3179, 2147483648
    %v3198 = vmul.f32 %v3196, 1.442695
    %v3199 = vpow.pop %v3198
    %v3200 = vmul.f32 %v3197, 1.442695
    %v3201 = vpow.pop %v3200
    %v3202 = vadd.f32 %v3199, 1.0
    %v3203 = vadd.f32 %v3201, 1.0
    %v3204 = vrcp.pop %v3202
    %v3205 = vmul.f32 1.0, %v3204
    %v3206 = vrcp.pop %v3203
    %v3207 = vmul.f32 1.0, %v3206
    %v3208 = vtanh.pop %v3180
    %v3209 = vtanh.pop %v3181
    %v3210 = vxor.u32 %v3182, 2147483648
    %v3211 = vxor.u32 %v3183, 2147483648
    %v3212 = vmul.f32 %v3210, 1.442695
    %v3213 = vpow.pop %v3212
    %v3214 = vmul.f32 %v3211, 1.442695
    %v3215 = vpow.pop %v3214
    %v3216 = vadd.f32 %v3213, 1.0
    %v3217 = vadd.f32 %v3215, 1.0
    %v3218 = vrcp.pop %v3216
    %v3219 = vmul.f32 1.0, %v3218
    %v3220 = vrcp.pop %v3217
    %v3221 = vmul.f32 1.0, %v3220
    %v3222 = vmul.f32 %v3205, %v2690
    %v3223 = vmul.f32 %v3207, %v2691
    %v3224 = vmul.f32 %v3193, %v3208
    %v3225 = vmul.f32 %v3195, %v3209
    %v3226 = vadd.f32 %v3222, %v3224
    %v3227 = vadd.f32 %v3223, %v3225
    %v3228 = vtanh.pop %v3226
    %v3229 = vtanh.pop %v3227
    %v3230 = vmul.f32 %v3219, %v3228
    %v3231 = vmul.f32 %v3221, %v3229
    %3232 = vmatprep.subr.mxu0 0.0
    %3233 = vmatpush1.msra.mxu0 %v2960
    %3234 = vmatprep.subr.mxu0 0.0
    %3235 = vmatpush1.msra.mxu0 %v2961
    %3236 = vmatprep.subr.mxu0 0.0
    %3237 = vmatpush1.msra.mxu0 0.0
    %3238 = vmatprep.subr.mxu0 0.0
    %3239 = vmatpush1.msra.mxu0 0.0
    %3240 = vmatprep.subr.mxu0 0.0
    %3241 = vmatpush1.msra.mxu0 0.0
    %3242 = vmatprep.subr.mxu0 0.0
    %3243 = vmatpush1.msra.mxu0 0.0
    %3244 = vmatprep.subr.mxu0 0.0
    %3245 = vmatpush1.msra.mxu0 0.0
    %3246 = vmatprep.subr.mxu0 0.0
    %3247 = vmatpush1.msra.mxu0 0.0
    %3248 = vmatprep.subr.mxu0 0.0
    %3249 = vmatpush1.msra.mxu0 0.0
    %3250 = vmatprep.subr.mxu0 0.0
    %3251 = vmatpush1.msra.mxu0 0.0
    %3252 = vmatprep.subr.mxu0 0.0
    %3253 = vmatpush1.msra.mxu0 0.0
    %3254 = vmatprep.subr.mxu0 0.0
    %3255 = vmatpush1.msra.mxu0 0.0
    %3256 = vmatprep.subr.mxu0 0.0
    %3257 = vmatpush1.msra.mxu0 0.0
    %3258 = vmatprep.subr.mxu0 0.0
    %3259 = vmatpush1.msra.mxu0 0.0
    %3260 = vmatprep.subr.mxu0 0.0
    %3261 = vmatpush1.msra.mxu0 0.0
    %3262 = vmatprep.subr.mxu0 0.0
    %3263 = vmatpush1.msra.mxu0 0.0
    %3264 = vmatprep.subr.mxu0 0.0
    %3265 = vmatpush1.msra.mxu0 0.0
    %3266 = vmatprep.subr.mxu0 0.0
    %3267 = vmatpush1.msra.mxu0 0.0
    %3268 = vmatprep.subr.mxu0 0.0
    %3269 = vmatpush1.msra.mxu0 0.0
    %3270 = vmatprep.subr.mxu0 0.0
    %3271 = vmatpush1.msra.mxu0 0.0
    %3272 = vmatprep.subr.mxu0 0.0
    %3273 = vmatpush1.msra.mxu0 0.0
    %3274 = vmatprep.subr.mxu0 0.0
    %3275 = vmatpush1.msra.mxu0 0.0
    %3276 = vmatprep.subr.mxu0 0.0
    %3277 = vmatpush1.msra.mxu0 0.0
    %3278 = vmatprep.subr.mxu0 0.0
    %3279 = vmatpush1.msra.mxu0 0.0
    %3280 = vmatprep.subr.mxu0 0.0
    %3281 = vmatpush1.msra.mxu0 0.0
    %3282 = vmatprep.subr.mxu0 0.0
    %3283 = vmatpush1.msra.mxu0 0.0
    %3284 = vmatprep.subr.mxu0 0.0
    %3285 = vmatpush1.msra.mxu0 0.0
    %3286 = vmatprep.subr.mxu0 0.0
    %3287 = vmatpush1.msra.mxu0 0.0
    %3288 = vmatprep.subr.mxu0 0.0
    %3289 = vmatpush1.msra.mxu0 0.0
    %3290 = vmatprep.subr.mxu0 0.0
    %3291 = vmatpush1.msra.mxu0 0.0
    %3292 = vmatprep.subr.mxu0 0.0
    %3293 = vmatpush1.msra.mxu0 0.0
    %3294 = vmatprep.subr.mxu0 0.0
    %3295 = vmatpush1.msra.mxu0 0.0
    %3296 = vmatprep.mubr.f32.mxu0 0.0
    %3297 = vmatmul.mubr.f32.gmra.mrb[0].mxu0 %v505
    %v3298 = vpop.f32.mrb[0].mxu0
    %v3299 = vadd.f32 0.0, %v3298
    %v3300 = vpop.f32.mrb[0].mxu0
    %3301 = vmatprep.mubr.f32.mxu0 0.0
    %3302 = vmatmul.mubr.f32.gmra.mrb[0].mxu0 %v508
    %v3303 = vpop.f32.mrb[0].mxu0
    %v3304 = vadd.f32 0.0, %v3303
    %v3305 = vpop.f32.mrb[0].mxu0
    %3306 = vmatprep.mubr.f32.mxu0 0.0
    %3307 = vmatmul.mubr.f32.gmra.mrb[0].mxu0 %v511
    %v3308 = vpop.f32.mrb[0].mxu0
    %v3309 = vadd.f32 0.0, %v3308
    %v3310 = vpop.f32.mrb[0].mxu0
    %3311 = vmatprep.mubr.f32.mxu0 0.0
    %3312 = vmatmul.mubr.f32.gmra.mrb[0].mxu0 %v514
    %v3313 = vpop.f32.mrb[0].mxu0
    %v3314 = vadd.f32 0.0, %v3313
    %v3315 = vpop.f32.mrb[0].mxu0
    %3316 = vmatprep.mubr.f32.mxu0 0.0
    %3317 = vmatmul.mubr.f32.gmra.mrb[0].mxu0 %v517
    %v3318 = vpop.f32.mrb[0].mxu0
    %v3319 = vadd.f32 0.0, %v3318
    %v3320 = vpop.f32.mrb[0].mxu0
    %3321 = vmatprep.mubr.f32.mxu0 0.0
    %3322 = vmatmul.mubr.f32.gmra.mrb[0].mxu0 %v520
    %v3323 = vpop.f32.mrb[0].mxu0
    %v3324 = vadd.f32 0.0, %v3323
    %v3325 = vpop.f32.mrb[0].mxu0
    %3326 = vmatprep.mubr.f32.mxu0 0.0
    %3327 = vmatmul.mubr.f32.gmra.mrb[0].mxu0 %v523
    %v3328 = vpop.f32.mrb[0].mxu0
    %v3329 = vadd.f32 0.0, %v3328
    %v3330 = vpop.f32.mrb[0].mxu0
    %3331 = vmatprep.mubr.f32.mxu0 0.0
    %3332 = vmatmul.mubr.f32.gmra.mrb[0].mxu0 %v526
    %v3333 = vpop.f32.mrb[0].mxu0
    %v3334 = vadd.f32 0.0, %v3333
    %v3335 = vpop.f32.mrb[0].mxu0
    %3336 = vdwg.mxu0
    %3337 = vmatprep.subr.mxu0 0.0
    %3338 = vmatpush1.msra.mxu0 %v3230
    %3339 = vmatprep.subr.mxu0 0.0
    %3340 = vmatpush1.msra.mxu0 %v3231
    %3341 = vmatprep.subr.mxu0 0.0
    %3342 = vmatpush1.msra.mxu0 0.0
    %3343 = vmatprep.subr.mxu0 0.0
    %3344 = vmatpush1.msra.mxu0 0.0
    %3345 = vmatprep.subr.mxu0 0.0
    %3346 = vmatpush1.msra.mxu0 0.0
    %3347 = vmatprep.subr.mxu0 0.0
    %3348 = vmatpush1.msra.mxu0 0.0
    %3349 = vmatprep.subr.mxu0 0.0
    %3350 = vmatpush1.msra.mxu0 0.0
    %3351 = vmatprep.subr.mxu0 0.0
    %3352 = vmatpush1.msra.mxu0 0.0
    %3353 = vmatprep.subr.mxu0 0.0
    %3354 = vmatpush1.msra.mxu0 0.0
    %3355 = vmatprep.subr.mxu0 0.0
    %3356 = vmatpush1.msra.mxu0 0.0
    %3357 = vmatprep.subr.mxu0 0.0
    %3358 = vmatpush1.msra.mxu0 0.0
    %3359 = vmatprep.subr.mxu0 0.0
    %3360 = vmatpush1.msra.mxu0 0.0
    %3361 = vmatprep.subr.mxu0 0.0
    %3362 = vmatpush1.msra.mxu0 0.0
    %3363 = vmatprep.subr.mxu0 0.0
    %3364 = vmatpush1.msra.mxu0 0.0
    %3365 = vmatprep.subr.mxu0 0.0
    %3366 = vmatpush1.msra.mxu0 0.0
    %3367 = vmatprep.subr.mxu0 0.0
    %3368 = vmatpush1.msra.mxu0 0.0
    %3369 = vmatprep.subr.mxu0 0.0
    %3370 = vmatpush1.msra.mxu0 0.0
    %3371 = vmatprep.subr.mxu0 0.0
    %3372 = vmatpush1.msra.mxu0 0.0
    %3373 = vmatprep.subr.mxu0 0.0
    %3374 = vmatpush1.msra.mxu0 0.0
    %3375 = vmatprep.subr.mxu0 0.0
    %3376 = vmatpush1.msra.mxu0 0.0
    %3377 = vmatprep.subr.mxu0 0.0
    %3378 = vmatpush1.msra.mxu0 0.0
    %3379 = vmatprep.subr.mxu0 0.0
    %3380 = vmatpush1.msra.mxu0 0.0
    %3381 = vmatprep.subr.mxu0 0.0
    %3382 = vmatpush1.msra.mxu0 0.0
    %3383 = vmatprep.subr.mxu0 0.0
    %3384 = vmatpush1.msra.mxu0 0.0
    %3385 = vmatprep.subr.mxu0 0.0
    %3386 = vmatpush1.msra.mxu0 0.0
    %3387 = vmatprep.subr.mxu0 0.0
    %3388 = vmatpush1.msra.mxu0 0.0
    %3389 = vmatprep.subr.mxu0 0.0
    %3390 = vmatpush1.msra.mxu0 0.0
    %3391 = vmatprep.subr.mxu0 0.0
    %3392 = vmatpush1.msra.mxu0 0.0
    %3393 = vmatprep.subr.mxu0 0.0
    %3394 = vmatpush1.msra.mxu0 0.0
    %3395 = vmatprep.subr.mxu0 0.0
    %3396 = vmatpush1.msra.mxu0 0.0
    %3397 = vmatprep.subr.mxu0 0.0
    %3398 = vmatpush1.msra.mxu0 0.0
    %3399 = vmatprep.subr.mxu0 0.0
    %3400 = vmatpush1.msra.mxu0 0.0
    %3401 = vmatprep.mubr.f32.mxu0 0.0
    %3402 = vmatmul.mubr.f32.gmra.mrb[0].mxu0 %v634
    %v3403 = vpop.f32.mrb[0].mxu0
    %v3404 = vadd.f32 %v3299, %v3403
    %v3405 = vpop.f32.mrb[0].mxu0
    %3406 = vmatprep.mubr.f32.mxu0 0.0
    %3407 = vmatmul.mubr.f32.gmra.mrb[0].mxu0 %v637
    %v3408 = vpop.f32.mrb[0].mxu0
    %v3409 = vadd.f32 %v3304, %v3408
    %v3410 = vpop.f32.mrb[0].mxu0
    %3411 = vmatprep.mubr.f32.mxu0 0.0
    %3412 = vmatmul.mubr.f32.gmra.mrb[0].mxu0 %v640
    %v3413 = vpop.f32.mrb[0].mxu0
    %v3414 = vadd.f32 %v3309, %v3413
    %v3415 = vpop.f32.mrb[0].mxu0
    %3416 = vmatprep.mubr.f32.mxu0 0.0
    %3417 = vmatmul.mubr.f32.gmra.mrb[0].mxu0 %v643
    %v3418 = vpop.f32.mrb[0].mxu0
    %v3419 = vadd.f32 %v3314, %v3418
    %v3420 = vpop.f32.mrb[0].mxu0
    %3421 = vmatprep.mubr.f32.mxu0 0.0
    %3422 = vmatmul.mubr.f32.gmra.mrb[0].mxu0 %v646
    %v3423 = vpop.f32.mrb[0].mxu0
    %v3424 = vadd.f32 %v3319, %v3423
    %v3425 = vpop.f32.mrb[0].mxu0
    %3426 = vmatprep.mubr.f32.mxu0 0.0
    %3427 = vmatmul.mubr.f32.gmra.mrb[0].mxu0 %v649
    %v3428 = vpop.f32.mrb[0].mxu0
    %v3429 = vadd.f32 %v3324, %v3428
    %v3430 = vpop.f32.mrb[0].mxu0
    %3431 = vmatprep.mubr.f32.mxu0 0.0
    %3432 = vmatmul.mubr.f32.gmra.mrb[0].mxu0 %v652
    %v3433 = vpop.f32.mrb[0].mxu0
    %v3434 = vadd.f32 %v3329, %v3433
    %v3435 = vpop.f32.mrb[0].mxu0
    %3436 = vmatprep.mubr.f32.mxu0 0.0
    %3437 = vmatmul.mubr.f32.gmra.mrb[0].mxu0 %v655
    %v3438 = vpop.f32.mrb[0].mxu0
    %v3439 = vadd.f32 %v3334, %v3438
    %v3440 = vpop.f32.mrb[0].mxu0
    %3441 = vdwg.mxu0
    %v3442 = vadd.f32 %v3404, %v108
    %v3443 = vadd.f32 %v3409, %v113
    %v3444 = vadd.f32 %v3414, %v118
    %v3445 = vadd.f32 %v3419, %v123
    %v3446 = vadd.f32 %v3424, %v128
    %v3447 = vadd.f32 %v3429, %v133
    %v3448 = vadd.f32 %v3434, %v138
    %v3449 = vadd.f32 %v3439, %v143
    %v3450 = vxor.u32 %v3442, 2147483648
    %v3451 = vxor.u32 %v3443, 2147483648
    %v3452 = vmul.f32 %v3450, 1.442695
    %v3453 = vpow.pop %v3452
    %v3454 = vmul.f32 %v3451, 1.442695
    %v3455 = vpow.pop %v3454
    %v3456 = vadd.f32 %v3453, 1.0
    %v3457 = vadd.f32 %v3455, 1.0
    %v3458 = vrcp.pop %v3456
    %v3459 = vmul.f32 1.0, %v3458
    %v3460 = vrcp.pop %v3457
    %v3461 = vmul.f32 1.0, %v3460
    %v3462 = vxor.u32 %v3444, 2147483648
    %v3463 = vxor.u32 %v3445, 2147483648
    %v3464 = vmul.f32 %v3462, 1.442695
    %v3465 = vpow.pop %v3464
    %v3466 = vmul.f32 %v3463, 1.442695
    %v3467 = vpow.pop %v3466
    %v3468 = vadd.f32 %v3465, 1.0
    %v3469 = vadd.f32 %v3467, 1.0
    %v3470 = vrcp.pop %v3468
    %v3471 = vmul.f32 1.0, %v3470
    %v3472 = vrcp.pop %v3469
    %v3473 = vmul.f32 1.0, %v3472
    %v3474 = vtanh.pop %v3446
    %v3475 = vtanh.pop %v3447
    %v3476 = vxor.u32 %v3448, 2147483648
    %v3477 = vxor.u32 %v3449, 2147483648
    %v3478 = vmul.f32 %v3476, 1.442695
    %v3479 = vpow.pop %v3478
    %v3480 = vmul.f32 %v3477, 1.442695
    %v3481 = vpow.pop %v3480
    %v3482 = vadd.f32 %v3479, 1.0
    %v3483 = vadd.f32 %v3481, 1.0
    %v3484 = vrcp.pop %v3482
    %v3485 = vmul.f32 1.0, %v3484
    %v3486 = vrcp.pop %v3483
    %v3487 = vmul.f32 1.0, %v3486
    %v3488 = vmul.f32 %v3471, %v2956
    %v3489 = vmul.f32 %v3473, %v2957
    %v3490 = vmul.f32 %v3459, %v3474
    %v3491 = vmul.f32 %v3461, %v3475
    %v3492 = vadd.f32 %v3488, %v3490
    %v3493 = vadd.f32 %v3489, %v3491
    %v3494 = vtanh.pop %v3492
    %v3495 = vtanh.pop %v3493
    %v3496 = vmul.f32 %v3485, %v3494
    %v3497 = vmul.f32 %v3487, %v3495
    %v3498 = vadd.f32 %v2962, %v3496
    %v3499 = vadd.f32 %v2963, %v3497
    %s3500 = scalar_lea.vmem %s0, 48
    %v3501 = vld [vmem:[%s3500] sm:$0xff]
    %3502 = vmatprep.subr.mxu0 0.0
    %3503 = vmatpush1.msra.mxu0 %v3230
    %3504 = vmatprep.subr.mxu0 0.0
    %3505 = vmatpush1.msra.mxu0 %v3231
    %3506 = vmatprep.subr.mxu0 0.0
    %3507 = vmatpush1.msra.mxu0 0.0
    %3508 = vmatprep.subr.mxu0 0.0
    %3509 = vmatpush1.msra.mxu0 0.0
    %3510 = vmatprep.subr.mxu0 0.0
    %3511 = vmatpush1.msra.mxu0 0.0
    %3512 = vmatprep.subr.mxu0 0.0
    %3513 = vmatpush1.msra.mxu0 0.0
    %3514 = vmatprep.subr.mxu0 0.0
    %3515 = vmatpush1.msra.mxu0 0.0
    %3516 = vmatprep.subr.mxu0 0.0
    %3517 = vmatpush1.msra.mxu0 0.0
    %3518 = vmatprep.subr.mxu0 0.0
    %3519 = vmatpush1.msra.mxu0 0.0
    %3520 = vmatprep.subr.mxu0 0.0
    %3521 = vmatpush1.msra.mxu0 0.0
    %3522 = vmatprep.subr.mxu0 0.0
    %3523 = vmatpush1.msra.mxu0 0.0
    %3524 = vmatprep.subr.mxu0 0.0
    %3525 = vmatpush1.msra.mxu0 0.0
    %3526 = vmatprep.subr.mxu0 0.0
    %3527 = vmatpush1.msra.mxu0 0.0
    %3528 = vmatprep.subr.mxu0 0.0
    %3529 = vmatpush1.msra.mxu0 0.0
    %3530 = vmatprep.subr.mxu0 0.0
    %3531 = vmatpush1.msra.mxu0 0.0
    %3532 = vmatprep.subr.mxu0 0.0
    %3533 = vmatpush1.msra.mxu0 0.0
    %3534 = vmatprep.subr.mxu0 0.0
    %3535 = vmatpush1.msra.mxu0 0.0
    %3536 = vmatprep.subr.mxu0 0.0
    %3537 = vmatpush1.msra.mxu0 0.0
    %3538 = vmatprep.subr.mxu0 0.0
    %3539 = vmatpush1.msra.mxu0 0.0
    %3540 = vmatprep.subr.mxu0 0.0
    %3541 = vmatpush1.msra.mxu0 0.0
    %3542 = vmatprep.subr.mxu0 0.0
    %3543 = vmatpush1.msra.mxu0 0.0
    %3544 = vmatprep.subr.mxu0 0.0
    %3545 = vmatpush1.msra.mxu0 0.0
    %3546 = vmatprep.subr.mxu0 0.0
    %3547 = vmatpush1.msra.mxu0 0.0
    %3548 = vmatprep.subr.mxu0 0.0
    %3549 = vmatpush1.msra.mxu0 0.0
    %3550 = vmatprep.subr.mxu0 0.0
    %3551 = vmatpush1.msra.mxu0 0.0
    %3552 = vmatprep.subr.mxu0 0.0
    %3553 = vmatpush1.msra.mxu0 0.0
    %3554 = vmatprep.subr.mxu0 0.0
    %3555 = vmatpush1.msra.mxu0 0.0
    %3556 = vmatprep.subr.mxu0 0.0
    %3557 = vmatpush1.msra.mxu0 0.0
    %3558 = vmatprep.subr.mxu0 0.0
    %3559 = vmatpush1.msra.mxu0 0.0
    %3560 = vmatprep.subr.mxu0 0.0
    %3561 = vmatpush1.msra.mxu0 0.0
    %3562 = vmatprep.subr.mxu0 0.0
    %3563 = vmatpush1.msra.mxu0 0.0
    %3564 = vmatprep.subr.mxu0 0.0
    %3565 = vmatpush1.msra.mxu0 0.0
    %3566 = vmatprep.mubr.f32.mxu0 0.0
    %3567 = vmatmul.mubr.f32.gmra.mrb[0].mxu0 %v174
    %v3568 = vpop.f32.mrb[0].mxu0
    %v3569 = vadd.f32 0.0, %v3568
    %v3570 = vpop.f32.mrb[0].mxu0
    %3571 = vmatprep.mubr.f32.mxu0 0.0
    %3572 = vmatmul.mubr.f32.gmra.mrb[0].mxu0 %v177
    %v3573 = vpop.f32.mrb[0].mxu0
    %v3574 = vadd.f32 0.0, %v3573
    %v3575 = vpop.f32.mrb[0].mxu0
    %3576 = vmatprep.mubr.f32.mxu0 0.0
    %3577 = vmatmul.mubr.f32.gmra.mrb[0].mxu0 %v180
    %v3578 = vpop.f32.mrb[0].mxu0
    %v3579 = vadd.f32 0.0, %v3578
    %v3580 = vpop.f32.mrb[0].mxu0
    %3581 = vmatprep.mubr.f32.mxu0 0.0
    %3582 = vmatmul.mubr.f32.gmra.mrb[0].mxu0 %v183
    %v3583 = vpop.f32.mrb[0].mxu0
    %v3584 = vadd.f32 0.0, %v3583
    %v3585 = vpop.f32.mrb[0].mxu0
    %3586 = vmatprep.mubr.f32.mxu0 0.0
    %3587 = vmatmul.mubr.f32.gmra.mrb[0].mxu0 %v186
    %v3588 = vpop.f32.mrb[0].mxu0
    %v3589 = vadd.f32 0.0, %v3588
    %v3590 = vpop.f32.mrb[0].mxu0
    %3591 = vmatprep.mubr.f32.mxu0 0.0
    %3592 = vmatmul.mubr.f32.gmra.mrb[0].mxu0 %v189
    %v3593 = vpop.f32.mrb[0].mxu0
    %v3594 = vadd.f32 0.0, %v3593
    %v3595 = vpop.f32.mrb[0].mxu0
    %3596 = vmatprep.mubr.f32.mxu0 0.0
    %3597 = vmatmul.mubr.f32.gmra.mrb[0].mxu0 %v192
    %v3598 = vpop.f32.mrb[0].mxu0
    %v3599 = vadd.f32 0.0, %v3598
    %v3600 = vpop.f32.mrb[0].mxu0
    %3601 = vmatprep.mubr.f32.mxu0 0.0
    %3602 = vmatmul.mubr.f32.gmra.mrb[0].mxu0 %v195
    %v3603 = vpop.f32.mrb[0].mxu0
    %v3604 = vadd.f32 0.0, %v3603
    %v3605 = vpop.f32.mrb[0].mxu0
    %3606 = vdwg.mxu0
    %3607 = vmatprep.subr.mxu0 0.0
    %3608 = vmatpush1.msra.mxu0 %v3501
    %3609 = vmatprep.subr.mxu0 0.0
    %3610 = vmatpush1.msra.mxu0 0.0
    %3611 = vmatprep.subr.mxu0 0.0
    %3612 = vmatpush1.msra.mxu0 0.0
    %3613 = vmatprep.subr.mxu0 0.0
    %3614 = vmatpush1.msra.mxu0 0.0
    %3615 = vmatprep.subr.mxu0 0.0
    %3616 = vmatpush1.msra.mxu0 0.0
    %3617 = vmatprep.subr.mxu0 0.0
    %3618 = vmatpush1.msra.mxu0 0.0
    %3619 = vmatprep.subr.mxu0 0.0
    %3620 = vmatpush1.msra.mxu0 0.0
    %3621 = vmatprep.subr.mxu0 0.0
    %3622 = vmatpush1.msra.mxu0 0.0
    %3623 = vmatprep.subr.mxu0 0.0
    %3624 = vmatpush1.msra.mxu0 0.0
    %3625 = vmatprep.subr.mxu0 0.0
    %3626 = vmatpush1.msra.mxu0 0.0
    %3627 = vmatprep.subr.mxu0 0.0
    %3628 = vmatpush1.msra.mxu0 0.0
    %3629 = vmatprep.subr.mxu0 0.0
    %3630 = vmatpush1.msra.mxu0 0.0
    %3631 = vmatprep.subr.mxu0 0.0
    %3632 = vmatpush1.msra.mxu0 0.0
    %3633 = vmatprep.subr.mxu0 0.0
    %3634 = vmatpush1.msra.mxu0 0.0
    %3635 = vmatprep.subr.mxu0 0.0
    %3636 = vmatpush1.msra.mxu0 0.0
    %3637 = vmatprep.subr.mxu0 0.0
    %3638 = vmatpush1.msra.mxu0 0.0
    %3639 = vmatprep.subr.mxu0 0.0
    %3640 = vmatpush1.msra.mxu0 0.0
    %3641 = vmatprep.subr.mxu0 0.0
    %3642 = vmatpush1.msra.mxu0 0.0
    %3643 = vmatprep.subr.mxu0 0.0
    %3644 = vmatpush1.msra.mxu0 0.0
    %3645 = vmatprep.subr.mxu0 0.0
    %3646 = vmatpush1.msra.mxu0 0.0
    %3647 = vmatprep.subr.mxu0 0.0
    %3648 = vmatpush1.msra.mxu0 0.0
    %3649 = vmatprep.subr.mxu0 0.0
    %3650 = vmatpush1.msra.mxu0 0.0
    %3651 = vmatprep.subr.mxu0 0.0
    %3652 = vmatpush1.msra.mxu0 0.0
    %3653 = vmatprep.subr.mxu0 0.0
    %3654 = vmatpush1.msra.mxu0 0.0
    %3655 = vmatprep.subr.mxu0 0.0
    %3656 = vmatpush1.msra.mxu0 0.0
    %3657 = vmatprep.subr.mxu0 0.0
    %3658 = vmatpush1.msra.mxu0 0.0
    %3659 = vmatprep.subr.mxu0 0.0
    %3660 = vmatpush1.msra.mxu0 0.0
    %3661 = vmatprep.subr.mxu0 0.0
    %3662 = vmatpush1.msra.mxu0 0.0
    %3663 = vmatprep.subr.mxu0 0.0
    %3664 = vmatpush1.msra.mxu0 0.0
    %3665 = vmatprep.subr.mxu0 0.0
    %3666 = vmatpush1.msra.mxu0 0.0
    %3667 = vmatprep.subr.mxu0 0.0
    %3668 = vmatpush1.msra.mxu0 0.0
    %3669 = vmatprep.subr.mxu0 0.0
    %3670 = vmatpush1.msra.mxu0 0.0
    %3671 = vmatprep.mubr.f32.mxu0 0.0
    %3672 = vmatmul.mubr.f32.gmra.mrb[0].mxu0 %v304
    %v3673 = vpop.f32.mrb[0].mxu0
    %v3674 = vadd.f32 %v3569, %v3673
    %v3675 = vpop.f32.mrb[0].mxu0
    %3676 = vmatprep.mubr.f32.mxu0 0.0
    %3677 = vmatmul.mubr.f32.gmra.mrb[0].mxu0 %v307
    %v3678 = vpop.f32.mrb[0].mxu0
    %v3679 = vadd.f32 %v3574, %v3678
    %v3680 = vpop.f32.mrb[0].mxu0
    %3681 = vmatprep.mubr.f32.mxu0 0.0
    %3682 = vmatmul.mubr.f32.gmra.mrb[0].mxu0 %v310
    %v3683 = vpop.f32.mrb[0].mxu0
    %v3684 = vadd.f32 %v3579, %v3683
    %v3685 = vpop.f32.mrb[0].mxu0
    %3686 = vmatprep.mubr.f32.mxu0 0.0
    %3687 = vmatmul.mubr.f32.gmra.mrb[0].mxu0 %v313
    %v3688 = vpop.f32.mrb[0].mxu0
    %v3689 = vadd.f32 %v3584, %v3688
    %v3690 = vpop.f32.mrb[0].mxu0
    %3691 = vmatprep.mubr.f32.mxu0 0.0
    %3692 = vmatmul.mubr.f32.gmra.mrb[0].mxu0 %v316
    %v3693 = vpop.f32.mrb[0].mxu0
    %v3694 = vadd.f32 %v3589, %v3693
    %v3695 = vpop.f32.mrb[0].mxu0
    %3696 = vmatprep.mubr.f32.mxu0 0.0
    %3697 = vmatmul.mubr.f32.gmra.mrb[0].mxu0 %v319
    %v3698 = vpop.f32.mrb[0].mxu0
    %v3699 = vadd.f32 %v3594, %v3698
    %v3700 = vpop.f32.mrb[0].mxu0
    %3701 = vmatprep.mubr.f32.mxu0 0.0
    %3702 = vmatmul.mubr.f32.gmra.mrb[0].mxu0 %v322
    %v3703 = vpop.f32.mrb[0].mxu0
    %v3704 = vadd.f32 %v3599, %v3703
    %v3705 = vpop.f32.mrb[0].mxu0
    %3706 = vmatprep.mubr.f32.mxu0 0.0
    %3707 = vmatmul.mubr.f32.gmra.mrb[0].mxu0 %v325
    %v3708 = vpop.f32.mrb[0].mxu0
    %v3709 = vadd.f32 %v3604, %v3708
    %v3710 = vpop.f32.mrb[0].mxu0
    %3711 = vdwg.mxu0
    %v3712 = vadd.f32 %v3674, %v60
    %v3713 = vadd.f32 %v3679, %v65
    %v3714 = vadd.f32 %v3684, %v70
    %v3715 = vadd.f32 %v3689, %v75
    %v3716 = vadd.f32 %v3694, %v80
    %v3717 = vadd.f32 %v3699, %v85
    %v3718 = vadd.f32 %v3704, %v90
    %v3719 = vadd.f32 %v3709, %v95
    %v3720 = vxor.u32 %v3712, 2147483648
    %v3721 = vxor.u32 %v3713, 2147483648
    %v3722 = vmul.f32 %v3720, 1.442695
    %v3723 = vpow.pop %v3722
    %v3724 = vmul.f32 %v3721, 1.442695
    %v3725 = vpow.pop %v3724
    %v3726 = vadd.f32 %v3723, 1.0
    %v3727 = vadd.f32 %v3725, 1.0
    %v3728 = vrcp.pop %v3726
    %v3729 = vmul.f32 1.0, %v3728
    %v3730 = vrcp.pop %v3727
    %v3731 = vmul.f32 1.0, %v3730
    %v3732 = vxor.u32 %v3714, 2147483648
    %v3733 = vxor.u32 %v3715, 2147483648
    %v3734 = vmul.f32 %v3732, 1.442695
    %v3735 = vpow.pop %v3734
    %v3736 = vmul.f32 %v3733, 1.442695
    %v3737 = vpow.pop %v3736
    %v3738 = vadd.f32 %v3735, 1.0
    %v3739 = vadd.f32 %v3737, 1.0
    %v3740 = vrcp.pop %v3738
    %v3741 = vmul.f32 1.0, %v3740
    %v3742 = vrcp.pop %v3739
    %v3743 = vmul.f32 1.0, %v3742
    %v3744 = vtanh.pop %v3716
    %v3745 = vtanh.pop %v3717
    %v3746 = vxor.u32 %v3718, 2147483648
    %v3747 = vxor.u32 %v3719, 2147483648
    %v3748 = vmul.f32 %v3746, 1.442695
    %v3749 = vpow.pop %v3748
    %v3750 = vmul.f32 %v3747, 1.442695
    %v3751 = vpow.pop %v3750
    %v3752 = vadd.f32 %v3749, 1.0
    %v3753 = vadd.f32 %v3751, 1.0
    %v3754 = vrcp.pop %v3752
    %v3755 = vmul.f32 1.0, %v3754
    %v3756 = vrcp.pop %v3753
    %v3757 = vmul.f32 1.0, %v3756
    %v3758 = vmul.f32 %v3741, %v3226
    %v3759 = vmul.f32 %v3743, %v3227
    %v3760 = vmul.f32 %v3729, %v3744
    %v3761 = vmul.f32 %v3731, %v3745
    %v3762 = vadd.f32 %v3758, %v3760
    %v3763 = vadd.f32 %v3759, %v3761
    %v3764 = vtanh.pop %v3762
    %v3765 = vtanh.pop %v3763
    %v3766 = vmul.f32 %v3755, %v3764
    %v3767 = vmul.f32 %v3757, %v3765
    %3768 = vmatprep.subr.mxu0 0.0
    %3769 = vmatpush1.msra.mxu0 %v3496
    %3770 = vmatprep.subr.mxu0 0.0
    %3771 = vmatpush1.msra.mxu0 %v3497
    %3772 = vmatprep.subr.mxu0 0.0
    %3773 = vmatpush1.msra.mxu0 0.0
    %3774 = vmatprep.subr.mxu0 0.0
    %3775 = vmatpush1.msra.mxu0 0.0
    %3776 = vmatprep.subr.mxu0 0.0
    %3777 = vmatpush1.msra.mxu0 0.0
    %3778 = vmatprep.subr.mxu0 0.0
    %3779 = vmatpush1.msra.mxu0 0.0
    %3780 = vmatprep.subr.mxu0 0.0
    %3781 = vmatpush1.msra.mxu0 0.0
    %3782 = vmatprep.subr.mxu0 0.0
    %3783 = vmatpush1.msra.mxu0 0.0
    %3784 = vmatprep.subr.mxu0 0.0
    %3785 = vmatpush1.msra.mxu0 0.0
    %3786 = vmatprep.subr.mxu0 0.0
    %3787 = vmatpush1.msra.mxu0 0.0
    %3788 = vmatprep.subr.mxu0 0.0
    %3789 = vmatpush1.msra.mxu0 0.0
    %3790 = vmatprep.subr.mxu0 0.0
    %3791 = vmatpush1.msra.mxu0 0.0
    %3792 = vmatprep.subr.mxu0 0.0
    %3793 = vmatpush1.msra.mxu0 0.0
    %3794 = vmatprep.subr.mxu0 0.0
    %3795 = vmatpush1.msra.mxu0 0.0
    %3796 = vmatprep.subr.mxu0 0.0
    %3797 = vmatpush1.msra.mxu0 0.0
    %3798 = vmatprep.subr.mxu0 0.0
    %3799 = vmatpush1.msra.mxu0 0.0
    %3800 = vmatprep.subr.mxu0 0.0
    %3801 = vmatpush1.msra.mxu0 0.0
    %3802 = vmatprep.subr.mxu0 0.0
    %3803 = vmatpush1.msra.mxu0 0.0
    %3804 = vmatprep.subr.mxu0 0.0
    %3805 = vmatpush1.msra.mxu0 0.0
    %3806 = vmatprep.subr.mxu0 0.0
    %3807 = vmatpush1.msra.mxu0 0.0
    %3808 = vmatprep.subr.mxu0 0.0
    %3809 = vmatpush1.msra.mxu0 0.0
    %3810 = vmatprep.subr.mxu0 0.0
    %3811 = vmatpush1.msra.mxu0 0.0
    %3812 = vmatprep.subr.mxu0 0.0
    %3813 = vmatpush1.msra.mxu0 0.0
    %3814 = vmatprep.subr.mxu0 0.0
    %3815 = vmatpush1.msra.mxu0 0.0
    %3816 = vmatprep.subr.mxu0 0.0
    %3817 = vmatpush1.msra.mxu0 0.0
    %3818 = vmatprep.subr.mxu0 0.0
    %3819 = vmatpush1.msra.mxu0 0.0
    %3820 = vmatprep.subr.mxu0 0.0
    %3821 = vmatpush1.msra.mxu0 0.0
    %3822 = vmatprep.subr.mxu0 0.0
    %3823 = vmatpush1.msra.mxu0 0.0
    %3824 = vmatprep.subr.mxu0 0.0
    %3825 = vmatpush1.msra.mxu0 0.0
    %3826 = vmatprep.subr.mxu0 0.0
    %3827 = vmatpush1.msra.mxu0 0.0
    %3828 = vmatprep.subr.mxu0 0.0
    %3829 = vmatpush1.msra.mxu0 0.0
    %3830 = vmatprep.subr.mxu0 0.0
    %3831 = vmatpush1.msra.mxu0 0.0
    %3832 = vmatprep.mubr.f32.mxu0 0.0
    %3833 = vmatmul.mubr.f32.gmra.mrb[0].mxu0 %v505
    %v3834 = vpop.f32.mrb[0].mxu0
    %v3835 = vadd.f32 0.0, %v3834
    %v3836 = vpop.f32.mrb[0].mxu0
    %3837 = vmatprep.mubr.f32.mxu0 0.0
    %3838 = vmatmul.mubr.f32.gmra.mrb[0].mxu0 %v508
    %v3839 = vpop.f32.mrb[0].mxu0
    %v3840 = vadd.f32 0.0, %v3839
    %v3841 = vpop.f32.mrb[0].mxu0
    %3842 = vmatprep.mubr.f32.mxu0 0.0
    %3843 = vmatmul.mubr.f32.gmra.mrb[0].mxu0 %v511
    %v3844 = vpop.f32.mrb[0].mxu0
    %v3845 = vadd.f32 0.0, %v3844
    %v3846 = vpop.f32.mrb[0].mxu0
    %3847 = vmatprep.mubr.f32.mxu0 0.0
    %3848 = vmatmul.mubr.f32.gmra.mrb[0].mxu0 %v514
    %v3849 = vpop.f32.mrb[0].mxu0
    %v3850 = vadd.f32 0.0, %v3849
    %v3851 = vpop.f32.mrb[0].mxu0
    %3852 = vmatprep.mubr.f32.mxu0 0.0
    %3853 = vmatmul.mubr.f32.gmra.mrb[0].mxu0 %v517
    %v3854 = vpop.f32.mrb[0].mxu0
    %v3855 = vadd.f32 0.0, %v3854
    %v3856 = vpop.f32.mrb[0].mxu0
    %3857 = vmatprep.mubr.f32.mxu0 0.0
    %3858 = vmatmul.mubr.f32.gmra.mrb[0].mxu0 %v520
    %v3859 = vpop.f32.mrb[0].mxu0
    %v3860 = vadd.f32 0.0, %v3859
    %v3861 = vpop.f32.mrb[0].mxu0
    %3862 = vmatprep.mubr.f32.mxu0 0.0
    %3863 = vmatmul.mubr.f32.gmra.mrb[0].mxu0 %v523
    %v3864 = vpop.f32.mrb[0].mxu0
    %v3865 = vadd.f32 0.0, %v3864
    %v3866 = vpop.f32.mrb[0].mxu0
    %3867 = vmatprep.mubr.f32.mxu0 0.0
    %3868 = vmatmul.mubr.f32.gmra.mrb[0].mxu0 %v526
    %v3869 = vpop.f32.mrb[0].mxu0
    %v3870 = vadd.f32 0.0, %v3869
    %v3871 = vpop.f32.mrb[0].mxu0
    %3872 = vdwg.mxu0
    %3873 = vmatprep.subr.mxu0 0.0
    %3874 = vmatpush1.msra.mxu0 %v3766
    %3875 = vmatprep.subr.mxu0 0.0
    %3876 = vmatpush1.msra.mxu0 %v3767
    %3877 = vmatprep.subr.mxu0 0.0
    %3878 = vmatpush1.msra.mxu0 0.0
    %3879 = vmatprep.subr.mxu0 0.0
    %3880 = vmatpush1.msra.mxu0 0.0
    %3881 = vmatprep.subr.mxu0 0.0
    %3882 = vmatpush1.msra.mxu0 0.0
    %3883 = vmatprep.subr.mxu0 0.0
    %3884 = vmatpush1.msra.mxu0 0.0
    %3885 = vmatprep.subr.mxu0 0.0
    %3886 = vmatpush1.msra.mxu0 0.0
    %3887 = vmatprep.subr.mxu0 0.0
    %3888 = vmatpush1.msra.mxu0 0.0
    %3889 = vmatprep.subr.mxu0 0.0
    %3890 = vmatpush1.msra.mxu0 0.0
    %3891 = vmatprep.subr.mxu0 0.0
    %3892 = vmatpush1.msra.mxu0 0.0
    %3893 = vmatprep.subr.mxu0 0.0
    %3894 = vmatpush1.msra.mxu0 0.0
    %3895 = vmatprep.subr.mxu0 0.0
    %3896 = vmatpush1.msra.mxu0 0.0
    %3897 = vmatprep.subr.mxu0 0.0
    %3898 = vmatpush1.msra.mxu0 0.0
    %3899 = vmatprep.subr.mxu0 0.0
    %3900 = vmatpush1.msra.mxu0 0.0
    %3901 = vmatprep.subr.mxu0 0.0
    %3902 = vmatpush1.msra.mxu0 0.0
    %3903 = vmatprep.subr.mxu0 0.0
    %3904 = vmatpush1.msra.mxu0 0.0
    %3905 = vmatprep.subr.mxu0 0.0
    %3906 = vmatpush1.msra.mxu0 0.0
    %3907 = vmatprep.subr.mxu0 0.0
    %3908 = vmatpush1.msra.mxu0 0.0
    %3909 = vmatprep.subr.mxu0 0.0
    %3910 = vmatpush1.msra.mxu0 0.0
    %3911 = vmatprep.subr.mxu0 0.0
    %3912 = vmatpush1.msra.mxu0 0.0
    %3913 = vmatprep.subr.mxu0 0.0
    %3914 = vmatpush1.msra.mxu0 0.0
    %3915 = vmatprep.subr.mxu0 0.0
    %3916 = vmatpush1.msra.mxu0 0.0
    %3917 = vmatprep.subr.mxu0 0.0
    %3918 = vmatpush1.msra.mxu0 0.0
    %3919 = vmatprep.subr.mxu0 0.0
    %3920 = vmatpush1.msra.mxu0 0.0
    %3921 = vmatprep.subr.mxu0 0.0
    %3922 = vmatpush1.msra.mxu0 0.0
    %3923 = vmatprep.subr.mxu0 0.0
    %3924 = vmatpush1.msra.mxu0 0.0
    %3925 = vmatprep.subr.mxu0 0.0
    %3926 = vmatpush1.msra.mxu0 0.0
    %3927 = vmatprep.subr.mxu0 0.0
    %3928 = vmatpush1.msra.mxu0 0.0
    %3929 = vmatprep.subr.mxu0 0.0
    %3930 = vmatpush1.msra.mxu0 0.0
    %3931 = vmatprep.subr.mxu0 0.0
    %3932 = vmatpush1.msra.mxu0 0.0
    %3933 = vmatprep.subr.mxu0 0.0
    %3934 = vmatpush1.msra.mxu0 0.0
    %3935 = vmatprep.subr.mxu0 0.0
    %3936 = vmatpush1.msra.mxu0 0.0
    %3937 = vmatprep.mubr.f32.mxu0 0.0
    %3938 = vmatmul.mubr.f32.gmra.mrb[0].mxu0 %v634
    %v3939 = vpop.f32.mrb[0].mxu0
    %v3940 = vadd.f32 %v3835, %v3939
    %v3941 = vpop.f32.mrb[0].mxu0
    %3942 = vmatprep.mubr.f32.mxu0 0.0
    %3943 = vmatmul.mubr.f32.gmra.mrb[0].mxu0 %v637
    %v3944 = vpop.f32.mrb[0].mxu0
    %v3945 = vadd.f32 %v3840, %v3944
    %v3946 = vpop.f32.mrb[0].mxu0
    %3947 = vmatprep.mubr.f32.mxu0 0.0
    %3948 = vmatmul.mubr.f32.gmra.mrb[0].mxu0 %v640
    %v3949 = vpop.f32.mrb[0].mxu0
    %v3950 = vadd.f32 %v3845, %v3949
    %v3951 = vpop.f32.mrb[0].mxu0
    %3952 = vmatprep.mubr.f32.mxu0 0.0
    %3953 = vmatmul.mubr.f32.gmra.mrb[0].mxu0 %v643
    %v3954 = vpop.f32.mrb[0].mxu0
    %v3955 = vadd.f32 %v3850, %v3954
    %v3956 = vpop.f32.mrb[0].mxu0
    %3957 = vmatprep.mubr.f32.mxu0 0.0
    %3958 = vmatmul.mubr.f32.gmra.mrb[0].mxu0 %v646
    %v3959 = vpop.f32.mrb[0].mxu0
    %v3960 = vadd.f32 %v3855, %v3959
    %v3961 = vpop.f32.mrb[0].mxu0
    %3962 = vmatprep.mubr.f32.mxu0 0.0
    %3963 = vmatmul.mubr.f32.gmra.mrb[0].mxu0 %v649
    %v3964 = vpop.f32.mrb[0].mxu0
    %v3965 = vadd.f32 %v3860, %v3964
    %v3966 = vpop.f32.mrb[0].mxu0
    %3967 = vmatprep.mubr.f32.mxu0 0.0
    %3968 = vmatmul.mubr.f32.gmra.mrb[0].mxu0 %v652
    %v3969 = vpop.f32.mrb[0].mxu0
    %v3970 = vadd.f32 %v3865, %v3969
    %v3971 = vpop.f32.mrb[0].mxu0
    %3972 = vmatprep.mubr.f32.mxu0 0.0
    %3973 = vmatmul.mubr.f32.gmra.mrb[0].mxu0 %v655
    %v3974 = vpop.f32.mrb[0].mxu0
    %v3975 = vadd.f32 %v3870, %v3974
    %v3976 = vpop.f32.mrb[0].mxu0
    %3977 = vdwg.mxu0
    %v3978 = vadd.f32 %v3940, %v108
    %v3979 = vadd.f32 %v3945, %v113
    %v3980 = vadd.f32 %v3950, %v118
    %v3981 = vadd.f32 %v3955, %v123
    %v3982 = vadd.f32 %v3960, %v128
    %v3983 = vadd.f32 %v3965, %v133
    %v3984 = vadd.f32 %v3970, %v138
    %v3985 = vadd.f32 %v3975, %v143
    %v3986 = vxor.u32 %v3978, 2147483648
    %v3987 = vxor.u32 %v3979, 2147483648
    %v3988 = vmul.f32 %v3986, 1.442695
    %v3989 = vpow.pop %v3988
    %v3990 = vmul.f32 %v3987, 1.442695
    %v3991 = vpow.pop %v3990
    %v3992 = vadd.f32 %v3989, 1.0
    %v3993 = vadd.f32 %v3991, 1.0
    %v3994 = vrcp.pop %v3992
    %v3995 = vmul.f32 1.0, %v3994
    %v3996 = vrcp.pop %v3993
    %v3997 = vmul.f32 1.0, %v3996
    %v3998 = vxor.u32 %v3980, 2147483648
    %v3999 = vxor.u32 %v3981, 2147483648
    %v4000 = vmul.f32 %v3998, 1.442695
    %v4001 = vpow.pop %v4000
    %v4002 = vmul.f32 %v3999, 1.442695
    %v4003 = vpow.pop %v4002
    %v4004 = vadd.f32 %v4001, 1.0
    %v4005 = vadd.f32 %v4003, 1.0
    %v4006 = vrcp.pop %v4004
    %v4007 = vmul.f32 1.0, %v4006
    %v4008 = vrcp.pop %v4005
    %v4009 = vmul.f32 1.0, %v4008
    %v4010 = vtanh.pop %v3982
    %v4011 = vtanh.pop %v3983
    %v4012 = vxor.u32 %v3984, 2147483648
    %v4013 = vxor.u32 %v3985, 2147483648
    %v4014 = vmul.f32 %v4012, 1.442695
    %v4015 = vpow.pop %v4014
    %v4016 = vmul.f32 %v4013, 1.442695
    %v4017 = vpow.pop %v4016
    %v4018 = vadd.f32 %v4015, 1.0
    %v4019 = vadd.f32 %v4017, 1.0
    %v4020 = vrcp.pop %v4018
    %v4021 = vmul.f32 1.0, %v4020
    %v4022 = vrcp.pop %v4019
    %v4023 = vmul.f32 1.0, %v4022
    %v4024 = vmul.f32 %v4007, %v3492
    %v4025 = vmul.f32 %v4009, %v3493
    %v4026 = vmul.f32 %v3995, %v4010
    %v4027 = vmul.f32 %v3997, %v4011
    %v4028 = vadd.f32 %v4024, %v4026
    %v4029 = vadd.f32 %v4025, %v4027
    %v4030 = vtanh.pop %v4028
    %v4031 = vtanh.pop %v4029
    %v4032 = vmul.f32 %v4021, %v4030
    %v4033 = vmul.f32 %v4023, %v4031
    %v4034 = vadd.f32 %v3498, %v4032
    %v4035 = vadd.f32 %v3499, %v4033
    %s4036 = scalar_lea.vmem %s0, 56
    %v4037 = vld [vmem:[%s4036] sm:$0xff]
    %4038 = vmatprep.subr.mxu0 0.0
    %4039 = vmatpush1.msra.mxu0 %v3766
    %4040 = vmatprep.subr.mxu0 0.0
    %4041 = vmatpush1.msra.mxu0 %v3767
    %4042 = vmatprep.subr.mxu0 0.0
    %4043 = vmatpush1.msra.mxu0 0.0
    %4044 = vmatprep.subr.mxu0 0.0
    %4045 = vmatpush1.msra.mxu0 0.0
    %4046 = vmatprep.subr.mxu0 0.0
    %4047 = vmatpush1.msra.mxu0 0.0
    %4048 = vmatprep.subr.mxu0 0.0
    %4049 = vmatpush1.msra.mxu0 0.0
    %4050 = vmatprep.subr.mxu0 0.0
    %4051 = vmatpush1.msra.mxu0 0.0
    %4052 = vmatprep.subr.mxu0 0.0
    %4053 = vmatpush1.msra.mxu0 0.0
    %4054 = vmatprep.subr.mxu0 0.0
    %4055 = vmatpush1.msra.mxu0 0.0
    %4056 = vmatprep.subr.mxu0 0.0
    %4057 = vmatpush1.msra.mxu0 0.0
    %4058 = vmatprep.subr.mxu0 0.0
    %4059 = vmatpush1.msra.mxu0 0.0
    %4060 = vmatprep.subr.mxu0 0.0
    %4061 = vmatpush1.msra.mxu0 0.0
    %4062 = vmatprep.subr.mxu0 0.0
    %4063 = vmatpush1.msra.mxu0 0.0
    %4064 = vmatprep.subr.mxu0 0.0
    %4065 = vmatpush1.msra.mxu0 0.0
    %4066 = vmatprep.subr.mxu0 0.0
    %4067 = vmatpush1.msra.mxu0 0.0
    %4068 = vmatprep.subr.mxu0 0.0
    %4069 = vmatpush1.msra.mxu0 0.0
    %4070 = vmatprep.subr.mxu0 0.0
    %4071 = vmatpush1.msra.mxu0 0.0
    %4072 = vmatprep.subr.mxu0 0.0
    %4073 = vmatpush1.msra.mxu0 0.0
    %4074 = vmatprep.subr.mxu0 0.0
    %4075 = vmatpush1.msra.mxu0 0.0
    %4076 = vmatprep.subr.mxu0 0.0
    %4077 = vmatpush1.msra.mxu0 0.0
    %4078 = vmatprep.subr.mxu0 0.0
    %4079 = vmatpush1.msra.mxu0 0.0
    %4080 = vmatprep.subr.mxu0 0.0
    %4081 = vmatpush1.msra.mxu0 0.0
    %4082 = vmatprep.subr.mxu0 0.0
    %4083 = vmatpush1.msra.mxu0 0.0
    %4084 = vmatprep.subr.mxu0 0.0
    %4085 = vmatpush1.msra.mxu0 0.0
    %4086 = vmatprep.subr.mxu0 0.0
    %4087 = vmatpush1.msra.mxu0 0.0
    %4088 = vmatprep.subr.mxu0 0.0
    %4089 = vmatpush1.msra.mxu0 0.0
    %4090 = vmatprep.subr.mxu0 0.0
    %4091 = vmatpush1.msra.mxu0 0.0
    %4092 = vmatprep.subr.mxu0 0.0
    %4093 = vmatpush1.msra.mxu0 0.0
    %4094 = vmatprep.subr.mxu0 0.0
    %4095 = vmatpush1.msra.mxu0 0.0
    %4096 = vmatprep.subr.mxu0 0.0
    %4097 = vmatpush1.msra.mxu0 0.0
    %4098 = vmatprep.subr.mxu0 0.0
    %4099 = vmatpush1.msra.mxu0 0.0
    %4100 = vmatprep.subr.mxu0 0.0
    %4101 = vmatpush1.msra.mxu0 0.0
    %4102 = vmatprep.mubr.f32.mxu0 0.0
    %4103 = vmatmul.mubr.f32.gmra.mrb[0].mxu0 %v174
    %v4104 = vpop.f32.mrb[0].mxu0
    %v4105 = vadd.f32 0.0, %v4104
    %v4106 = vpop.f32.mrb[0].mxu0
    %4107 = vmatprep.mubr.f32.mxu0 0.0
    %4108 = vmatmul.mubr.f32.gmra.mrb[0].mxu0 %v177
    %v4109 = vpop.f32.mrb[0].mxu0
    %v4110 = vadd.f32 0.0, %v4109
    %v4111 = vpop.f32.mrb[0].mxu0
    %4112 = vmatprep.mubr.f32.mxu0 0.0
    %4113 = vmatmul.mubr.f32.gmra.mrb[0].mxu0 %v180
    %v4114 = vpop.f32.mrb[0].mxu0
    %v4115 = vadd.f32 0.0, %v4114
    %v4116 = vpop.f32.mrb[0].mxu0
    %4117 = vmatprep.mubr.f32.mxu0 0.0
    %4118 = vmatmul.mubr.f32.gmra.mrb[0].mxu0 %v183
    %v4119 = vpop.f32.mrb[0].mxu0
    %v4120 = vadd.f32 0.0, %v4119
    %v4121 = vpop.f32.mrb[0].mxu0
    %4122 = vmatprep.mubr.f32.mxu0 0.0
    %4123 = vmatmul.mubr.f32.gmra.mrb[0].mxu0 %v186
    %v4124 = vpop.f32.mrb[0].mxu0
    %v4125 = vadd.f32 0.0, %v4124
    %v4126 = vpop.f32.mrb[0].mxu0
    %4127 = vmatprep.mubr.f32.mxu0 0.0
    %4128 = vmatmul.mubr.f32.gmra.mrb[0].mxu0 %v189
    %v4129 = vpop.f32.mrb[0].mxu0
    %v4130 = vadd.f32 0.0, %v4129
    %v4131 = vpop.f32.mrb[0].mxu0
    %4132 = vmatprep.mubr.f32.mxu0 0.0
    %4133 = vmatmul.mubr.f32.gmra.mrb[0].mxu0 %v192
    %v4134 = vpop.f32.mrb[0].mxu0
    %v4135 = vadd.f32 0.0, %v4134
    %v4136 = vpop.f32.mrb[0].mxu0
    %4137 = vmatprep.mubr.f32.mxu0 0.0
    %4138 = vmatmul.mubr.f32.gmra.mrb[0].mxu0 %v195
    %v4139 = vpop.f32.mrb[0].mxu0
    %v4140 = vadd.f32 0.0, %v4139
    %v4141 = vpop.f32.mrb[0].mxu0
    %4142 = vdwg.mxu0
    %4143 = vmatprep.subr.mxu0 0.0
    %4144 = vmatpush1.msra.mxu0 %v4037
    %4145 = vmatprep.subr.mxu0 0.0
    %4146 = vmatpush1.msra.mxu0 0.0
    %4147 = vmatprep.subr.mxu0 0.0
    %4148 = vmatpush1.msra.mxu0 0.0
    %4149 = vmatprep.subr.mxu0 0.0
    %4150 = vmatpush1.msra.mxu0 0.0
    %4151 = vmatprep.subr.mxu0 0.0
    %4152 = vmatpush1.msra.mxu0 0.0
    %4153 = vmatprep.subr.mxu0 0.0
    %4154 = vmatpush1.msra.mxu0 0.0
    %4155 = vmatprep.subr.mxu0 0.0
    %4156 = vmatpush1.msra.mxu0 0.0
    %4157 = vmatprep.subr.mxu0 0.0
    %4158 = vmatpush1.msra.mxu0 0.0
    %4159 = vmatprep.subr.mxu0 0.0
    %4160 = vmatpush1.msra.mxu0 0.0
    %4161 = vmatprep.subr.mxu0 0.0
    %4162 = vmatpush1.msra.mxu0 0.0
    %4163 = vmatprep.subr.mxu0 0.0
    %4164 = vmatpush1.msra.mxu0 0.0
    %4165 = vmatprep.subr.mxu0 0.0
    %4166 = vmatpush1.msra.mxu0 0.0
    %4167 = vmatprep.subr.mxu0 0.0
    %4168 = vmatpush1.msra.mxu0 0.0
    %4169 = vmatprep.subr.mxu0 0.0
    %4170 = vmatpush1.msra.mxu0 0.0
    %4171 = vmatprep.subr.mxu0 0.0
    %4172 = vmatpush1.msra.mxu0 0.0
    %4173 = vmatprep.subr.mxu0 0.0
    %4174 = vmatpush1.msra.mxu0 0.0
    %4175 = vmatprep.subr.mxu0 0.0
    %4176 = vmatpush1.msra.mxu0 0.0
    %4177 = vmatprep.subr.mxu0 0.0
    %4178 = vmatpush1.msra.mxu0 0.0
    %4179 = vmatprep.subr.mxu0 0.0
    %4180 = vmatpush1.msra.mxu0 0.0
    %4181 = vmatprep.subr.mxu0 0.0
    %4182 = vmatpush1.msra.mxu0 0.0
    %4183 = vmatprep.subr.mxu0 0.0
    %4184 = vmatpush1.msra.mxu0 0.0
    %4185 = vmatprep.subr.mxu0 0.0
    %4186 = vmatpush1.msra.mxu0 0.0
    %4187 = vmatprep.subr.mxu0 0.0
    %4188 = vmatpush1.msra.mxu0 0.0
    %4189 = vmatprep.subr.mxu0 0.0
    %4190 = vmatpush1.msra.mxu0 0.0
    %4191 = vmatprep.subr.mxu0 0.0
    %4192 = vmatpush1.msra.mxu0 0.0
    %4193 = vmatprep.subr.mxu0 0.0
    %4194 = vmatpush1.msra.mxu0 0.0
    %4195 = vmatprep.subr.mxu0 0.0
    %4196 = vmatpush1.msra.mxu0 0.0
    %4197 = vmatprep.subr.mxu0 0.0
    %4198 = vmatpush1.msra.mxu0 0.0
    %4199 = vmatprep.subr.mxu0 0.0
    %4200 = vmatpush1.msra.mxu0 0.0
    %4201 = vmatprep.subr.mxu0 0.0
    %4202 = vmatpush1.msra.mxu0 0.0
    %4203 = vmatprep.subr.mxu0 0.0
    %4204 = vmatpush1.msra.mxu0 0.0
    %4205 = vmatprep.subr.mxu0 0.0
    %4206 = vmatpush1.msra.mxu0 0.0
    %4207 = vmatprep.mubr.f32.mxu0 0.0
    %4208 = vmatmul.mubr.f32.gmra.mrb[0].mxu0 %v304
    %v4209 = vpop.f32.mrb[0].mxu0
    %v4210 = vadd.f32 %v4105, %v4209
    %v4211 = vpop.f32.mrb[0].mxu0
    %4212 = vmatprep.mubr.f32.mxu0 0.0
    %4213 = vmatmul.mubr.f32.gmra.mrb[0].mxu0 %v307
    %v4214 = vpop.f32.mrb[0].mxu0
    %v4215 = vadd.f32 %v4110, %v4214
    %v4216 = vpop.f32.mrb[0].mxu0
    %4217 = vmatprep.mubr.f32.mxu0 0.0
    %4218 = vmatmul.mubr.f32.gmra.mrb[0].mxu0 %v310
    %v4219 = vpop.f32.mrb[0].mxu0
    %v4220 = vadd.f32 %v4115, %v4219
    %v4221 = vpop.f32.mrb[0].mxu0
    %4222 = vmatprep.mubr.f32.mxu0 0.0
    %4223 = vmatmul.mubr.f32.gmra.mrb[0].mxu0 %v313
    %v4224 = vpop.f32.mrb[0].mxu0
    %v4225 = vadd.f32 %v4120, %v4224
    %v4226 = vpop.f32.mrb[0].mxu0
    %4227 = vmatprep.mubr.f32.mxu0 0.0
    %4228 = vmatmul.mubr.f32.gmra.mrb[0].mxu0 %v316
    %v4229 = vpop.f32.mrb[0].mxu0
    %v4230 = vadd.f32 %v4125, %v4229
    %v4231 = vpop.f32.mrb[0].mxu0
    %4232 = vmatprep.mubr.f32.mxu0 0.0
    %4233 = vmatmul.mubr.f32.gmra.mrb[0].mxu0 %v319
    %v4234 = vpop.f32.mrb[0].mxu0
    %v4235 = vadd.f32 %v4130, %v4234
    %v4236 = vpop.f32.mrb[0].mxu0
    %4237 = vmatprep.mubr.f32.mxu0 0.0
    %4238 = vmatmul.mubr.f32.gmra.mrb[0].mxu0 %v322
    %v4239 = vpop.f32.mrb[0].mxu0
    %v4240 = vadd.f32 %v4135, %v4239
    %v4241 = vpop.f32.mrb[0].mxu0
    %4242 = vmatprep.mubr.f32.mxu0 0.0
    %4243 = vmatmul.mubr.f32.gmra.mrb[0].mxu0 %v325
    %v4244 = vpop.f32.mrb[0].mxu0
    %v4245 = vadd.f32 %v4140, %v4244
    %v4246 = vpop.f32.mrb[0].mxu0
    %4247 = vdwg.mxu0
    %v4248 = vadd.f32 %v4210, %v60
    %v4249 = vadd.f32 %v4215, %v65
    %v4250 = vadd.f32 %v4220, %v70
    %v4251 = vadd.f32 %v4225, %v75
    %v4252 = vadd.f32 %v4230, %v80
    %v4253 = vadd.f32 %v4235, %v85
    %v4254 = vadd.f32 %v4240, %v90
    %v4255 = vadd.f32 %v4245, %v95
    %v4256 = vxor.u32 %v4248, 2147483648
    %v4257 = vxor.u32 %v4249, 2147483648
    %v4258 = vmul.f32 %v4256, 1.442695
    %v4259 = vpow.pop %v4258
    %v4260 = vmul.f32 %v4257, 1.442695
    %v4261 = vpow.pop %v4260
    %v4262 = vadd.f32 %v4259, 1.0
    %v4263 = vadd.f32 %v4261, 1.0
    %v4264 = vrcp.pop %v4262
    %v4265 = vmul.f32 1.0, %v4264
    %v4266 = vrcp.pop %v4263
    %v4267 = vmul.f32 1.0, %v4266
    %v4268 = vxor.u32 %v4250, 2147483648
    %v4269 = vxor.u32 %v4251, 2147483648
    %v4270 = vmul.f32 %v4268, 1.442695
    %v4271 = vpow.pop %v4270
    %v4272 = vmul.f32 %v4269, 1.442695
    %v4273 = vpow.pop %v4272
    %v4274 = vadd.f32 %v4271, 1.0
    %v4275 = vadd.f32 %v4273, 1.0
    %v4276 = vrcp.pop %v4274
    %v4277 = vmul.f32 1.0, %v4276
    %v4278 = vrcp.pop %v4275
    %v4279 = vmul.f32 1.0, %v4278
    %v4280 = vtanh.pop %v4252
    %v4281 = vtanh.pop %v4253
    %v4282 = vxor.u32 %v4254, 2147483648
    %v4283 = vxor.u32 %v4255, 2147483648
    %v4284 = vmul.f32 %v4282, 1.442695
    %v4285 = vpow.pop %v4284
    %v4286 = vmul.f32 %v4283, 1.442695
    %v4287 = vpow.pop %v4286
    %v4288 = vadd.f32 %v4285, 1.0
    %v4289 = vadd.f32 %v4287, 1.0
    %v4290 = vrcp.pop %v4288
    %v4291 = vmul.f32 1.0, %v4290
    %v4292 = vrcp.pop %v4289
    %v4293 = vmul.f32 1.0, %v4292
    %v4294 = vmul.f32 %v4277, %v3762
    %v4295 = vmul.f32 %v4279, %v3763
    %v4296 = vmul.f32 %v4265, %v4280
    %v4297 = vmul.f32 %v4267, %v4281
    %v4298 = vadd.f32 %v4294, %v4296
    %v4299 = vadd.f32 %v4295, %v4297
    %v4300 = vtanh.pop %v4298
    %v4301 = vtanh.pop %v4299
    %v4302 = vmul.f32 %v4291, %v4300
    %v4303 = vmul.f32 %v4293, %v4301
    %4304 = vmatprep.subr.mxu0 0.0
    %4305 = vmatpush1.msra.mxu0 %v4032
    %4306 = vmatprep.subr.mxu0 0.0
    %4307 = vmatpush1.msra.mxu0 %v4033
    %4308 = vmatprep.subr.mxu0 0.0
    %4309 = vmatpush1.msra.mxu0 0.0
    %4310 = vmatprep.subr.mxu0 0.0
    %4311 = vmatpush1.msra.mxu0 0.0
    %4312 = vmatprep.subr.mxu0 0.0
    %4313 = vmatpush1.msra.mxu0 0.0
    %4314 = vmatprep.subr.mxu0 0.0
    %4315 = vmatpush1.msra.mxu0 0.0
    %4316 = vmatprep.subr.mxu0 0.0
    %4317 = vmatpush1.msra.mxu0 0.0
    %4318 = vmatprep.subr.mxu0 0.0
    %4319 = vmatpush1.msra.mxu0 0.0
    %4320 = vmatprep.subr.mxu0 0.0
    %4321 = vmatpush1.msra.mxu0 0.0
    %4322 = vmatprep.subr.mxu0 0.0
    %4323 = vmatpush1.msra.mxu0 0.0
    %4324 = vmatprep.subr.mxu0 0.0
    %4325 = vmatpush1.msra.mxu0 0.0
    %4326 = vmatprep.subr.mxu0 0.0
    %4327 = vmatpush1.msra.mxu0 0.0
    %4328 = vmatprep.subr.mxu0 0.0
    %4329 = vmatpush1.msra.mxu0 0.0
    %4330 = vmatprep.subr.mxu0 0.0
    %4331 = vmatpush1.msra.mxu0 0.0
    %4332 = vmatprep.subr.mxu0 0.0
    %4333 = vmatpush1.msra.mxu0 0.0
    %4334 = vmatprep.subr.mxu0 0.0
    %4335 = vmatpush1.msra.mxu0 0.0
    %4336 = vmatprep.subr.mxu0 0.0
    %4337 = vmatpush1.msra.mxu0 0.0
    %4338 = vmatprep.subr.mxu0 0.0
    %4339 = vmatpush1.msra.mxu0 0.0
    %4340 = vmatprep.subr.mxu0 0.0
    %4341 = vmatpush1.msra.mxu0 0.0
    %4342 = vmatprep.subr.mxu0 0.0
    %4343 = vmatpush1.msra.mxu0 0.0
    %4344 = vmatprep.subr.mxu0 0.0
    %4345 = vmatpush1.msra.mxu0 0.0
    %4346 = vmatprep.subr.mxu0 0.0
    %4347 = vmatpush1.msra.mxu0 0.0
    %4348 = vmatprep.subr.mxu0 0.0
    %4349 = vmatpush1.msra.mxu0 0.0
    %4350 = vmatprep.subr.mxu0 0.0
    %4351 = vmatpush1.msra.mxu0 0.0
    %4352 = vmatprep.subr.mxu0 0.0
    %4353 = vmatpush1.msra.mxu0 0.0
    %4354 = vmatprep.subr.mxu0 0.0
    %4355 = vmatpush1.msra.mxu0 0.0
    %4356 = vmatprep.subr.mxu0 0.0
    %4357 = vmatpush1.msra.mxu0 0.0
    %4358 = vmatprep.subr.mxu0 0.0
    %4359 = vmatpush1.msra.mxu0 0.0
    %4360 = vmatprep.subr.mxu0 0.0
    %4361 = vmatpush1.msra.mxu0 0.0
    %4362 = vmatprep.subr.mxu0 0.0
    %4363 = vmatpush1.msra.mxu0 0.0
    %4364 = vmatprep.subr.mxu0 0.0
    %4365 = vmatpush1.msra.mxu0 0.0
    %4366 = vmatprep.subr.mxu0 0.0
    %4367 = vmatpush1.msra.mxu0 0.0
    %4368 = vmatprep.mubr.f32.mxu0 0.0
    %4369 = vmatmul.mubr.f32.gmra.mrb[0].mxu0 %v505
    %v4370 = vpop.f32.mrb[0].mxu0
    %v4371 = vadd.f32 0.0, %v4370
    %v4372 = vpop.f32.mrb[0].mxu0
    %4373 = vmatprep.mubr.f32.mxu0 0.0
    %4374 = vmatmul.mubr.f32.gmra.mrb[0].mxu0 %v508
    %v4375 = vpop.f32.mrb[0].mxu0
    %v4376 = vadd.f32 0.0, %v4375
    %v4377 = vpop.f32.mrb[0].mxu0
    %4378 = vmatprep.mubr.f32.mxu0 0.0
    %4379 = vmatmul.mubr.f32.gmra.mrb[0].mxu0 %v511
    %v4380 = vpop.f32.mrb[0].mxu0
    %v4381 = vadd.f32 0.0, %v4380
    %v4382 = vpop.f32.mrb[0].mxu0
    %4383 = vmatprep.mubr.f32.mxu0 0.0
    %4384 = vmatmul.mubr.f32.gmra.mrb[0].mxu0 %v514
    %v4385 = vpop.f32.mrb[0].mxu0
    %v4386 = vadd.f32 0.0, %v4385
    %v4387 = vpop.f32.mrb[0].mxu0
    %4388 = vmatprep.mubr.f32.mxu0 0.0
    %4389 = vmatmul.mubr.f32.gmra.mrb[0].mxu0 %v517
    %v4390 = vpop.f32.mrb[0].mxu0
    %v4391 = vadd.f32 0.0, %v4390
    %v4392 = vpop.f32.mrb[0].mxu0
    %4393 = vmatprep.mubr.f32.mxu0 0.0
    %4394 = vmatmul.mubr.f32.gmra.mrb[0].mxu0 %v520
    %v4395 = vpop.f32.mrb[0].mxu0
    %v4396 = vadd.f32 0.0, %v4395
    %v4397 = vpop.f32.mrb[0].mxu0
    %4398 = vmatprep.mubr.f32.mxu0 0.0
    %4399 = vmatmul.mubr.f32.gmra.mrb[0].mxu0 %v523
    %v4400 = vpop.f32.mrb[0].mxu0
    %v4401 = vadd.f32 0.0, %v4400
    %v4402 = vpop.f32.mrb[0].mxu0
    %4403 = vmatprep.mubr.f32.mxu0 0.0
    %4404 = vmatmul.mubr.f32.gmra.mrb[0].mxu0 %v526
    %v4405 = vpop.f32.mrb[0].mxu0
    %v4406 = vadd.f32 0.0, %v4405
    %v4407 = vpop.f32.mrb[0].mxu0
    %4408 = vdwg.mxu0
    %4409 = vmatprep.subr.mxu0 0.0
    %4410 = vmatpush1.msra.mxu0 %v4302
    %4411 = vmatprep.subr.mxu0 0.0
    %4412 = vmatpush1.msra.mxu0 %v4303
    %4413 = vmatprep.subr.mxu0 0.0
    %4414 = vmatpush1.msra.mxu0 0.0
    %4415 = vmatprep.subr.mxu0 0.0
    %4416 = vmatpush1.msra.mxu0 0.0
    %4417 = vmatprep.subr.mxu0 0.0
    %4418 = vmatpush1.msra.mxu0 0.0
    %4419 = vmatprep.subr.mxu0 0.0
    %4420 = vmatpush1.msra.mxu0 0.0
    %4421 = vmatprep.subr.mxu0 0.0
    %4422 = vmatpush1.msra.mxu0 0.0
    %4423 = vmatprep.subr.mxu0 0.0
    %4424 = vmatpush1.msra.mxu0 0.0
    %4425 = vmatprep.subr.mxu0 0.0
    %4426 = vmatpush1.msra.mxu0 0.0
    %4427 = vmatprep.subr.mxu0 0.0
    %4428 = vmatpush1.msra.mxu0 0.0
    %4429 = vmatprep.subr.mxu0 0.0
    %4430 = vmatpush1.msra.mxu0 0.0
    %4431 = vmatprep.subr.mxu0 0.0
    %4432 = vmatpush1.msra.mxu0 0.0
    %4433 = vmatprep.subr.mxu0 0.0
    %4434 = vmatpush1.msra.mxu0 0.0
    %4435 = vmatprep.subr.mxu0 0.0
    %4436 = vmatpush1.msra.mxu0 0.0
    %4437 = vmatprep.subr.mxu0 0.0
    %4438 = vmatpush1.msra.mxu0 0.0
    %4439 = vmatprep.subr.mxu0 0.0
    %4440 = vmatpush1.msra.mxu0 0.0
    %4441 = vmatprep.subr.mxu0 0.0
    %4442 = vmatpush1.msra.mxu0 0.0
    %4443 = vmatprep.subr.mxu0 0.0
    %4444 = vmatpush1.msra.mxu0 0.0
    %4445 = vmatprep.subr.mxu0 0.0
    %4446 = vmatpush1.msra.mxu0 0.0
    %4447 = vmatprep.subr.mxu0 0.0
    %4448 = vmatpush1.msra.mxu0 0.0
    %4449 = vmatprep.subr.mxu0 0.0
    %4450 = vmatpush1.msra.mxu0 0.0
    %4451 = vmatprep.subr.mxu0 0.0
    %4452 = vmatpush1.msra.mxu0 0.0
    %4453 = vmatprep.subr.mxu0 0.0
    %4454 = vmatpush1.msra.mxu0 0.0
    %4455 = vmatprep.subr.mxu0 0.0
    %4456 = vmatpush1.msra.mxu0 0.0
    %4457 = vmatprep.subr.mxu0 0.0
    %4458 = vmatpush1.msra.mxu0 0.0
    %4459 = vmatprep.subr.mxu0 0.0
    %4460 = vmatpush1.msra.mxu0 0.0
    %4461 = vmatprep.subr.mxu0 0.0
    %4462 = vmatpush1.msra.mxu0 0.0
    %4463 = vmatprep.subr.mxu0 0.0
    %4464 = vmatpush1.msra.mxu0 0.0
    %4465 = vmatprep.subr.mxu0 0.0
    %4466 = vmatpush1.msra.mxu0 0.0
    %4467 = vmatprep.subr.mxu0 0.0
    %4468 = vmatpush1.msra.mxu0 0.0
    %4469 = vmatprep.subr.mxu0 0.0
    %4470 = vmatpush1.msra.mxu0 0.0
    %4471 = vmatprep.subr.mxu0 0.0
    %4472 = vmatpush1.msra.mxu0 0.0
    %4473 = vmatprep.mubr.f32.mxu0 0.0
    %4474 = vmatmul.mubr.f32.gmra.mrb[0].mxu0 %v634
    %v4475 = vpop.f32.mrb[0].mxu0
    %v4476 = vadd.f32 %v4371, %v4475
    %v4477 = vpop.f32.mrb[0].mxu0
    %4478 = vmatprep.mubr.f32.mxu0 0.0
    %4479 = vmatmul.mubr.f32.gmra.mrb[0].mxu0 %v637
    %v4480 = vpop.f32.mrb[0].mxu0
    %v4481 = vadd.f32 %v4376, %v4480
    %v4482 = vpop.f32.mrb[0].mxu0
    %4483 = vmatprep.mubr.f32.mxu0 0.0
    %4484 = vmatmul.mubr.f32.gmra.mrb[0].mxu0 %v640
    %v4485 = vpop.f32.mrb[0].mxu0
    %v4486 = vadd.f32 %v4381, %v4485
    %v4487 = vpop.f32.mrb[0].mxu0
    %4488 = vmatprep.mubr.f32.mxu0 0.0
    %4489 = vmatmul.mubr.f32.gmra.mrb[0].mxu0 %v643
    %v4490 = vpop.f32.mrb[0].mxu0
    %v4491 = vadd.f32 %v4386, %v4490
    %v4492 = vpop.f32.mrb[0].mxu0
    %4493 = vmatprep.mubr.f32.mxu0 0.0
    %4494 = vmatmul.mubr.f32.gmra.mrb[0].mxu0 %v646
    %v4495 = vpop.f32.mrb[0].mxu0
    %v4496 = vadd.f32 %v4391, %v4495
    %v4497 = vpop.f32.mrb[0].mxu0
    %4498 = vmatprep.mubr.f32.mxu0 0.0
    %4499 = vmatmul.mubr.f32.gmra.mrb[0].mxu0 %v649
    %v4500 = vpop.f32.mrb[0].mxu0
    %v4501 = vadd.f32 %v4396, %v4500
    %v4502 = vpop.f32.mrb[0].mxu0
    %4503 = vmatprep.mubr.f32.mxu0 0.0
    %4504 = vmatmul.mubr.f32.gmra.mrb[0].mxu0 %v652
    %v4505 = vpop.f32.mrb[0].mxu0
    %v4506 = vadd.f32 %v4401, %v4505
    %v4507 = vpop.f32.mrb[0].mxu0
    %4508 = vmatprep.mubr.f32.mxu0 0.0
    %4509 = vmatmul.mubr.f32.gmra.mrb[0].mxu0 %v655
    %v4510 = vpop.f32.mrb[0].mxu0
    %v4511 = vadd.f32 %v4406, %v4510
    %v4512 = vpop.f32.mrb[0].mxu0
    %4513 = vdwg.mxu0
    %v4514 = vadd.f32 %v4476, %v108
    %v4515 = vadd.f32 %v4481, %v113
    %v4516 = vadd.f32 %v4486, %v118
    %v4517 = vadd.f32 %v4491, %v123
    %v4518 = vadd.f32 %v4496, %v128
    %v4519 = vadd.f32 %v4501, %v133
    %v4520 = vadd.f32 %v4506, %v138
    %v4521 = vadd.f32 %v4511, %v143
    %v4522 = vxor.u32 %v4514, 2147483648
    %v4523 = vxor.u32 %v4515, 2147483648
    %v4524 = vmul.f32 %v4522, 1.442695
    %v4525 = vpow.pop %v4524
    %v4526 = vmul.f32 %v4523, 1.442695
    %v4527 = vpow.pop %v4526
    %v4528 = vadd.f32 %v4525, 1.0
    %v4529 = vadd.f32 %v4527, 1.0
    %v4530 = vrcp.pop %v4528
    %v4531 = vmul.f32 1.0, %v4530
    %v4532 = vrcp.pop %v4529
    %v4533 = vmul.f32 1.0, %v4532
    %v4534 = vxor.u32 %v4516, 2147483648
    %v4535 = vxor.u32 %v4517, 2147483648
    %v4536 = vmul.f32 %v4534, 1.442695
    %v4537 = vpow.pop %v4536
    %v4538 = vmul.f32 %v4535, 1.442695
    %v4539 = vpow.pop %v4538
    %v4540 = vadd.f32 %v4537, 1.0
    %v4541 = vadd.f32 %v4539, 1.0
    %v4542 = vrcp.pop %v4540
    %v4543 = vmul.f32 1.0, %v4542
    %v4544 = vrcp.pop %v4541
    %v4545 = vmul.f32 1.0, %v4544
    %v4546 = vtanh.pop %v4518
    %v4547 = vtanh.pop %v4519
    %v4548 = vxor.u32 %v4520, 2147483648
    %v4549 = vxor.u32 %v4521, 2147483648
    %v4550 = vmul.f32 %v4548, 1.442695
    %v4551 = vpow.pop %v4550
    %v4552 = vmul.f32 %v4549, 1.442695
    %v4553 = vpow.pop %v4552
    %v4554 = vadd.f32 %v4551, 1.0
    %v4555 = vadd.f32 %v4553, 1.0
    %v4556 = vrcp.pop %v4554
    %v4557 = vmul.f32 1.0, %v4556
    %v4558 = vrcp.pop %v4555
    %v4559 = vmul.f32 1.0, %v4558
    %v4560 = vmul.f32 %v4543, %v4028
    %v4561 = vmul.f32 %v4545, %v4029
    %v4562 = vmul.f32 %v4531, %v4546
    %v4563 = vmul.f32 %v4533, %v4547
    %v4564 = vadd.f32 %v4560, %v4562
    %v4565 = vadd.f32 %v4561, %v4563
    %v4566 = vtanh.pop %v4564
    %v4567 = vtanh.pop %v4565
    %v4568 = vmul.f32 %v4557, %v4566
    %v4569 = vmul.f32 %v4559, %v4567
    %v4570 = vadd.f32 %v4034, %v4568
    %v4571 = vadd.f32 %v4035, %v4569
    %4572 = vst [vmem:[#allocation2] sm:$0xff] %v4302
    %4573 = vst [vmem:[#allocation2 + $0x8] sm:$0xff] %v4303
    %4574 = vst [vmem:[#allocation3] sm:$0xff] %v4298
    %4575 = vst [vmem:[#allocation3 + $0x8] sm:$0xff] %v4299
    %4576 = vst [vmem:[#allocation4] sm:$0xff] %v4568
    %4577 = vst [vmem:[#allocation4 + $0x8] sm:$0xff] %v4569
    %4578 = vst [vmem:[#allocation5] sm:$0xff] %v4564
    %4579 = vst [vmem:[#allocation5 + $0x8] sm:$0xff] %v4565
    %4580 = vst [vmem:[#allocation6] sm:$0xff] %v4570
    %4581 = vst [vmem:[#allocation6 + $0x8] sm:$0xff] %v4571
    // Predicated region
    $region42: #{tpu_custom_call.1} parent=1 // pred_check
      %p4582 = pneg %p35
    $region43: #{tpu_custom_call.1} parent=1 // pred_check_branch
      %4584 = sbr.rel (%p4582) target = $region45
    $region44: #{tpu_custom_call.1} parent=1 // pred_region
      %v4585 = vld [vmem:[%s7] sm:$0xff]
      %v4586 = vld [vmem:[%s7 + $0x8] sm:$0xff]
      %v4587 = vmul.f32 %v4585, 0.125
      %v4588 = vmul.f32 %v4586, 0.125
      %4590 = vset.pattern.permute.xlu0 0
      %4591 = vperm.xlu0 %4590, %v4587
      %v4592 = vpop.permute.xlu0 %4591
      %4595 = vset.pattern.permute.xlu0 0
      %4596 = vperm.xlu0 %4595, %v4588
      %v4597 = vpop.permute.xlu0 %4596
      %v4599 = vmul.f32 %v4570, %v4592
      %v4600 = vmul.f32 %v4571, %v4597
      %v4601 = vadd.f32 %v4599, %v4600
      %v4602 = vrot.slane %v4601, 4
      %v4603 = vadd.f32 %v4601, %v4602
      %v4604 = vrot.slane %v4603, 2
      %v4605 = vadd.f32 %v4603, %v4604
      %v4606 = vrot.slane %v4605, 1
      %v4607 = vadd.f32 %v4605, %v4606
      %v4608 = vld [vmem:[#allocation7] sm:$0x1]
      %4610 = vset.pattern.permute.xlu0 0
      %4611 = vperm.xlu0 %4610, %v4608
      %v4612 = vpop.permute.xlu0 %4611
      %v4614 = vlaneseq
      %v4615 = vshrl.u32 %v4614, 7
      %v4616 = vsub.s32 0, %v4615
      %v4617 = vrot.slane %v4612, %v4616
      %v4618 = vadd.f32 %v4607, %v4617
      %4619 = vst [vmem:[#allocation8] sm:$0x1] %v4618
    $region45: #{tpu_custom_call.1} parent=1 // pred_fallthru
      _
    // Predicated region
    $region46: #{tpu_custom_call.1} parent=1 // pred_check
      _
    $region47: #{tpu_custom_call.1} parent=1 // pred_check_branch
      %4621 = sbr.rel (0) target = $region49
    $region48: #{tpu_custom_call.1} parent=1 // pred_region
      %s4623 = ssub.s32 16, 16
      %4624 = vsyncadd [#allocation9], %s4623
      %s4626 = sshll.u32 [#allocation8], 4
      %s4627 = int_to_ptr.vmem [resolvable:$true] %s4626
      %4629 = dma.vmem_to_hbm [thread:$0]  %s4627, 16, %s9, [#allocation9]
    $region49: #{tpu_custom_call.1} parent=1 // pred_fallthru
      _
    // Predicated region
    $region50: #{tpu_custom_call.1} parent=1 // pred_check
      _
    $region51: #{tpu_custom_call.1} parent=1 // pred_check_branch
      %4631 = sbr.rel (0) target = $region53
    $region52: #{tpu_custom_call.1} parent=1 // pred_region
      %4632 = dma.done [#allocation9], 16
    $region53: #{tpu_custom_call.1} parent=1 // pred_fallthru
      _
    %4633 = vsyncpa [#allocation9], 1

</llo_original>
